<compile_context>
chip_gen: v7x
topology: tpu7x:2x2x1
jax: 0.10.0
libtpu: 0.0.40
codegen_flags: <defaults>
</compile_context>

<pallas_src>
import functools

import jax
import jax.numpy as jnp
from jax.experimental import pallas as pl
from jax.experimental.pallas import tpu as pltpu


# ---------------------------------------------------------------------------
# tiling / compiler-param helpers
# ---------------------------------------------------------------------------

def _row_tile(s, cap=256):
    """Largest row tile <= cap that divides s (multiple of 8, or full dim)."""
    if s <= cap:
        return s
    for t in range(cap, 0, -8):
        if s % t == 0 and t % 8 == 0:
            return t
    return s


def _lane_tile(s, cap=512):
    """Largest lane tile <= cap that divides s (multiple of 128, or full dim)."""
    if s <= cap:
        return s
    for t in range(cap, 0, -128):
        if s % t == 0:
            return t
    return s


def _default_vmem_limit():
    # 3/4 of physical VMEM: ~96 MiB on v5e/v6e (128 MiB), ~48 MiB on v7x (64 MiB).
    try:
        cap = pltpu.get_tpu_info().vmem_capacity_bytes
    except Exception:
        cap = 64 * 1024 * 1024
    return int(max(32 * 1024 * 1024, min(100 * 1024 * 1024, cap * 3 // 4)))


_VMEM_LIMIT = _default_vmem_limit()


def _cparams(sem):
    return pltpu.CompilerParams(dimension_semantics=sem,
                                vmem_limit_bytes=_VMEM_LIMIT)


# ---------------------------------------------------------------------------
# Kernel 1: fused RMSNorm + head-major QKV projection + RoPE epilogue
#   grid = (row tiles, heads); head axis innermost so the normalized row tile
#   (VMEM scratch) and x/cos/sin blocks are reused across all HT head steps.
# ---------------------------------------------------------------------------

def _rmsnorm_qkv_rope_kernel(x_ref, nw_ref, w_ref, cos_ref, sin_ref,
                             o_ref, xn_ref, *, eps, hd2, n_rope_heads):
    n = pl.program_id(1)

    @pl.when(n == 0)
    def _():
        x = x_ref[...].astype(jnp.float32)                    # (tm, D)
        ms = jnp.mean(x * x, axis=-1, keepdims=True)
        xn_ref[...] = ((x * jax.lax.rsqrt(ms + eps)) * nw_ref[...]
                       ).astype(jnp.bfloat16)

    # TODO(synk): pack >=2 heads per step (lane-dense (tm, n*d) output) to fill
    # the 256-wide MXU on v6e/v7x; 1 head/step is already a perfect fit on v5e.
    y = jnp.dot(xn_ref[...], w_ref[0],
                preferred_element_type=jnp.float32)           # (tm, d) f32

    # half-split RoPE: out = y*cos + roll(y, d/2)*[-sin | sin]; q heads already
    # carry the 1/sqrt(d) scale folded into wq.  v heads pass through.
    @pl.when(n < n_rope_heads)
    def _():
        o_ref[0] = (y * cos_ref[...] + pltpu.roll(y, hd2, 1) * sin_ref[...]
                    ).astype(o_ref.dtype)

    @pl.when(n >= n_rope_heads)
    def _():
        o_ref[0] = y.astype(o_ref.dtype)


def rmsnorm_qkv_rope(x, norm_w, wqkv, cos_full, sin_signed, *, eps,
                     n_rope_heads):
    S, D = x.shape
    HT, _, d = wqkv.shape
    tm = _row_tile(S)
    return pl.pallas_call(
        functools.partial(_rmsnorm_qkv_rope_kernel, eps=eps, hd2=d // 2,
                          n_rope_heads=n_rope_heads),
        grid=(S // tm, HT),
        in_specs=[
            pl.BlockSpec((tm, D), lambda i, n: (i, 0)),       # resident over n
            pl.BlockSpec((1, D), lambda i, n: (0, 0)),
            pl.BlockSpec((1, D, d), lambda i, n: (n, 0, 0)),  # weight stream
            pl.BlockSpec((tm, d), lambda i, n: (i, 0)),       # cos, resident
            pl.BlockSpec((tm, d), lambda i, n: (i, 0)),       # sin, resident
        ],
        out_specs=pl.BlockSpec((1, tm, d), lambda i, n: (n, i, 0)),
        out_shape=jax.ShapeDtypeStruct((HT, S, d), jnp.bfloat16),
        scratch_shapes=[pltpu.VMEM((tm, D), jnp.bfloat16)],
        compiler_params=_cparams(("parallel", "arbitrary")),
    )(x, norm_w, wqkv, cos_full, sin_signed)


# ---------------------------------------------------------------------------
# Kernel 2: flash attention (online softmax).  GQA: one grid step handles the
# `rep` query heads of a KV group against a single streamed K/V tile, so K/V
# HBM traffic is 1x (not rep x).  RoPE + scale were already applied in K1.
# ---------------------------------------------------------------------------

def _flash_attn_kernel(q_ref, k_ref, v_ref, o_ref, m_sc, l_sc, acc_sc):
    ki = pl.program_id(2)
    rep, tq, d = q_ref.shape

    @pl.when(ki == 0)
    def _():
        m_sc[...] = jnp.full_like(m_sc, -jnp.inf)
        l_sc[...] = jnp.zeros_like(l_sc)
        acc_sc[...] = jnp.zeros_like(acc_sc)

    q = q_ref[...].reshape(rep * tq, d)                       # bf16, pre-roped/scaled
    s = jax.lax.dot_general(
        q, k_ref[0], dimension_numbers=(((1,), (1,)), ((), ())),
        preferred_element_type=jnp.float32)                   # (rep*tq, tk)

    m_prev = m_sc[...]
    m_new = jnp.maximum(m_prev, jnp.max(s, axis=-1, keepdims=True))
    alpha = jnp.exp(m_prev - m_new)
    p = jnp.exp(s - m_new)
    l_sc[...] = alpha * l_sc[...] + jnp.sum(p, axis=-1, keepdims=True)
    acc_sc[...] = alpha * acc_sc[...] + jnp.dot(
        p.astype(jnp.bfloat16), v_ref[0], preferred_element_type=jnp.float32)
    m_sc[...] = m_new

    @pl.when(ki == pl.num_programs(2) - 1)
    def _():
        o_ref[...] = (acc_sc[...] * pl.reciprocal(l_sc[...], approx=True)
                      ).reshape(rep, tq, d).astype(o_ref.dtype)


def flash_attention(qkv, *, n_heads, n_kv_heads):
    HT, S, d = qkv.shape
    Hq, Hk = n_heads, n_kv_heads
    rep = Hq // Hk
    tq = _row_tile(S)
    tk = _row_tile(S)
    return pl.pallas_call(
        _flash_attn_kernel,
        grid=(Hk, S // tq, S // tk),
        in_specs=[
            pl.BlockSpec((rep, tq, d), lambda g, qi, ki: (g, qi, 0)),
            pl.BlockSpec((1, tk, d), lambda g, qi, ki: (Hq + g, ki, 0)),
            pl.BlockSpec((1, tk, d), lambda g, qi, ki: (Hq + Hk + g, ki, 0)),
        ],
        out_specs=pl.BlockSpec((rep, tq, d), lambda g, qi, ki: (g, qi, 0)),
        out_shape=jax.ShapeDtypeStruct((Hq, S, d), jnp.bfloat16),
        scratch_shapes=[pltpu.VMEM((rep * tq, 1), jnp.float32),
                        pltpu.VMEM((rep * tq, 1), jnp.float32),
                        pltpu.VMEM((rep * tq, d), jnp.float32)],
        compiler_params=_cparams(("parallel", "parallel", "arbitrary")),
    )(qkv, qkv, qkv)


# ---------------------------------------------------------------------------
# Kernel 3: wo projection (head axis as reduction) + fused residual
# ---------------------------------------------------------------------------

def _wo_residual_kernel(a_ref, w_ref, res_ref, o_ref, acc_ref):
    h = pl.program_id(1)

    @pl.when(h == 0)
    def _():
        acc_ref[...] = jnp.zeros_like(acc_ref)

    # TODO(synk): reduce 2 heads per step (K=256) to fill the v6e/v7x MXU.
    acc_ref[...] += jnp.dot(a_ref[0], w_ref[0],
                            preferred_element_type=jnp.float32)

    @pl.when(h == pl.num_programs(1) - 1)
    def _():
        o_ref[...] = res_ref[...] + acc_ref[...]


def wo_residual(attn_out, wo3, x_res):
    H, S, d = attn_out.shape
    D = wo3.shape[-1]
    tm = _row_tile(S)
    return pl.pallas_call(
        _wo_residual_kernel,
        grid=(S // tm, H),
        in_specs=[
            pl.BlockSpec((1, tm, d), lambda i, h: (h, i, 0)),
            pl.BlockSpec((1, d, D), lambda i, h: (h, 0, 0)),
            pl.BlockSpec((tm, D), lambda i, h: (i, 0)),
        ],
        out_specs=pl.BlockSpec((tm, D), lambda i, h: (i, 0)),
        out_shape=jax.ShapeDtypeStruct((S, D), jnp.float32),
        scratch_shapes=[pltpu.VMEM((tm, D), jnp.float32)],
        compiler_params=_cparams(("parallel", "arbitrary")),
    )(attn_out, wo3, x_res)


# ---------------------------------------------------------------------------
# Kernel 4: fused RMSNorm + router gate projection
# ---------------------------------------------------------------------------

def _rmsnorm_gate_kernel(h_ref, nw_ref, g_ref, hn_ref, logits_ref, *, eps):
    x = h_ref[...].astype(jnp.float32)
    ms = jnp.mean(x * x, axis=-1, keepdims=True)
    xn = (x * jax.lax.rsqrt(ms + eps)) * nw_ref[...]
    hn_ref[...] = xn.astype(hn_ref.dtype)
    logits_ref[...] = jnp.dot(xn.astype(jnp.bfloat16), g_ref[...],
                              preferred_element_type=jnp.float32)


def rmsnorm_gate(h, norm_w, gate_t, *, eps):
    S, D = h.shape
    E = gate_t.shape[-1]
    tm = _row_tile(S)
    return pl.pallas_call(
        functools.partial(_rmsnorm_gate_kernel, eps=eps),
        grid=(S // tm,),
        in_specs=[
            pl.BlockSpec((tm, D), lambda i: (i, 0)),
            pl.BlockSpec((1, D), lambda i: (0, 0)),
            pl.BlockSpec((D, E), lambda i: (0, 0)),
        ],
        out_specs=[
            pl.BlockSpec((tm, D), lambda i: (i, 0)),
            pl.BlockSpec((tm, E), lambda i: (i, 0)),
        ],
        out_shape=(jax.ShapeDtypeStruct((S, D), jnp.bfloat16),
                   jax.ShapeDtypeStruct((S, E), jnp.float32)),
        compiler_params=_cparams(("parallel",)),
    )(h, norm_w, gate_t)


# ---------------------------------------------------------------------------
# Kernel 5: MoE experts.
#   grid = (token tiles, hidden chunks, expert steps) with the expert step
#   innermost.  A scalar-prefetched schedule lists each tile's active experts
#   first and pads with repeats of the last active expert, so padded steps
#   reuse the resident weight blocks (block index unchanged -> no DMA) and a
#   mask skips their compute.  Per-expert gate weights arrive as a (1, tm, 1)
#   column stream; the residual add is fused into the epilogue.
# ---------------------------------------------------------------------------

def _moe_kernel(sched_ref, smask_ref, x_ref, w1_ref, w3_ref, w2_ref, gw_ref,
                res_ref, o_ref, acc_ref):
    i = pl.program_id(0)
    c = pl.program_id(1)
    s = pl.program_id(2)

    @pl.when(jnp.logical_and(c == 0, s == 0))
    def _():
        acc_ref[...] = jnp.zeros_like(acc_ref)

    @pl.when(smask_ref[i, s] > 0)
    def _():
        x = x_ref[...]                                        # bf16 (tm, D)
        h1 = jnp.dot(x, w1_ref[0], preferred_element_type=jnp.float32)
        h3 = jnp.dot(x, w3_ref[0], preferred_element_type=jnp.float32)
        hh = (h1 * jax.nn.sigmoid(h1)) * h3                   # silu(x@w1)*(x@w3)
        out = jnp.dot(hh.astype(jnp.bfloat16), w2_ref[0],
                      preferred_element_type=jnp.float32)     # (tm, D)
        acc_ref[...] += gw_ref[0] * out                       # (tm,1)*(tm,D)

    @pl.when(jnp.logical_and(c == pl.num_programs(1) - 1,
                             s == pl.num_programs(2) - 1))
    def _():
        o_ref[...] = res_ref[...] + acc_ref[...]


def moe_ffn(hn, w1t, w3t, w2, gw, h_res):
    S, D = h_res.shape
    E, _, Hd = w1t.shape
    tm = _row_tile(S)
    thd = _lane_tile(Hd)              # stream expert weights in hidden-dim chunks
    ntiles = S // tm
    nchunks = Hd // thd

    # Per-tile expert schedule: active experts first (index order), padded with
    # repeats of the last active expert so padded steps cause no new weight DMA.
    act = (gw.reshape(ntiles, tm, E) > 0.0).any(axis=1)            # (ntiles, E)
    n_act = jnp.sum(act.astype(jnp.int32), axis=1)                 # (ntiles,)
    order = jnp.argsort(jnp.logical_not(act).astype(jnp.int32), axis=1)
    s_idx = jnp.arange(E, dtype=jnp.int32)[None, :]
    clip = jnp.clip(jnp.minimum(s_idx, n_act[:, None] - 1), 0, E - 1)
    sched = jnp.take_along_axis(order, clip, axis=1).astype(jnp.int32)
    smask = (s_idx < n_act[:, None]).astype(jnp.int32)

    gw_t = jnp.transpose(gw)[:, :, None].astype(jnp.float32)       # (E, S, 1)

    # TODO(synk): a grouped (sorted-by-expert) dispatch with scalar-prefetched
    # group offsets would additionally balance work across tiles.
    gs = pltpu.PrefetchScalarGridSpec(
        num_scalar_prefetch=2,
        grid=(ntiles, nchunks, E),
        in_specs=[
            pl.BlockSpec((tm, D), lambda i, c, s, sch, msk: (i, 0)),
            pl.BlockSpec((1, D, thd), lambda i, c, s, sch, msk: (sch[i, s], 0, c)),
            pl.BlockSpec((1, D, thd), lambda i, c, s, sch, msk: (sch[i, s], 0, c)),
            pl.BlockSpec((1, thd, D), lambda i, c, s, sch, msk: (sch[i, s], c, 0)),
            pl.BlockSpec((1, tm, 1), lambda i, c, s, sch, msk: (sch[i, s], i, 0)),
            pl.BlockSpec((tm, D), lambda i, c, s, sch, msk: (i, 0)),
        ],
        out_specs=pl.BlockSpec((tm, D), lambda i, c, s, sch, msk: (i, 0)),
        scratch_shapes=[pltpu.VMEM((tm, D), jnp.float32)],
    )
    return pl.pallas_call(
        _moe_kernel,
        grid_spec=gs,
        out_shape=jax.ShapeDtypeStruct((S, D), jnp.float32),
        compiler_params=_cparams(("parallel", "arbitrary", "arbitrary")),
    )(sched, smask, hn, w1t, w3t, w2, gw_t, h_res)


# ---------------------------------------------------------------------------
# Weight prep (one-time) and block wrapper
# ---------------------------------------------------------------------------

def prepare_params(raw, cfg):
    D, H, Hk, d = cfg["dim"], cfg["n_heads"], cfg["n_kv_heads"], cfg["head_dim"]
    scale = d ** -0.5
    # half-split permutation for RoPE: [even channels | odd channels] per head.
    # q and k get the same permutation => attention scores are unchanged.
    perm = jnp.concatenate([jnp.arange(0, d, 2), jnp.arange(1, d, 2)])

    def head_major(w, nh, permute):
        w3 = w.reshape(nh, d, D)
        if permute:
            w3 = w3[:, perm, :]
        return jnp.transpose(w3, (0, 2, 1))                   # (nh, D, d)

    wq3 = head_major(raw["wq"], H, True) * scale              # fold attn scale
    wk3 = head_major(raw["wk"], Hk, True)
    wv3 = head_major(raw["wv"], Hk, False)

    return {
        "attn_norm": raw["attn_norm"].reshape(1, D).astype(jnp.float32),
        "ffn_norm": raw["ffn_norm"].reshape(1, D).astype(jnp.float32),
        "wqkv": jnp.concatenate([wq3, wk3, wv3], axis=0).astype(jnp.bfloat16),
        "wo3": raw["wo"].T.reshape(H, d, D).astype(jnp.bfloat16),
        "gate_t": raw["gate"].T.astype(jnp.bfloat16),
        "w1t": jnp.transpose(raw["w1"], (0, 2, 1)).astype(jnp.bfloat16),
        "w3t": jnp.transpose(raw["w3"], (0, 2, 1)).astype(jnp.bfloat16),
        "w2": raw["w2"].astype(jnp.bfloat16),
    }


def transformer_block(p, x, cos_full, sin_signed, cfg):
    H, Hk = cfg["n_heads"], cfg["n_kv_heads"]
    eps = cfg["norm_eps"]

    # ---- attention sub-block ----
    qkv = rmsnorm_qkv_rope(x, p["attn_norm"], p["wqkv"], cos_full, sin_signed,
                           eps=eps, n_rope_heads=H + Hk)       # (H+2Hk, S, d)
    attn = flash_attention(qkv, n_heads=H, n_kv_heads=Hk)      # (H, S, d)
    h = wo_residual(attn, p["wo3"], x)                         # x + attn @ wo

    # ---- MoE feed-forward sub-block ----
    hn, logits = rmsnorm_gate(h, p["ffn_norm"], p["gate_t"], eps=eps)
    E, K = cfg["num_experts"], cfg["num_experts_per_tok"]
    topv, topi = jax.lax.top_k(logits, K)
    topw = jax.nn.softmax(topv, axis=-1)
    gw = jnp.sum(jax.nn.one_hot(topi, E, dtype=jnp.float32) * topw[..., None],
                 axis=1)                                       # (S, E)
    out = moe_ffn(hn, p["w1t"], p["w3t"], p["w2"], gw, h)
    # TODO(synk): dist.all_reduce(SUM) across expert-parallel ranks is identity
    # on a single device and is omitted here.
    return out


# ---------------------------------------------------------------------------
# Main
# ---------------------------------------------------------------------------

if __name__ == "__main__":
    cfg = dict(
        dim=32,
        head_dim=8,
        n_heads=4,
        n_kv_heads=2,
        hidden_dim=64,
        num_experts=8,
        num_experts_per_tok=2,
        norm_eps=1e-5,
        rope_theta=10000.0,
    )
    S = 8  # seqlen_sum
    D, Hd = cfg["dim"], cfg["hidden_dim"]
    H, Hk, d = cfg["n_heads"], cfg["n_kv_heads"], cfg["head_dim"]
    E = cfg["num_experts"]

    key = jax.random.PRNGKey(0)
    ks = jax.random.split(key, 12)
    init = lambda k, s: (0.05 * jax.random.normal(k, s)).astype(jnp.float32)

    raw = {
        "attn_norm": jnp.ones((D,), jnp.float32),
        "ffn_norm": jnp.ones((D,), jnp.float32),
        "wq": init(ks[0], (H * d, D)),      # nn.Linear weights are (out, in)
        "wk": init(ks[1], (Hk * d, D)),
        "wv": init(ks[2], (Hk * d, D)),
        "wo": init(ks[3], (D, H * d)),
        "gate": init(ks[4], (E, D)),
        "w1": init(ks[5], (E, Hd, D)),      # Experts store w1/w3 as (hidden, dim)
        "w2": init(ks[6], (E, Hd, D)),      # w2 used directly: (hidden, dim)
        "w3": init(ks[7], (E, Hd, D)),
    }
    params = prepare_params(raw, cfg)

    x = init(ks[8], (S, D)) * 20.0

    # RoPE tables in half-split form (equivalent to precompute_freqs_cis):
    # out = x*cos_full + roll(x, d/2)*sin_signed
    pos = jnp.arange(S, dtype=jnp.float32)
    inv_freq = 1.0 / (cfg["rope_theta"] **
                      (jnp.arange(0, d, 2, dtype=jnp.float32) / d))
    ang = pos[:, None] * inv_freq[None, :]                     # (S, d//2)
    cos_full = jnp.concatenate([jnp.cos(ang), jnp.cos(ang)], axis=-1)
    sin_signed = jnp.concatenate([-jnp.sin(ang), jnp.sin(ang)], axis=-1)

    block_fn = jax.jit(lambda p, xx, c, s: transformer_block(p, xx, c, s, cfg))
    out = block_fn(params, x, cos_full, sin_signed)
    jax.block_until_ready(out)
    assert out.shape == (S, D) and out.dtype == jnp.float32
    print("KERNEL_OK")
</pallas_src>

<mosaic_0001>
module attributes {stable_mosaic.version = 11 : i64} {
  func.func @_flash_attn_kernel(%arg0: i32, %arg1: i32, %arg2: i32, %arg3: memref<2x8x8xbf16, #tpu.memory_space<vmem>>, %arg4: memref<1x8x8xbf16, #tpu.memory_space<vmem>>, %arg5: memref<1x8x8xbf16, #tpu.memory_space<vmem>>, %arg6: memref<2x8x8xbf16, #tpu.memory_space<vmem>>, %arg7: memref<16x1xf32, #tpu.memory_space<vmem>>, %arg8: memref<16x1xf32, #tpu.memory_space<vmem>>, %arg9: memref<16x8xf32, #tpu.memory_space<vmem>>) attributes {dimension_semantics = [#tpu.dimension_semantics<parallel>, #tpu.dimension_semantics<parallel>, #tpu.dimension_semantics<arbitrary>], iteration_bounds = array<i64: 2, 1, 1>, scalar_prefetch = 0 : i64, scratch_operands = 3 : i64, tpu.core_type = #tpu.core_type<tc>, window_params = [{transform_indices = @transform_0, window_bounds = array<i64: 2, 8, 8>}, {transform_indices = @transform_1, window_bounds = array<i64: 1, 8, 8>}, {transform_indices = @transform_2, window_bounds = array<i64: 1, 8, 8>}, {transform_indices = @transform_3, window_bounds = array<i64: 2, 8, 8>}]} {
    %c0_i32 = arith.constant 0 : i32
    %0 = arith.cmpi eq, %arg2, %c0_i32 : i32
    %1 = arith.extui %0 : i1 to i32
    %c0_i32_0 = arith.constant 0 : i32
    %2 = arith.cmpi ne, %1, %c0_i32_0 : i32
    scf.if %2 {
      %cst_26 = arith.constant 0xFF800000 : f32
      %36 = vector.broadcast %cst_26 : f32 to vector<16x1xf32>
      %c0_27 = arith.constant 0 : index
      %c0_28 = arith.constant 0 : index
      %37 = vector.load %arg7[%c0_27, %c0_28] : memref<16x1xf32, #tpu.memory_space<vmem>>, vector<16x1xf32>
      tpu.vector_store %arg7[%c0_27, %c0_28], %36 {strides = array<i32>} : memref<16x1xf32, #tpu.memory_space<vmem>>, vector<16x1xf32>,
      %cst_29 = arith.constant 0.000000e+00 : f32
      %38 = vector.broadcast %cst_29 : f32 to vector<16x1xf32>
      %c0_30 = arith.constant 0 : index
      %c0_31 = arith.constant 0 : index
      %39 = vector.load %arg8[%c0_30, %c0_31] : memref<16x1xf32, #tpu.memory_space<vmem>>, vector<16x1xf32>
      tpu.vector_store %arg8[%c0_30, %c0_31], %38 {strides = array<i32>} : memref<16x1xf32, #tpu.memory_space<vmem>>, vector<16x1xf32>,
      %cst_32 = arith.constant 0.000000e+00 : f32
      %40 = vector.broadcast %cst_32 : f32 to vector<16x8xf32>
      %c0_33 = arith.constant 0 : index
      %c0_34 = arith.constant 0 : index
      %41 = vector.load %arg9[%c0_33, %c0_34] : memref<16x8xf32, #tpu.memory_space<vmem>>, vector<16x8xf32>
      tpu.vector_store %arg9[%c0_33, %c0_34], %40 {strides = array<i32>} : memref<16x8xf32, #tpu.memory_space<vmem>>, vector<16x8xf32>,
    } else {
    }
    %c0 = arith.constant 0 : index
    %c0_1 = arith.constant 0 : index
    %c0_2 = arith.constant 0 : index
    %3 = vector.load %arg3[%c0, %c0_1, %c0_2] : memref<2x8x8xbf16, #tpu.memory_space<vmem>>, vector<2x8x8xbf16>
    %4 = vector.shape_cast %3 : vector<2x8x8xbf16> to vector<16x8xbf16>
    %c0_3 = arith.constant 0 : index
    %c0_4 = arith.constant 0 : index
    %c0_5 = arith.constant 0 : index
    %5 = vector.load %arg4[%c0_3, %c0_4, %c0_5] : memref<1x8x8xbf16, #tpu.memory_space<vmem>>, vector<1x8x8xbf16>
    %6 = vector.shape_cast %5 : vector<1x8x8xbf16> to vector<8x8xbf16>
    %cst = arith.constant dense<0.000000e+00> : vector<16x8xf32>
    %7 = tpu.matmul %4, %6, %cst {dimension_numbers = #tpu.dot_dimension_numbers<[1], [1], [0], [0], [0, 0, 1, 0], [], []>} : vector<16x8xbf16>, vector<8x8xbf16>, vector<16x8xf32> -> vector<16x8xf32>
    %c0_6 = arith.constant 0 : index
    %c0_7 = arith.constant 0 : index
    %8 = vector.load %arg7[%c0_6, %c0_7] : memref<16x1xf32, #tpu.memory_space<vmem>>, vector<16x1xf32>
    %cst_8 = arith.constant dense<0xFF800000> : vector<16xf32>
    %9 = vector.multi_reduction <maximumf>, %7, %cst_8 [1] : vector<16x8xf32> to vector<16xf32>
    %10 = vector.shape_cast %9 : vector<16xf32> to vector<16x1xf32>
    %11 = arith.maximumf %8, %10 : vector<16x1xf32>
    %12 = arith.subf %8, %11 : vector<16x1xf32>
    %13 = math.exp %12 : vector<16x1xf32>
    %14 = vector.broadcast %11 : vector<16x1xf32> to vector<16x8xf32>
    %15 = arith.subf %7, %14 : vector<16x8xf32>
    %16 = math.exp %15 : vector<16x8xf32>
    %c0_9 = arith.constant 0 : index
    %c0_10 = arith.constant 0 : index
    %17 = vector.load %arg8[%c0_9, %c0_10] : memref<16x1xf32, #tpu.memory_space<vmem>>, vector<16x1xf32>
    %18 = arith.mulf %13, %17 : vector<16x1xf32>
    %cst_11 = arith.constant dense<0.000000e+00> : vector<16xf32>
    %19 = vector.multi_reduction <add>, %16, %cst_11 [1] : vector<16x8xf32> to vector<16xf32>
    %20 = vector.shape_cast %19 : vector<16xf32> to vector<16x1xf32>
    %21 = arith.addf %18, %20 : vector<16x1xf32>
    %c0_12 = arith.constant 0 : index
    %c0_13 = arith.constant 0 : index
    %22 = vector.load %arg8[%c0_12, %c0_13] : memref<16x1xf32, #tpu.memory_space<vmem>>, vector<16x1xf32>
    tpu.vector_store %arg8[%c0_12, %c0_13], %21 {strides = array<i32>} : memref<16x1xf32, #tpu.memory_space<vmem>>, vector<16x1xf32>,
    %c0_14 = arith.constant 0 : index
    %c0_15 = arith.constant 0 : index
    %23 = vector.load %arg9[%c0_14, %c0_15] : memref<16x8xf32, #tpu.memory_space<vmem>>, vector<16x8xf32>
    %24 = vector.broadcast %13 : vector<16x1xf32> to vector<16x8xf32>
    %25 = arith.mulf %24, %23 : vector<16x8xf32>
    %26 = arith.truncf %16 : vector<16x8xf32> to vector<16x8xbf16>
    %c0_16 = arith.constant 0 : index
    %c0_17 = arith.constant 0 : index
    %c0_18 = arith.constant 0 : index
    %27 = vector.load %arg5[%c0_16, %c0_17, %c0_18] : memref<1x8x8xbf16, #tpu.memory_space<vmem>>, vector<1x8x8xbf16>
    %28 = vector.shape_cast %27 : vector<1x8x8xbf16> to vector<8x8xbf16>
    %cst_19 = arith.constant dense<0.000000e+00> : vector<16x8xf32>
    %29 = tpu.matmul %26, %28, %cst_19 {dimension_numbers = #tpu.dot_dimension_numbers<[1], [0], [0], [1], [0, 0, 1, 1], [], []>} : vector<16x8xbf16>, vector<8x8xbf16>, vector<16x8xf32> -> vector<16x8xf32>
    %30 = arith.addf %25, %29 : vector<16x8xf32>
    %c0_20 = arith.constant 0 : index
    %c0_21 = arith.constant 0 : index
    %31 = vector.load %arg9[%c0_20, %c0_21] : memref<16x8xf32, #tpu.memory_space<vmem>>, vector<16x8xf32>
    tpu.vector_store %arg9[%c0_20, %c0_21], %30 {strides = array<i32>} : memref<16x8xf32, #tpu.memory_space<vmem>>, vector<16x8xf32>,
    %c0_22 = arith.constant 0 : index
    %c0_23 = arith.constant 0 : index
    %32 = vector.load %arg7[%c0_22, %c0_23] : memref<16x1xf32, #tpu.memory_space<vmem>>, vector<16x1xf32>
    tpu.vector_store %arg7[%c0_22, %c0_23], %11 {strides = array<i32>} : memref<16x1xf32, #tpu.memory_space<vmem>>, vector<16x1xf32>,
    %c0_i32_24 = arith.constant 0 : i32
    %33 = arith.cmpi eq, %arg2, %c0_i32_24 : i32
    %34 = arith.extui %33 : i1 to i32
    %c0_i32_25 = arith.constant 0 : i32
    %35 = arith.cmpi ne, %34, %c0_i32_25 : i32
    scf.if %35 {
      %c0_26 = arith.constant 0 : index
      %c0_27 = arith.constant 0 : index
      %36 = vector.load %arg9[%c0_26, %c0_27] : memref<16x8xf32, #tpu.memory_space<vmem>>, vector<16x8xf32>
      %c0_28 = arith.constant 0 : index
      %c0_29 = arith.constant 0 : index
      %37 = vector.load %arg8[%c0_28, %c0_29] : memref<16x1xf32, #tpu.memory_space<vmem>>, vector<16x1xf32>
      %38 = tpu.reciprocal %37 {approx = true} : vector<16x1xf32> -> vector<16x1xf32>
      %39 = vector.broadcast %38 : vector<16x1xf32> to vector<16x8xf32>
      %40 = arith.mulf %36, %39 : vector<16x8xf32>
      %41 = vector.shape_cast %40 : vector<16x8xf32> to vector<2x8x8xf32>
      %42 = arith.truncf %41 : vector<2x8x8xf32> to vector<2x8x8xbf16>
      %c0_30 = arith.constant 0 : index
      %c0_31 = arith.constant 0 : index
      %c0_32 = arith.constant 0 : index
      %43 = vector.load %arg6[%c0_30, %c0_31, %c0_32] : memref<2x8x8xbf16, #tpu.memory_space<vmem>>, vector<2x8x8xbf16>
      tpu.vector_store %arg6[%c0_30, %c0_31, %c0_32], %42 {strides = array<i32>} : memref<2x8x8xbf16, #tpu.memory_space<vmem>>, vector<2x8x8xbf16>,
    } else {
    }
    return
  }
  func.func @transform_0(%arg0: i32, %arg1: i32, %arg2: i32) -> (i32, i32, i32) {
    %c0_i32 = arith.constant 0 : i32
    %c0_i32_0 = arith.constant 0 : i32
    return %arg0, %arg1, %c0_i32 : i32, i32, i32
  }
  func.func @transform_1(%arg0: i32, %arg1: i32, %arg2: i32) -> (i32, i32, i32) {
    %c4_i32 = arith.constant 4 : i32
    %0 = arith.addi %c4_i32, %arg0 : i32
    %c0_i32 = arith.constant 0 : i32
    %c0_i32_0 = arith.constant 0 : i32
    return %0, %arg2, %c0_i32 : i32, i32, i32
  }
  func.func @transform_2(%arg0: i32, %arg1: i32, %arg2: i32) -> (i32, i32, i32) {
    %c6_i32 = arith.constant 6 : i32
    %0 = arith.addi %c6_i32, %arg0 : i32
    %c0_i32 = arith.constant 0 : i32
    %c0_i32_0 = arith.constant 0 : i32
    return %0, %arg2, %c0_i32 : i32, i32, i32
  }
  func.func @transform_3(%arg0: i32, %arg1: i32, %arg2: i32) -> (i32, i32, i32) {
    %c0_i32 = arith.constant 0 : i32
    %c0_i32_0 = arith.constant 0 : i32
    return %arg0, %arg1, %c0_i32 : i32, i32, i32
  }
}

module attributes {stable_mosaic.version = 11 : i64} {
  func.func @_wo_residual_kernel(%arg0: i32, %arg1: i32, %arg2: memref<1x8x8xbf16, #tpu.memory_space<vmem>>, %arg3: memref<1x8x32xbf16, #tpu.memory_space<vmem>>, %arg4: memref<8x32xf32, #tpu.memory_space<vmem>>, %arg5: memref<8x32xf32, #tpu.memory_space<vmem>>, %arg6: memref<8x32xf32, #tpu.memory_space<vmem>>) attributes {dimension_semantics = [#tpu.dimension_semantics<parallel>, #tpu.dimension_semantics<arbitrary>], iteration_bounds = array<i64: 1, 4>, scalar_prefetch = 0 : i64, scratch_operands = 1 : i64, tpu.core_type = #tpu.core_type<tc>, window_params = [{transform_indices = @transform_0, window_bounds = array<i64: 1, 8, 8>}, {transform_indices = @transform_1, window_bounds = array<i64: 1, 8, 32>}, {transform_indices = @transform_2, window_bounds = array<i64: 8, 32>}, {transform_indices = @transform_3, window_bounds = array<i64: 8, 32>}]} {
    %c0_i32 = arith.constant 0 : i32
    %0 = arith.cmpi eq, %arg1, %c0_i32 : i32
    %1 = arith.extui %0 : i1 to i32
    %c0_i32_0 = arith.constant 0 : i32
    %2 = arith.cmpi ne, %1, %c0_i32_0 : i32
    scf.if %2 {
      %cst_11 = arith.constant 0.000000e+00 : f32
      %14 = vector.broadcast %cst_11 : f32 to vector<8x32xf32>
      %c0_12 = arith.constant 0 : index
      %c0_13 = arith.constant 0 : index
      %15 = vector.load %arg6[%c0_12, %c0_13] : memref<8x32xf32, #tpu.memory_space<vmem>>, vector<8x32xf32>
      tpu.vector_store %arg6[%c0_12, %c0_13], %14 {strides = array<i32>} : memref<8x32xf32, #tpu.memory_space<vmem>>, vector<8x32xf32>,
    } else {
    }
    %c0 = arith.constant 0 : index
    %c0_1 = arith.constant 0 : index
    %3 = vector.load %arg6[%c0, %c0_1] : memref<8x32xf32, #tpu.memory_space<vmem>>, vector<8x32xf32>
    %c0_2 = arith.constant 0 : index
    %c0_3 = arith.constant 0 : index
    %c0_4 = arith.constant 0 : index
    %4 = vector.load %arg2[%c0_2, %c0_3, %c0_4] : memref<1x8x8xbf16, #tpu.memory_space<vmem>>, vector<1x8x8xbf16>
    %5 = vector.shape_cast %4 : vector<1x8x8xbf16> to vector<8x8xbf16>
    %c0_5 = arith.constant 0 : index
    %c0_6 = arith.constant 0 : index
    %c0_7 = arith.constant 0 : index
    %6 = vector.load %arg3[%c0_5, %c0_6, %c0_7] : memref<1x8x32xbf16, #tpu.memory_space<vmem>>, vector<1x8x32xbf16>
    %7 = vector.shape_cast %6 : vector<1x8x32xbf16> to vector<8x32xbf16>
    %cst = arith.constant dense<0.000000e+00> : vector<8x32xf32>
    %8 = tpu.matmul %5, %7, %cst {dimension_numbers = #tpu.dot_dimension_numbers<[1], [0], [0], [1], [0, 0, 1, 1], [], []>} : vector<8x8xbf16>, vector<8x32xbf16>, vector<8x32xf32> -> vector<8x32xf32>
    %9 = arith.addf %3, %8 : vector<8x32xf32>
    %c0_8 = arith.constant 0 : index
    %c0_9 = arith.constant 0 : index
    %10 = vector.load %arg6[%c0_8, %c0_9] : memref<8x32xf32, #tpu.memory_space<vmem>>, vector<8x32xf32>
    tpu.vector_store %arg6[%c0_8, %c0_9], %9 {strides = array<i32>} : memref<8x32xf32, #tpu.memory_space<vmem>>, vector<8x32xf32>,
    %c3_i32 = arith.constant 3 : i32
    %11 = arith.cmpi eq, %arg1, %c3_i32 : i32
    %12 = arith.extui %11 : i1 to i32
    %c0_i32_10 = arith.constant 0 : i32
    %13 = arith.cmpi ne, %12, %c0_i32_10 : i32
    scf.if %13 {
      %c0_11 = arith.constant 0 : index
      %c0_12 = arith.constant 0 : index
      %14 = vector.load %arg4[%c0_11, %c0_12] : memref<8x32xf32, #tpu.memory_space<vmem>>, vector<8x32xf32>
      %c0_13 = arith.constant 0 : index
      %c0_14 = arith.constant 0 : index
      %15 = vector.load %arg6[%c0_13, %c0_14] : memref<8x32xf32, #tpu.memory_space<vmem>>, vector<8x32xf32>
      %16 = arith.addf %14, %15 : vector<8x32xf32>
      %c0_15 = arith.constant 0 : index
      %c0_16 = arith.constant 0 : index
      %17 = vector.load %arg5[%c0_15, %c0_16] : memref<8x32xf32, #tpu.memory_space<vmem>>, vector<8x32xf32>
      tpu.vector_store %arg5[%c0_15, %c0_16], %16 {strides = array<i32>} : memref<8x32xf32, #tpu.memory_space<vmem>>, vector<8x32xf32>,
    } else {
    }
    return
  }
  func.func @transform_0(%arg0: i32, %arg1: i32) -> (i32, i32, i32) {
    %c0_i32 = arith.constant 0 : i32
    %c0_i32_0 = arith.constant 0 : i32
    return %arg1, %arg0, %c0_i32 : i32, i32, i32
  }
  func.func @transform_1(%arg0: i32, %arg1: i32) -> (i32, i32, i32) {
    %c0_i32 = arith.constant 0 : i32
    %c0_i32_0 = arith.constant 0 : i32
    %c0_i32_1 = arith.constant 0 : i32
    return %arg1, %c0_i32, %c0_i32_0 : i32, i32, i32
  }
  func.func @transform_2(%arg0: i32, %arg1: i32) -> (i32, i32) {
    %c0_i32 = arith.constant 0 : i32
    %c0_i32_0 = arith.constant 0 : i32
    return %arg0, %c0_i32 : i32, i32
  }
  func.func @transform_3(%arg0: i32, %arg1: i32) -> (i32, i32) {
    %c0_i32 = arith.constant 0 : i32
    %c0_i32_0 = arith.constant 0 : i32
    return %arg0, %c0_i32 : i32, i32
  }
}

module attributes {stable_mosaic.version = 11 : i64} {
  func.func @_rmsnorm_qkv_rope_kernel(%arg0: i32, %arg1: i32, %arg2: memref<8x32xf32, #tpu.memory_space<vmem>>, %arg3: memref<1x32xf32, #tpu.memory_space<vmem>>, %arg4: memref<1x32x8xbf16, #tpu.memory_space<vmem>>, %arg5: memref<8x8xf32, #tpu.memory_space<vmem>>, %arg6: memref<8x8xf32, #tpu.memory_space<vmem>>, %arg7: memref<1x8x8xbf16, #tpu.memory_space<vmem>>, %arg8: memref<8x32xbf16, #tpu.memory_space<vmem>>) attributes {dimension_semantics = [#tpu.dimension_semantics<parallel>, #tpu.dimension_semantics<arbitrary>], iteration_bounds = array<i64: 1, 8>, scalar_prefetch = 0 : i64, scratch_operands = 1 : i64, tpu.core_type = #tpu.core_type<tc>, window_params = [{transform_indices = @transform_0, window_bounds = array<i64: 8, 32>}, {pipeline_mode = #tpu.pipeline_mode<synchronous>, transform_indices = @transform_1, window_bounds = array<i64: 1, 32>}, {transform_indices = @transform_2, window_bounds = array<i64: 1, 32, 8>}, {transform_indices = @transform_3, window_bounds = array<i64: 8, 8>}, {transform_indices = @transform_4, window_bounds = array<i64: 8, 8>}, {transform_indices = @transform_5, window_bounds = array<i64: 1, 8, 8>}]} {
    %c0_i32 = arith.constant 0 : i32
    %0 = arith.cmpi eq, %arg1, %c0_i32 : i32
    %1 = arith.extui %0 : i1 to i32
    %c0_i32_0 = arith.constant 0 : i32
    %2 = arith.cmpi ne, %1, %c0_i32_0 : i32
    scf.if %2 {
      %c0_8 = arith.constant 0 : index
      %c0_9 = arith.constant 0 : index
      %13 = vector.load %arg2[%c0_8, %c0_9] : memref<8x32xf32, #tpu.memory_space<vmem>>, vector<8x32xf32>
      %14 = arith.mulf %13, %13 : vector<8x32xf32>
      %cst_10 = arith.constant dense<0.000000e+00> : vector<8xf32>
      %15 = vector.multi_reduction <add>, %14, %cst_10 [1] : vector<8x32xf32> to vector<8xf32>
      %16 = vector.shape_cast %15 : vector<8xf32> to vector<8x1xf32>
      %cst_11 = arith.constant 3.200000e+01 : f32
      %17 = vector.broadcast %cst_11 : f32 to vector<8x1xf32>
      %18 = arith.divf %16, %17 : vector<8x1xf32>
      %cst_12 = arith.constant 9.99999974E-6 : f32
      %19 = vector.broadcast %cst_12 : f32 to vector<8x1xf32>
      %20 = arith.addf %18, %19 : vector<8x1xf32>
      %21 = math.rsqrt %20 : vector<8x1xf32>
      %22 = vector.broadcast %21 : vector<8x1xf32> to vector<8x32xf32>
      %23 = arith.mulf %13, %22 : vector<8x32xf32>
      %c0_13 = arith.constant 0 : index
      %c0_14 = arith.constant 0 : index
      %24 = vector.load %arg3[%c0_13, %c0_14] : memref<1x32xf32, #tpu.memory_space<vmem>>, vector<1x32xf32>
      %25 = vector.broadcast %24 : vector<1x32xf32> to vector<8x32xf32>
      %26 = arith.mulf %23, %25 : vector<8x32xf32>
      %27 = arith.truncf %26 : vector<8x32xf32> to vector<8x32xbf16>
      %c0_15 = arith.constant 0 : index
      %c0_16 = arith.constant 0 : index
      %28 = vector.load %arg8[%c0_15, %c0_16] : memref<8x32xbf16, #tpu.memory_space<vmem>>, vector<8x32xbf16>
      tpu.vector_store %arg8[%c0_15, %c0_16], %27 {strides = array<i32>} : memref<8x32xbf16, #tpu.memory_space<vmem>>, vector<8x32xbf16>,
    } else {
    }
    %c0 = arith.constant 0 : index
    %c0_1 = arith.constant 0 : index
    %3 = vector.load %arg8[%c0, %c0_1] : memref<8x32xbf16, #tpu.memory_space<vmem>>, vector<8x32xbf16>
    %c0_2 = arith.constant 0 : index
    %c0_3 = arith.constant 0 : index
    %c0_4 = arith.constant 0 : index
    %4 = vector.load %arg4[%c0_2, %c0_3, %c0_4] : memref<1x32x8xbf16, #tpu.memory_space<vmem>>, vector<1x32x8xbf16>
    %5 = vector.shape_cast %4 : vector<1x32x8xbf16> to vector<32x8xbf16>
    %cst = arith.constant dense<0.000000e+00> : vector<8x8xf32>
    %6 = tpu.matmul %3, %5, %cst {dimension_numbers = #tpu.dot_dimension_numbers<[1], [0], [0], [1], [0, 0, 1, 1], [], []>} : vector<8x32xbf16>, vector<32x8xbf16>, vector<8x8xf32> -> vector<8x8xf32>
    %c6_i32 = arith.constant 6 : i32
    %7 = arith.cmpi slt, %arg1, %c6_i32 : i32
    %8 = arith.extui %7 : i1 to i32
    %c0_i32_5 = arith.constant 0 : i32
    %9 = arith.cmpi ne, %8, %c0_i32_5 : i32
    scf.if %9 {
      %c0_8 = arith.constant 0 : index
      %c0_9 = arith.constant 0 : index
      %13 = vector.load %arg5[%c0_8, %c0_9] : memref<8x8xf32, #tpu.memory_space<vmem>>, vector<8x8xf32>
      %14 = arith.mulf %6, %13 : vector<8x8xf32>
      %c4_i32 = arith.constant 4 : i32
      %15 = tpu.dynamic_rotate %6 by %c4_i32 dim 1 : vector<8x8xf32>, i32 -> vector<8x8xf32>
      %c0_10 = arith.constant 0 : index
      %c0_11 = arith.constant 0 : index
      %16 = vector.load %arg6[%c0_10, %c0_11] : memref<8x8xf32, #tpu.memory_space<vmem>>, vector<8x8xf32>
      %17 = arith.mulf %15, %16 : vector<8x8xf32>
      %18 = arith.addf %14, %17 : vector<8x8xf32>
      %19 = arith.truncf %18 : vector<8x8xf32> to vector<8x8xbf16>
      %c0_12 = arith.constant 0 : index
      %c0_13 = arith.constant 0 : index
      %c0_14 = arith.constant 0 : index
      %20 = vector.load %arg7[%c0_12, %c0_13, %c0_14] : memref<1x8x8xbf16, #tpu.memory_space<vmem>>, vector<1x8x8xbf16>
      %21 = vector.shape_cast %20 : vector<1x8x8xbf16> to vector<8x8xbf16>
      %22 = vector.shape_cast %19 : vector<8x8xbf16> to vector<1x8x8xbf16>
      tpu.vector_store %arg7[%c0_12, %c0_13, %c0_14], %22 {strides = array<i32>} : memref<1x8x8xbf16, #tpu.memory_space<vmem>>, vector<1x8x8xbf16>,
    } else {
    }
    %c6_i32_6 = arith.constant 6 : i32
    %10 = arith.cmpi sge, %arg1, %c6_i32_6 : i32
    %11 = arith.extui %10 : i1 to i32
    %c0_i32_7 = arith.constant 0 : i32
    %12 = arith.cmpi ne, %11, %c0_i32_7 : i32
    scf.if %12 {
      %13 = arith.truncf %6 : vector<8x8xf32> to vector<8x8xbf16>
      %c0_8 = arith.constant 0 : index
      %c0_9 = arith.constant 0 : index
      %c0_10 = arith.constant 0 : index
      %14 = vector.load %arg7[%c0_8, %c0_9, %c0_10] : memref<1x8x8xbf16, #tpu.memory_space<vmem>>, vector<1x8x8xbf16>
      %15 = vector.shape_cast %14 : vector<1x8x8xbf16> to vector<8x8xbf16>
      %16 = vector.shape_cast %13 : vector<8x8xbf16> to vector<1x8x8xbf16>
      tpu.vector_store %arg7[%c0_8, %c0_9, %c0_10], %16 {strides = array<i32>} : memref<1x8x8xbf16, #tpu.memory_space<vmem>>, vector<1x8x8xbf16>,
    } else {
    }
    return
  }
  func.func @transform_0(%arg0: i32, %arg1: i32) -> (i32, i32) {
    %c0_i32 = arith.constant 0 : i32
    %c0_i32_0 = arith.constant 0 : i32
    return %arg0, %c0_i32 : i32, i32
  }
  func.func @transform_1(%arg0: i32, %arg1: i32) -> (i32, i32) {
    %c0_i32 = arith.constant 0 : i32
    %c0_i32_0 = arith.constant 0 : i32
    %c0_i32_1 = arith.constant 0 : i32
    return %c0_i32, %c0_i32_0 : i32, i32
  }
  func.func @transform_2(%arg0: i32, %arg1: i32) -> (i32, i32, i32) {
    %c0_i32 = arith.constant 0 : i32
    %c0_i32_0 = arith.constant 0 : i32
    %c0_i32_1 = arith.constant 0 : i32
    return %arg1, %c0_i32, %c0_i32_0 : i32, i32, i32
  }
  func.func @transform_3(%arg0: i32, %arg1: i32) -> (i32, i32) {
    %c0_i32 = arith.constant 0 : i32
    %c0_i32_0 = arith.constant 0 : i32
    return %arg0, %c0_i32 : i32, i32
  }
  func.func @transform_4(%arg0: i32, %arg1: i32) -> (i32, i32) {
    %c0_i32 = arith.constant 0 : i32
    %c0_i32_0 = arith.constant 0 : i32
    return %arg0, %c0_i32 : i32, i32
  }
  func.func @transform_5(%arg0: i32, %arg1: i32) -> (i32, i32, i32) {
    %c0_i32 = arith.constant 0 : i32
    %c0_i32_0 = arith.constant 0 : i32
    return %arg1, %arg0, %c0_i32 : i32, i32, i32
  }
}

module attributes {stable_mosaic.version = 11 : i64} {
  func.func @_rmsnorm_gate_kernel(%arg0: i32, %arg1: memref<8x32xf32, #tpu.memory_space<vmem>>, %arg2: memref<1x32xf32, #tpu.memory_space<vmem>>, %arg3: memref<32x8xbf16, #tpu.memory_space<vmem>>, %arg4: memref<8x32xbf16, #tpu.memory_space<vmem>>, %arg5: memref<8x8xf32, #tpu.memory_space<vmem>>) attributes {dimension_semantics = [#tpu.dimension_semantics<parallel>], iteration_bounds = array<i64: 1>, scalar_prefetch = 0 : i64, scratch_operands = 0 : i64, tpu.core_type = #tpu.core_type<tc>, window_params = [{transform_indices = @transform_0, window_bounds = array<i64: 8, 32>}, {pipeline_mode = #tpu.pipeline_mode<synchronous>, transform_indices = @transform_1, window_bounds = array<i64: 1, 32>}, {pipeline_mode = #tpu.pipeline_mode<synchronous>, transform_indices = @transform_2, window_bounds = array<i64: 32, 8>}, {transform_indices = @transform_3, window_bounds = array<i64: 8, 32>}, {transform_indices = @transform_4, window_bounds = array<i64: 8, 8>}]} {
    %c0 = arith.constant 0 : index
    %c0_0 = arith.constant 0 : index
    %0 = vector.load %arg1[%c0, %c0_0] : memref<8x32xf32, #tpu.memory_space<vmem>>, vector<8x32xf32>
    %1 = arith.mulf %0, %0 : vector<8x32xf32>
    %cst = arith.constant dense<0.000000e+00> : vector<8xf32>
    %2 = vector.multi_reduction <add>, %1, %cst [1] : vector<8x32xf32> to vector<8xf32>
    %3 = vector.shape_cast %2 : vector<8xf32> to vector<8x1xf32>
    %cst_1 = arith.constant 3.200000e+01 : f32
    %4 = vector.broadcast %cst_1 : f32 to vector<8x1xf32>
    %5 = arith.divf %3, %4 : vector<8x1xf32>
    %cst_2 = arith.constant 9.99999974E-6 : f32
    %6 = vector.broadcast %cst_2 : f32 to vector<8x1xf32>
    %7 = arith.addf %5, %6 : vector<8x1xf32>
    %8 = math.rsqrt %7 : vector<8x1xf32>
    %9 = vector.broadcast %8 : vector<8x1xf32> to vector<8x32xf32>
    %10 = arith.mulf %0, %9 : vector<8x32xf32>
    %c0_3 = arith.constant 0 : index
    %c0_4 = arith.constant 0 : index
    %11 = vector.load %arg2[%c0_3, %c0_4] : memref<1x32xf32, #tpu.memory_space<vmem>>, vector<1x32xf32>
    %12 = vector.broadcast %11 : vector<1x32xf32> to vector<8x32xf32>
    %13 = arith.mulf %10, %12 : vector<8x32xf32>
    %14 = arith.truncf %13 : vector<8x32xf32> to vector<8x32xbf16>
    %c0_5 = arith.constant 0 : index
    %c0_6 = arith.constant 0 : index
    %15 = vector.load %arg4[%c0_5, %c0_6] : memref<8x32xbf16, #tpu.memory_space<vmem>>, vector<8x32xbf16>
    tpu.vector_store %arg4[%c0_5, %c0_6], %14 {strides = array<i32>} : memref<8x32xbf16, #tpu.memory_space<vmem>>, vector<8x32xbf16>,
    %16 = arith.truncf %13 : vector<8x32xf32> to vector<8x32xbf16>
    %c0_7 = arith.constant 0 : index
    %c0_8 = arith.constant 0 : index
    %17 = vector.load %arg3[%c0_7, %c0_8] : memref<32x8xbf16, #tpu.memory_space<vmem>>, vector<32x8xbf16>
    %cst_9 = arith.constant dense<0.000000e+00> : vector<8x8xf32>
    %18 = tpu.matmul %16, %17, %cst_9 {dimension_numbers = #tpu.dot_dimension_numbers<[1], [0], [0], [1], [0, 0, 1, 1], [], []>} : vector<8x32xbf16>, vector<32x8xbf16>, vector<8x8xf32> -> vector<8x8xf32>
    %c0_10 = arith.constant 0 : index
    %c0_11 = arith.constant 0 : index
    %19 = vector.load %arg5[%c0_10, %c0_11] : memref<8x8xf32, #tpu.memory_space<vmem>>, vector<8x8xf32>
    tpu.vector_store %arg5[%c0_10, %c0_11], %18 {strides = array<i32>} : memref<8x8xf32, #tpu.memory_space<vmem>>, vector<8x8xf32>,
    return
  }
  func.func @transform_0(%arg0: i32) -> (i32, i32) {
    %c0_i32 = arith.constant 0 : i32
    %c0_i32_0 = arith.constant 0 : i32
    return %arg0, %c0_i32 : i32, i32
  }
  func.func @transform_1(%arg0: i32) -> (i32, i32) {
    %c0_i32 = arith.constant 0 : i32
    %c0_i32_0 = arith.constant 0 : i32
    %c0_i32_1 = arith.constant 0 : i32
    return %c0_i32, %c0_i32_0 : i32, i32
  }
  func.func @transform_2(%arg0: i32) -> (i32, i32) {
    %c0_i32 = arith.constant 0 : i32
    %c0_i32_0 = arith.constant 0 : i32
    %c0_i32_1 = arith.constant 0 : i32
    return %c0_i32, %c0_i32_0 : i32, i32
  }
  func.func @transform_3(%arg0: i32) -> (i32, i32) {
    %c0_i32 = arith.constant 0 : i32
    %c0_i32_0 = arith.constant 0 : i32
    return %arg0, %c0_i32 : i32, i32
  }
  func.func @transform_4(%arg0: i32) -> (i32, i32) {
    %c0_i32 = arith.constant 0 : i32
    %c0_i32_0 = arith.constant 0 : i32
    return %arg0, %c0_i32 : i32, i32
  }
}

module attributes {stable_mosaic.version = 11 : i64} {
  func.func @_moe_kernel(%arg0: i32, %arg1: i32, %arg2: i32, %arg3: memref<1x8xi32, #tpu.memory_space<smem>>, %arg4: memref<1x8xi32, #tpu.memory_space<smem>>, %arg5: memref<8x32xbf16, #tpu.memory_space<vmem>>, %arg6: memref<1x32x64xbf16, #tpu.memory_space<vmem>>, %arg7: memref<1x32x64xbf16, #tpu.memory_space<vmem>>, %arg8: memref<1x64x32xbf16, #tpu.memory_space<vmem>>, %arg9: memref<1x8x1xf32, #tpu.memory_space<vmem>>, %arg10: memref<8x32xf32, #tpu.memory_space<vmem>>, %arg11: memref<8x32xf32, #tpu.memory_space<vmem>>, %arg12: memref<8x32xf32, #tpu.memory_space<vmem>>) attributes {dimension_semantics = [#tpu.dimension_semantics<parallel>, #tpu.dimension_semantics<arbitrary>, #tpu.dimension_semantics<arbitrary>], iteration_bounds = array<i64: 1, 1, 8>, scalar_prefetch = 2 : i64, scratch_operands = 1 : i64, tpu.core_type = #tpu.core_type<tc>, window_params = [{transform_indices = @transform_0, window_bounds = array<i64: 8, 32>}, {transform_indices = @transform_1, window_bounds = array<i64: 1, 32, 64>}, {transform_indices = @transform_2, window_bounds = array<i64: 1, 32, 64>}, {transform_indices = @transform_3, window_bounds = array<i64: 1, 64, 32>}, {transform_indices = @transform_4, window_bounds = array<i64: 1, 8, 1>}, {transform_indices = @transform_5, window_bounds = array<i64: 8, 32>}, {transform_indices = @transform_6, window_bounds = array<i64: 8, 32>}]} {
    %c0_i32 = arith.constant 0 : i32
    %0 = arith.cmpi eq, %arg1, %c0_i32 : i32
    %c0_i32_0 = arith.constant 0 : i32
    %1 = arith.cmpi eq, %arg2, %c0_i32_0 : i32
    %2 = arith.andi %0, %1 : i1
    %3 = arith.extui %2 : i1 to i32
    %c0_i32_1 = arith.constant 0 : i32
    %4 = arith.cmpi ne, %3, %c0_i32_1 : i32
    scf.if %4 {
      %cst = arith.constant 0.000000e+00 : f32
      %16 = vector.broadcast %cst : f32 to vector<8x32xf32>
      %c0 = arith.constant 0 : index
      %c0_6 = arith.constant 0 : index
      %17 = vector.load %arg12[%c0, %c0_6] : memref<8x32xf32, #tpu.memory_space<vmem>>, vector<8x32xf32>
      tpu.vector_store %arg12[%c0, %c0_6], %16 {strides = array<i32>} : memref<8x32xf32, #tpu.memory_space<vmem>>, vector<8x32xf32>,
    } else {
    }
    %5 = arith.index_cast %arg0 : i32 to index
    %6 = arith.index_cast %arg2 : i32 to index
    %7 = memref.load %arg4[%5, %6] : memref<1x8xi32, #tpu.memory_space<smem>>
    %c0_i32_2 = arith.constant 0 : i32
    %8 = arith.cmpi sgt, %7, %c0_i32_2 : i32
    %9 = arith.extui %8 : i1 to i32
    %c0_i32_3 = arith.constant 0 : i32
    %10 = arith.cmpi ne, %9, %c0_i32_3 : i32
    scf.if %10 {
      %c0 = arith.constant 0 : index
      %c0_6 = arith.constant 0 : index
      %16 = vector.load %arg5[%c0, %c0_6] : memref<8x32xbf16, #tpu.memory_space<vmem>>, vector<8x32xbf16>
      %c0_7 = arith.constant 0 : index
      %c0_8 = arith.constant 0 : index
      %c0_9 = arith.constant 0 : index
      %17 = vector.load %arg6[%c0_7, %c0_8, %c0_9] : memref<1x32x64xbf16, #tpu.memory_space<vmem>>, vector<1x32x64xbf16>
      %18 = vector.shape_cast %17 : vector<1x32x64xbf16> to vector<32x64xbf16>
      %cst = arith.constant dense<0.000000e+00> : vector<8x64xf32>
      %19 = tpu.matmul %16, %18, %cst {dimension_numbers = #tpu.dot_dimension_numbers<[1], [0], [0], [1], [0, 0, 1, 1], [], []>} : vector<8x32xbf16>, vector<32x64xbf16>, vector<8x64xf32> -> vector<8x64xf32>
      %c0_10 = arith.constant 0 : index
      %c0_11 = arith.constant 0 : index
      %c0_12 = arith.constant 0 : index
      %20 = vector.load %arg7[%c0_10, %c0_11, %c0_12] : memref<1x32x64xbf16, #tpu.memory_space<vmem>>, vector<1x32x64xbf16>
      %21 = vector.shape_cast %20 : vector<1x32x64xbf16> to vector<32x64xbf16>
      %cst_13 = arith.constant dense<0.000000e+00> : vector<8x64xf32>
      %22 = tpu.matmul %16, %21, %cst_13 {dimension_numbers = #tpu.dot_dimension_numbers<[1], [0], [0], [1], [0, 0, 1, 1], [], []>} : vector<8x32xbf16>, vector<32x64xbf16>, vector<8x64xf32> -> vector<8x64xf32>
      %23 = arith.negf %19 : vector<8x64xf32>
      %24 = math.exp %23 : vector<8x64xf32>
      %cst_14 = arith.constant 1.000000e+00 : f32
      %25 = vector.broadcast %cst_14 : f32 to vector<8x64xf32>
      %26 = arith.addf %25, %24 : vector<8x64xf32>
      %27 = arith.divf %25, %26 : vector<8x64xf32>
      %28 = arith.mulf %19, %27 : vector<8x64xf32>
      %29 = arith.mulf %28, %22 : vector<8x64xf32>
      %30 = arith.truncf %29 : vector<8x64xf32> to vector<8x64xbf16>
      %c0_15 = arith.constant 0 : index
      %c0_16 = arith.constant 0 : index
      %c0_17 = arith.constant 0 : index
      %31 = vector.load %arg8[%c0_15, %c0_16, %c0_17] : memref<1x64x32xbf16, #tpu.memory_space<vmem>>, vector<1x64x32xbf16>
      %32 = vector.shape_cast %31 : vector<1x64x32xbf16> to vector<64x32xbf16>
      %cst_18 = arith.constant dense<0.000000e+00> : vector<8x32xf32>
      %33 = tpu.matmul %30, %32, %cst_18 {dimension_numbers = #tpu.dot_dimension_numbers<[1], [0], [0], [1], [0, 0, 1, 1], [], []>} : vector<8x64xbf16>, vector<64x32xbf16>, vector<8x32xf32> -> vector<8x32xf32>
      %c0_19 = arith.constant 0 : index
      %c0_20 = arith.constant 0 : index
      %34 = vector.load %arg12[%c0_19, %c0_20] : memref<8x32xf32, #tpu.memory_space<vmem>>, vector<8x32xf32>
      %c0_21 = arith.constant 0 : index
      %c0_22 = arith.constant 0 : index
      %c0_23 = arith.constant 0 : index
      %35 = vector.load %arg9[%c0_21, %c0_22, %c0_23] : memref<1x8x1xf32, #tpu.memory_space<vmem>>, vector<1x8x1xf32>
      %36 = vector.shape_cast %35 : vector<1x8x1xf32> to vector<8x1xf32>
      %37 = vector.broadcast %36 : vector<8x1xf32> to vector<8x32xf32>
      %38 = arith.mulf %37, %33 : vector<8x32xf32>
      %39 = arith.addf %34, %38 : vector<8x32xf32>
      %c0_24 = arith.constant 0 : index
      %c0_25 = arith.constant 0 : index
      %40 = vector.load %arg12[%c0_24, %c0_25] : memref<8x32xf32, #tpu.memory_space<vmem>>, vector<8x32xf32>
      tpu.vector_store %arg12[%c0_24, %c0_25], %39 {strides = array<i32>} : memref<8x32xf32, #tpu.memory_space<vmem>>, vector<8x32xf32>,
    } else {
    }
    %c0_i32_4 = arith.constant 0 : i32
    %11 = arith.cmpi eq, %arg1, %c0_i32_4 : i32
    %c7_i32 = arith.constant 7 : i32
    %12 = arith.cmpi eq, %arg2, %c7_i32 : i32
    %13 = arith.andi %11, %12 : i1
    %14 = arith.extui %13 : i1 to i32
    %c0_i32_5 = arith.constant 0 : i32
    %15 = arith.cmpi ne, %14, %c0_i32_5 : i32
    scf.if %15 {
      %c0 = arith.constant 0 : index
      %c0_6 = arith.constant 0 : index
      %16 = vector.load %arg10[%c0, %c0_6] : memref<8x32xf32, #tpu.memory_space<vmem>>, vector<8x32xf32>
      %c0_7 = arith.constant 0 : index
      %c0_8 = arith.constant 0 : index
      %17 = vector.load %arg12[%c0_7, %c0_8] : memref<8x32xf32, #tpu.memory_space<vmem>>, vector<8x32xf32>
      %18 = arith.addf %16, %17 : vector<8x32xf32>
      %c0_9 = arith.constant 0 : index
      %c0_10 = arith.constant 0 : index
      %19 = vector.load %arg11[%c0_9, %c0_10] : memref<8x32xf32, #tpu.memory_space<vmem>>, vector<8x32xf32>
      tpu.vector_store %arg11[%c0_9, %c0_10], %18 {strides = array<i32>} : memref<8x32xf32, #tpu.memory_space<vmem>>, vector<8x32xf32>,
    } else {
    }
    return
  }
  func.func @transform_0(%arg0: i32, %arg1: i32, %arg2: i32, %arg3: memref<1x8xi32, #tpu.memory_space<smem>>, %arg4: memref<1x8xi32, #tpu.memory_space<smem>>) -> (i32, i32) {
    %c0_i32 = arith.constant 0 : i32
    %c0_i32_0 = arith.constant 0 : i32
    return %arg0, %c0_i32 : i32, i32
  }
  func.func @transform_1(%arg0: i32, %arg1: i32, %arg2: i32, %arg3: memref<1x8xi32, #tpu.memory_space<smem>>, %arg4: memref<1x8xi32, #tpu.memory_space<smem>>) -> (i32, i32, i32) {
    %0 = arith.index_cast %arg0 : i32 to index
    %1 = arith.index_cast %arg2 : i32 to index
    %2 = memref.load %arg3[%0, %1] : memref<1x8xi32, #tpu.memory_space<smem>>
    %c0_i32 = arith.constant 0 : i32
    %c0_i32_0 = arith.constant 0 : i32
    return %2, %c0_i32, %arg1 : i32, i32, i32
  }
  func.func @transform_2(%arg0: i32, %arg1: i32, %arg2: i32, %arg3: memref<1x8xi32, #tpu.memory_space<smem>>, %arg4: memref<1x8xi32, #tpu.memory_space<smem>>) -> (i32, i32, i32) {
    %0 = arith.index_cast %arg0 : i32 to index
    %1 = arith.index_cast %arg2 : i32 to index
    %2 = memref.load %arg3[%0, %1] : memref<1x8xi32, #tpu.memory_space<smem>>
    %c0_i32 = arith.constant 0 : i32
    %c0_i32_0 = arith.constant 0 : i32
    return %2, %c0_i32, %arg1 : i32, i32, i32
  }
  func.func @transform_3(%arg0: i32, %arg1: i32, %arg2: i32, %arg3: memref<1x8xi32, #tpu.memory_space<smem>>, %arg4: memref<1x8xi32, #tpu.memory_space<smem>>) -> (i32, i32, i32) {
    %0 = arith.index_cast %arg0 : i32 to index
    %1 = arith.index_cast %arg2 : i32 to index
    %2 = memref.load %arg3[%0, %1] : memref<1x8xi32, #tpu.memory_space<smem>>
    %c0_i32 = arith.constant 0 : i32
    %c0_i32_0 = arith.constant 0 : i32
    return %2, %arg1, %c0_i32 : i32, i32, i32
  }
  func.func @transform_4(%arg0: i32, %arg1: i32, %arg2: i32, %arg3: memref<1x8xi32, #tpu.memory_space<smem>>, %arg4: memref<1x8xi32, #tpu.memory_space<smem>>) -> (i32, i32, i32) {
    %0 = arith.index_cast %arg0 : i32 to index
    %1 = arith.index_cast %arg2 : i32 to index
    %2 = memref.load %arg3[%0, %1] : memref<1x8xi32, #tpu.memory_space<smem>>
    %c0_i32 = arith.constant 0 : i32
    %c0_i32_0 = arith.constant 0 : i32
    return %2, %arg0, %c0_i32 : i32, i32, i32
  }
  func.func @transform_5(%arg0: i32, %arg1: i32, %arg2: i32, %arg3: memref<1x8xi32, #tpu.memory_space<smem>>, %arg4: memref<1x8xi32, #tpu.memory_space<smem>>) -> (i32, i32) {
    %c0_i32 = arith.constant 0 : i32
    %c0_i32_0 = arith.constant 0 : i32
    return %arg0, %c0_i32 : i32, i32
  }
  func.func @transform_6(%arg0: i32, %arg1: i32, %arg2: i32, %arg3: memref<1x8xi32, #tpu.memory_space<smem>>, %arg4: memref<1x8xi32, #tpu.memory_space<smem>>) -> (i32, i32) {
    %c0_i32 = arith.constant 0 : i32
    %c0_i32_0 = arith.constant 0 : i32
    return %arg0, %c0_i32 : i32, i32
  }
}

</mosaic_0001>

<llo_original>
// kernel: _lambda_.7
$region0: #{_lambda_.7}
  #allocation0 [shape = 'u32[]', space=smem, size = 0x4, offset = 0x4, fixed_abs, tag = 'smem constant byte address 0x4 - core index']
  #allocation1 [shape = 'u32[144,128]{1,0:T(1,128)}', space=vmem, size = 0x12000, scoped, tag = 'internal scratch']
  #allocation2 [shape = 'f32[8,32]{1,0:T(8,128)}', space=vmem, size = 0x1000, scoped, tag = 'scratch operand']
  %s0 = inlined_call_operand.vmem [shape: bf16[4,8,8], index: 0, kind: input, shape index: {}]
  %s1 = inlined_call_operand.vmem [shape: bf16[4,8,32], index: 1, kind: input, shape index: {}]
  %s2 = inlined_call_operand.vmem [shape: f32[8,32], index: 2, kind: input, shape index: {}]
  %s3 = inlined_call_operand.vmem [shape: f32[8,32], index: 3, kind: output, shape index: {}]
  %s4 = sld [smem:[#allocation0]]
  $region53: #{_lambda_.7} parent=0
    _
  %s6 = ssub.s32 1, %s4
  %s7 = scalar_select 0, %s6, %s4
  loop: start=0, step=1, limit=6
  $region2: #{_lambda_.7} parent=0 // loop_pre_header
    _
  $region3: #{_lambda_.7} parent=0 // loop_header
    %s9 = sphi 0, %s13
    %p10 = scmp.ge.s32.totalorder %s9, 6
    %s16 = sphi 0, %s28
    %s17 = sphi 0, %s24
    %s18 = sphi 0, %s16
    %s19 = sphi 0, %s17
    %s20 = sphi 0, %s18
    %s21 = sphi 0, %s19
    %s33 = sphi 0, %s35
    %s36 = sphi 0, %s33
    %s37 = sphi 0, %s36
    %s53 = sphi 0, %s37
    %s59 = sphi 0, %s61
    %s62 = sphi 0, %s59
    %s63 = sphi 0, %s62
    %s79 = sphi 0, %s63
    %s85 = sphi 0, %s87
    %s88 = sphi 0, %s85
    %s89 = sphi 0, %s88
    %s105 = sphi 0, %s89
    %s111 = sphi 0, %s113
    %s114 = sphi 0, %s111
    %s115 = sphi 0, %s114
    %s131 = sphi 0, %s115
  $region4: #{_lambda_.7} parent=0 // loop_header_branch
    %12 = sbr.rel (%p10) target = $region8
  $region5: #{_lambda_.7} parent=0 // loop_body
    %s14 = ssub.s32 %s9, 1
    %s15 = ssub.s32 %s9, 2
    %s22 = sadd.s32 1, %s17
    %p23 = scmp.ge.s32.totalorder %s22, 4
    %s24 = scalar_select %p23, 0, %s22
    %s25 = sadd.s32 1, %s16
    %s26 = scalar_select %p23, %s25, %s16
    %p27 = scmp.ge.s32.totalorder %s26, 1
    %s28 = scalar_select %p27, 0, %s26
    %s29 = ssub.s32 %s17, %s24
    %s30 = ssub.s32 %s16, %s28
    %s31 = sor.u32 %s29, %s30
    %p32 = scmp.eq.s32.totalorder %s31, 0
    %s34 = sadd.s32 %s33, 1
    %s35 = scalar_select %p32, %s33, %s34
    %p38 = pneg %p32
    %p39 = scmp.eq.s32.totalorder %s9, 3
    %p40 = por %p38, %p39
    %p41 = scmp.ne.s32.totalorder %s33, %s36
    %p42 = scmp.eq.s32.totalorder %s9, 0
    %p43 = por %p41, %p42
    %p44 = scmp.ne.s32.totalorder %s33, %s36
    %p45 = scmp.eq.s32.totalorder %s14, 3
    %p46 = por %p44, %p45
    %p47 = scmp.ne.s32.totalorder %s36, %s37
    %p48 = scmp.eq.s32.totalorder %s14, 0
    %p49 = por %p47, %p48
    %p50 = scmp.ne.s32.totalorder %s36, %s37
    %p51 = scmp.eq.s32.totalorder %s15, 3
    %p52 = por %p50, %p51
    %p54 = scmp.ne.s32.totalorder %s37, %s53
    %p55 = scmp.eq.s32.totalorder %s15, 0
    %p56 = por %p54, %p55
    %s57 = ssub.s32 %s17, %s24
    %p58 = scmp.eq.s32.totalorder %s57, 0
    %s60 = sadd.s32 %s59, 1
    %s61 = scalar_select %p58, %s59, %s60
    %p64 = pneg %p58
    %p65 = scmp.eq.s32.totalorder %s9, 3
    %p66 = por %p64, %p65
    %p67 = scmp.ne.s32.totalorder %s59, %s62
    %p68 = scmp.eq.s32.totalorder %s9, 0
    %p69 = por %p67, %p68
    %p70 = scmp.ne.s32.totalorder %s59, %s62
    %p71 = scmp.eq.s32.totalorder %s14, 3
    %p72 = por %p70, %p71
    %p73 = scmp.ne.s32.totalorder %s62, %s63
    %p74 = scmp.eq.s32.totalorder %s14, 0
    %p75 = por %p73, %p74
    %p76 = scmp.ne.s32.totalorder %s62, %s63
    %p77 = scmp.eq.s32.totalorder %s15, 3
    %p78 = por %p76, %p77
    %p80 = scmp.ne.s32.totalorder %s63, %s79
    %p81 = scmp.eq.s32.totalorder %s15, 0
    %p82 = por %p80, %p81
    %s83 = ssub.s32 %s16, %s28
    %p84 = scmp.eq.s32.totalorder %s83, 0
    %s86 = sadd.s32 %s85, 1
    %s87 = scalar_select %p84, %s85, %s86
    %p90 = pneg %p84
    %p91 = scmp.eq.s32.totalorder %s9, 3
    %p92 = por %p90, %p91
    %p93 = scmp.ne.s32.totalorder %s85, %s88
    %p94 = scmp.eq.s32.totalorder %s9, 0
    %p95 = por %p93, %p94
    %p96 = scmp.ne.s32.totalorder %s85, %s88
    %p97 = scmp.eq.s32.totalorder %s14, 3
    %p98 = por %p96, %p97
    %p99 = scmp.ne.s32.totalorder %s88, %s89
    %p100 = scmp.eq.s32.totalorder %s14, 0
    %p101 = por %p99, %p100
    %p102 = scmp.ne.s32.totalorder %s88, %s89
    %p103 = scmp.eq.s32.totalorder %s15, 3
    %p104 = por %p102, %p103
    %p106 = scmp.ne.s32.totalorder %s89, %s105
    %p107 = scmp.eq.s32.totalorder %s15, 0
    %p108 = por %p106, %p107
    %s109 = ssub.s32 %s16, %s28
    %p110 = scmp.eq.s32.totalorder %s109, 0
    %s112 = sadd.s32 %s111, 1
    %s113 = scalar_select %p110, %s111, %s112
    %p116 = pneg %p110
    %p117 = scmp.eq.s32.totalorder %s9, 3
    %p118 = por %p116, %p117
    %p119 = scmp.ne.s32.totalorder %s111, %s114
    %p120 = scmp.eq.s32.totalorder %s9, 0
    %p121 = por %p119, %p120
    %p122 = scmp.ne.s32.totalorder %s111, %s114
    %p123 = scmp.eq.s32.totalorder %s14, 3
    %p124 = por %p122, %p123
    %p125 = scmp.ne.s32.totalorder %s114, %s115
    %p126 = scmp.eq.s32.totalorder %s14, 0
    %p127 = por %p125, %p126
    %p128 = scmp.ne.s32.totalorder %s114, %s115
    %p129 = scmp.eq.s32.totalorder %s15, 3
    %p130 = por %p128, %p129
    %p132 = scmp.ne.s32.totalorder %s115, %s131
    %p133 = scmp.eq.s32.totalorder %s15, 0
    %p134 = por %p132, %p133
    %p135 = scmp.le.s32.totalorder 1, %s9
    %p136 = scmp.lt.s32.totalorder %s9, 5
    %p137 = pnand %p135, %p136
    %p138 = pneg %p137
    // Predicated region
    $region9: #{_lambda_.7} parent=5 // pred_check
      _
    $region10: #{_lambda_.7} parent=5 // pred_check_branch
      %140 = sbr.rel (%p137) target = $region12
    $region11: #{_lambda_.7} parent=5 // pred_region
      %s141 = ssub.s32 %s9, 1
      // Predicated region
      $region13: #{_lambda_.7} parent=11 // pred_check
        %p142 = pneg %p101
      $region14: #{_lambda_.7} parent=11 // pred_check_branch
        %144 = sbr.rel (%p142) target = $region16
      $region15: #{_lambda_.7} parent=11 // pred_region
        %p145 = scmp.lt.s32.totalorder %s18, 0
        %s146 = scalar_select %p145, %s18, 0
        %s147 = smul.addr %s146, 8
        %s148 = scalar_lea.vmem %s2, %s147
      $region16: #{_lambda_.7} parent=11 // pred_fallthru
        _
    $region12: #{_lambda_.7} parent=5 // pred_fallthru
      _
    %p149 = scmp.lt.s32.totalorder %s9, 4
    // Predicated region
    $region17: #{_lambda_.7} parent=5 // pred_check
      %p150 = pneg %p149
    $region18: #{_lambda_.7} parent=5 // pred_check_branch
      %152 = sbr.rel (%p150) target = $region20
    $region19: #{_lambda_.7} parent=5 // pred_region
      // Predicated region
      $region21: #{_lambda_.7} parent=19 // pred_check
        %p153 = pneg %p43
      $region22: #{_lambda_.7} parent=19 // pred_check_branch
        %155 = sbr.rel (%p153) target = $region24
      $region23: #{_lambda_.7} parent=19 // pred_region
        %p156 = scmp.lt.s32.totalorder %s17, 3
        %s157 = scalar_select %p156, %s17, 3
        %p158 = scmp.lt.s32.totalorder %s16, 0
        %s159 = scalar_select %p158, %s16, 0
        %s160 = sadd.s32 %s159, %s157
        %s161 = smul.addr %s160, 4
        %s162 = scalar_lea.vmem %s0, %s161
      $region24: #{_lambda_.7} parent=19 // pred_fallthru
        _
      // Predicated region
      $region25: #{_lambda_.7} parent=19 // pred_check
        %p163 = pneg %p69
      $region26: #{_lambda_.7} parent=19 // pred_check_branch
        %165 = sbr.rel (%p163) target = $region28
      $region27: #{_lambda_.7} parent=19 // pred_region
        %p166 = scmp.lt.s32.totalorder %s17, 3
        %s167 = scalar_select %p166, %s17, 3
        %s168 = smul.addr %s167, 4
        %s169 = scalar_lea.vmem %s1, %s168
      $region28: #{_lambda_.7} parent=19 // pred_fallthru
        _
    $region20: #{_lambda_.7} parent=5 // pred_fallthru
      _
    %p170 = scmp.le.s32.totalorder 1, %s9
    %p171 = scmp.lt.s32.totalorder %s9, 5
    %p172 = pnand %p170, %p171
    %p173 = pneg %p172
    // Predicated region
    $region29: #{_lambda_.7} parent=5 // pred_check
      _
    $region30: #{_lambda_.7} parent=5 // pred_check_branch
      %175 = sbr.rel (%p172) target = $region32
    $region31: #{_lambda_.7} parent=5 // pred_region
      %s176 = ssub.s32 %s9, 1
      %p177 = scmp.lt.s32.totalorder %s19, 3
      %s178 = scalar_select %p177, %s19, 3
      %p179 = scmp.lt.s32.totalorder %s18, 0
      %s180 = scalar_select %p179, %s18, 0
      %s181 = sadd.s32 %s180, %s178
      %s182 = smul.addr %s181, 4
      %s183 = scalar_lea.vmem %s0, %s182
      %p184 = pneg %p49
      %p185 = pneg %p46
      %p186 = scmp.lt.s32.totalorder %s19, 3
      %s187 = scalar_select %p186, %s19, 3
      %s188 = smul.addr %s187, 4
      %s189 = scalar_lea.vmem %s1, %s188
      %p190 = pneg %p75
      %p191 = pneg %p72
      %p192 = scmp.lt.s32.totalorder %s18, 0
      %s193 = scalar_select %p192, %s18, 0
      %s194 = smul.addr %s193, 8
      %s195 = scalar_lea.vmem %s2, %s194
      %p196 = pneg %p101
      %p197 = pneg %p98
      %p198 = pneg %p127
      %p199 = pneg %p124
      %p200 = scmp.lt.s32.totalorder %s18, 0
      %s201 = scalar_select %p200, %s18, 0
      %s202 = smul.addr %s201, 8
      %s203 = scalar_lea.vmem %s3, %s202
      %p204 = scmp.lt.s32.totalorder %s19, 3
      %s205 = scalar_select %p204, %s19, 3
      %p206 = scmp.lt.s32.totalorder %s18, 0
      %s207 = scalar_select %p206, %s18, 0
      %s208 = sadd.s32 %s207, %s205
      %s209 = smul.addr %s208, 4
      %s210 = scalar_lea.vmem %s0, %s209
      %p211 = scmp.lt.s32.totalorder %s19, 3
      %s212 = scalar_select %p211, %s19, 3
      %s213 = smul.addr %s212, 4
      %s214 = scalar_lea.vmem %s1, %s213
      %p215 = scmp.lt.s32.totalorder %s18, 0
      %s216 = scalar_select %p215, %s18, 0
      %s217 = smul.addr %s216, 8
      %s218 = scalar_lea.vmem %s2, %s217
      %p219 = scmp.lt.s32.totalorder %s18, 0
      %s220 = scalar_select %p219, %s18, 0
      %s221 = smul.addr %s220, 8
      %s222 = scalar_lea.vmem %s3, %s221
      %p224 = scmp.eq.s32.totalorder %s19, 0
      // Predicated region
      $region33: #{_lambda_.7} parent=31 // pred_check
        %p225 = pneg %p224
      $region34: #{_lambda_.7} parent=31 // pred_check_branch
        %227 = sbr.rel (%p225) target = $region36
      $region35: #{_lambda_.7} parent=31 // pred_region
        %vm228 = vcmask 261120
        %229 = vst.msk [vmem:[#allocation2] sm:$0xff] %vm228, 0.0
      $region36: #{_lambda_.7} parent=31 // pred_fallthru
        _
      %v230 = vld [vmem:[#allocation2] sm:$0xff]
      %v231 = vld [vmem:[%s210] sm:$0xf]
      %v232 = vld [vmem:[%s214] sm:$0xf]
      %vm233 = vcmask 64512
      %v235 = vsel %vm233, %v231, 0
      %vm237 = vcmask 1043456
      %v239 = vsel %vm237, %v232, 0
      %241 = vmatprep.subr.bf16.mxu0 0
      %242 = vmatpush1.bf16.msra.mxu0 %v239
      %243 = vmatprep.subr.bf16.mxu0 0
      %244 = vmatpush1.bf16.msra.mxu0 0
      %245 = vmatprep.subr.bf16.mxu0 0
      %246 = vmatpush1.bf16.msra.mxu0 0
      %247 = vmatprep.subr.bf16.mxu0 0
      %248 = vmatpush1.bf16.msra.mxu0 0
      %249 = vmatprep.subr.bf16.mxu0 0
      %250 = vmatpush1.bf16.msra.mxu0 0
      %251 = vmatprep.subr.bf16.mxu0 0
      %252 = vmatpush1.bf16.msra.mxu0 0
      %253 = vmatprep.subr.bf16.mxu0 0
      %254 = vmatpush1.bf16.msra.mxu0 0
      %255 = vmatprep.subr.bf16.mxu0 0
      %256 = vmatpush1.bf16.msra.mxu0 0
      %257 = vmatprep.subr.bf16.mxu0 0
      %258 = vmatpush1.bf16.msra.mxu0 0
      %259 = vmatprep.subr.bf16.mxu0 0
      %260 = vmatpush1.bf16.msra.mxu0 0
      %261 = vmatprep.subr.bf16.mxu0 0
      %262 = vmatpush1.bf16.msra.mxu0 0
      %263 = vmatprep.subr.bf16.mxu0 0
      %264 = vmatpush1.bf16.msra.mxu0 0
      %265 = vmatprep.subr.bf16.mxu0 0
      %266 = vmatpush1.bf16.msra.mxu0 0
      %267 = vmatprep.subr.bf16.mxu0 0
      %268 = vmatpush1.bf16.msra.mxu0 0
      %269 = vmatprep.subr.bf16.mxu0 0
      %270 = vmatpush1.bf16.msra.mxu0 0
      %271 = vmatprep.subr.bf16.mxu0 0
      %272 = vmatpush1.bf16.msra.mxu0 0
      %273 = vmatprep.mubr.bf16.mxu0 0
      %274 = vmatmul.mubr.bf16.gmra.mrb[0].mxu0 %v235
      %v275 = vpop.f32.mrb[0].mxu0
      %v276 = vadd.f32 0.0, %v275
      %v277 = vpop.f32.mrb[0].mxu0
      %v278 = vpop.f32.mrb[0].mxu0
      %v279 = vpop.f32.mrb[0].mxu0
      %280 = vdwg.mxu0
      %v281 = vadd.f32 %v230, %v276
      %vm282 = vcmask 261120
      %283 = vst.msk [vmem:[#allocation2] sm:$0xff] %vm282, %v281
      %p284 = scmp.eq.s32.totalorder %s19, 3
      // Predicated region
      $region37: #{_lambda_.7} parent=31 // pred_check
        %p285 = pneg %p284
      $region38: #{_lambda_.7} parent=31 // pred_check_branch
        %287 = sbr.rel (%p285) target = $region40
      $region39: #{_lambda_.7} parent=31 // pred_region
        %v288 = vld [vmem:[%s218] sm:$0xff]
        %v289 = vld [vmem:[#allocation2] sm:$0xff]
        %v290 = vadd.f32 %v288, %v289
        %291 = vst.msk [vmem:[%s222] sm:$0xff] %vm282, %v290
      $region40: #{_lambda_.7} parent=31 // pred_fallthru
        _
      %p292 = scmp.lt.s32.totalorder %s18, 0
      %s293 = scalar_select %p292, %s18, 0
      %s294 = smul.addr %s293, 8
      %s295 = scalar_lea.vmem %s3, %s294
      // Predicated region
      $region41: #{_lambda_.7} parent=31 // pred_check
        %p296 = pneg %p124
      $region42: #{_lambda_.7} parent=31 // pred_check_branch
        %298 = sbr.rel (%p296) target = $region44
      $region43: #{_lambda_.7} parent=31 // pred_region
        _
      $region44: #{_lambda_.7} parent=31 // pred_fallthru
        _
      // Predicated region
      $region45: #{_lambda_.7} parent=31 // pred_check
        %p299 = pneg %p124
      $region46: #{_lambda_.7} parent=31 // pred_check_branch
        %301 = sbr.rel (%p299) target = $region48
      $region47: #{_lambda_.7} parent=31 // pred_region
        %p302 = scmp.lt.s32.totalorder %s18, 0
        %s303 = scalar_select %p302, %s18, 0
        %s304 = smul.addr %s303, 8
        %s305 = scalar_lea.vmem %s3, %s304
      $region48: #{_lambda_.7} parent=31 // pred_fallthru
        _
    $region32: #{_lambda_.7} parent=5 // pred_fallthru
      _
    %p306 = scmp.le.s32.totalorder 2, %s9
    // Predicated region
    $region49: #{_lambda_.7} parent=5 // pred_check
      %p307 = pneg %p306
    $region50: #{_lambda_.7} parent=5 // pred_check_branch
      %309 = sbr.rel (%p307) target = $region52
    $region51: #{_lambda_.7} parent=5 // pred_region
      %s310 = ssub.s32 %s9, 2
    $region52: #{_lambda_.7} parent=5 // pred_fallthru
      _
  $region6: #{_lambda_.7} parent=0 // loop_footer
    %s13 = sadd.s32 1, %s9
  $region7: #{_lambda_.7} parent=0 // loop_footer_branch
    %8 = sbr.rel target = $region3
  $region8: #{_lambda_.7} parent=0 // loop_exit
    _

// kernel: _lambda_.6
$region0: #{_lambda_.6}
  #allocation0 [shape = 'u32[]', space=smem, size = 0x4, offset = 0x4, fixed_abs, tag = 'smem constant byte address 0x4 - core index']
  #allocation1 [shape = 'u32[144,128]{1,0:T(1,128)}', space=vmem, size = 0x12000, scoped, tag = 'internal scratch']
  #allocation2 [shape = 'f32[16,1]{1,0:T(8,128)}', space=vmem, size = 0x2000, scoped, tag = 'scratch operand']
  #allocation3 [shape = 'f32[16,1]{1,0:T(8,128)}', space=vmem, size = 0x2000, scoped, tag = 'scratch operand']
  #allocation4 [shape = 'f32[16,8]{1,0:T(8,128)}', space=vmem, size = 0x2000, scoped, tag = 'scratch operand']
  %s0 = inlined_call_operand.vmem [shape: bf16[8,8,8], index: 0, kind: input, shape index: {}, may-alias: {0,1,2}]
  %s1 = inlined_call_operand.vmem [shape: bf16[8,8,8], index: 1, kind: input, shape index: {}, may-alias: {0,1,2}]
  %s2 = inlined_call_operand.vmem [shape: bf16[8,8,8], index: 2, kind: input, shape index: {}, may-alias: {0,1,2}]
  %s3 = inlined_call_operand.vmem [shape: bf16[4,8,8], index: 3, kind: output, shape index: {}]
  %s4 = sld [smem:[#allocation0]]
  $region53: #{_lambda_.6} parent=0
    _
  %s6 = ssub.s32 1, %s4
  %s7 = scalar_select 0, %s6, %s4
  loop: start=0, step=1, limit=4
  $region2: #{_lambda_.6} parent=0 // loop_pre_header
    _
  $region3: #{_lambda_.6} parent=0 // loop_header
    %s9 = sphi 0, %s13
    %p10 = scmp.ge.s32.totalorder %s9, 4
    %s16 = sphi 0, %s35
    %s17 = sphi 0, %s31
    %s18 = sphi 0, %s27
    %s19 = sphi 0, %s16
    %s20 = sphi 0, %s17
    %s21 = sphi 0, %s18
    %s22 = sphi 0, %s19
    %s23 = sphi 0, %s20
    %s24 = sphi 0, %s21
    %s40 = sphi 0, %s42
    %s43 = sphi 0, %s40
    %s44 = sphi 0, %s43
    %s60 = sphi 0, %s44
    %s70 = sphi 0, %s72
    %s73 = sphi 0, %s70
    %s74 = sphi 0, %s73
    %s90 = sphi 0, %s74
    %s100 = sphi 0, %s102
    %s103 = sphi 0, %s100
    %s104 = sphi 0, %s103
    %s120 = sphi 0, %s104
    %s128 = sphi 0, %s130
    %s131 = sphi 0, %s128
    %s132 = sphi 0, %s131
    %s148 = sphi 0, %s132
  $region4: #{_lambda_.6} parent=0 // loop_header_branch
    %12 = sbr.rel (%p10) target = $region8
  $region5: #{_lambda_.6} parent=0 // loop_body
    %s14 = ssub.s32 %s9, 1
    %s15 = ssub.s32 %s9, 2
    %s25 = sadd.s32 1, %s18
    %p26 = scmp.ge.s32.totalorder %s25, 1
    %s27 = scalar_select %p26, 0, %s25
    %s28 = sadd.s32 1, %s17
    %s29 = scalar_select %p26, %s28, %s17
    %p30 = scmp.ge.s32.totalorder %s29, 1
    %s31 = scalar_select %p30, 0, %s29
    %s32 = sadd.s32 1, %s16
    %s33 = scalar_select %p30, %s32, %s16
    %p34 = scmp.ge.s32.totalorder %s33, 2
    %s35 = scalar_select %p34, 0, %s33
    %s36 = ssub.s32 %s16, %s35
    %s37 = ssub.s32 %s17, %s31
    %s38 = sor.u32 %s36, %s37
    %p39 = scmp.eq.s32.totalorder %s38, 0
    %s41 = sadd.s32 %s40, 1
    %s42 = scalar_select %p39, %s40, %s41
    %p45 = pneg %p39
    %p46 = scmp.eq.s32.totalorder %s9, 1
    %p47 = por %p45, %p46
    %p48 = scmp.ne.s32.totalorder %s40, %s43
    %p49 = scmp.eq.s32.totalorder %s9, 0
    %p50 = por %p48, %p49
    %p51 = scmp.ne.s32.totalorder %s40, %s43
    %p52 = scmp.eq.s32.totalorder %s14, 1
    %p53 = por %p51, %p52
    %p54 = scmp.ne.s32.totalorder %s43, %s44
    %p55 = scmp.eq.s32.totalorder %s14, 0
    %p56 = por %p54, %p55
    %p57 = scmp.ne.s32.totalorder %s43, %s44
    %p58 = scmp.eq.s32.totalorder %s15, 1
    %p59 = por %p57, %p58
    %p61 = scmp.ne.s32.totalorder %s44, %s60
    %p62 = scmp.eq.s32.totalorder %s15, 0
    %p63 = por %p61, %p62
    %s64 = sadd.s32 %s16, 4
    %s65 = sadd.s32 %s35, 4
    %s66 = ssub.s32 %s64, %s65
    %s67 = ssub.s32 %s18, %s27
    %s68 = sor.u32 %s66, %s67
    %p69 = scmp.eq.s32.totalorder %s68, 0
    %s71 = sadd.s32 %s70, 1
    %s72 = scalar_select %p69, %s70, %s71
    %p75 = pneg %p69
    %p76 = scmp.eq.s32.totalorder %s9, 1
    %p77 = por %p75, %p76
    %p78 = scmp.ne.s32.totalorder %s70, %s73
    %p79 = scmp.eq.s32.totalorder %s9, 0
    %p80 = por %p78, %p79
    %p81 = scmp.ne.s32.totalorder %s70, %s73
    %p82 = scmp.eq.s32.totalorder %s14, 1
    %p83 = por %p81, %p82
    %p84 = scmp.ne.s32.totalorder %s73, %s74
    %p85 = scmp.eq.s32.totalorder %s14, 0
    %p86 = por %p84, %p85
    %p87 = scmp.ne.s32.totalorder %s73, %s74
    %p88 = scmp.eq.s32.totalorder %s15, 1
    %p89 = por %p87, %p88
    %p91 = scmp.ne.s32.totalorder %s74, %s90
    %p92 = scmp.eq.s32.totalorder %s15, 0
    %p93 = por %p91, %p92
    %s94 = sadd.s32 %s16, 6
    %s95 = sadd.s32 %s35, 6
    %s96 = ssub.s32 %s94, %s95
    %s97 = ssub.s32 %s18, %s27
    %s98 = sor.u32 %s96, %s97
    %p99 = scmp.eq.s32.totalorder %s98, 0
    %s101 = sadd.s32 %s100, 1
    %s102 = scalar_select %p99, %s100, %s101
    %p105 = pneg %p99
    %p106 = scmp.eq.s32.totalorder %s9, 1
    %p107 = por %p105, %p106
    %p108 = scmp.ne.s32.totalorder %s100, %s103
    %p109 = scmp.eq.s32.totalorder %s9, 0
    %p110 = por %p108, %p109
    %p111 = scmp.ne.s32.totalorder %s100, %s103
    %p112 = scmp.eq.s32.totalorder %s14, 1
    %p113 = por %p111, %p112
    %p114 = scmp.ne.s32.totalorder %s103, %s104
    %p115 = scmp.eq.s32.totalorder %s14, 0
    %p116 = por %p114, %p115
    %p117 = scmp.ne.s32.totalorder %s103, %s104
    %p118 = scmp.eq.s32.totalorder %s15, 1
    %p119 = por %p117, %p118
    %p121 = scmp.ne.s32.totalorder %s104, %s120
    %p122 = scmp.eq.s32.totalorder %s15, 0
    %p123 = por %p121, %p122
    %s124 = ssub.s32 %s16, %s35
    %s125 = ssub.s32 %s17, %s31
    %s126 = sor.u32 %s124, %s125
    %p127 = scmp.eq.s32.totalorder %s126, 0
    %s129 = sadd.s32 %s128, 1
    %s130 = scalar_select %p127, %s128, %s129
    %p133 = pneg %p127
    %p134 = scmp.eq.s32.totalorder %s9, 1
    %p135 = por %p133, %p134
    %p136 = scmp.ne.s32.totalorder %s128, %s131
    %p137 = scmp.eq.s32.totalorder %s9, 0
    %p138 = por %p136, %p137
    %p139 = scmp.ne.s32.totalorder %s128, %s131
    %p140 = scmp.eq.s32.totalorder %s14, 1
    %p141 = por %p139, %p140
    %p142 = scmp.ne.s32.totalorder %s131, %s132
    %p143 = scmp.eq.s32.totalorder %s14, 0
    %p144 = por %p142, %p143
    %p145 = scmp.ne.s32.totalorder %s131, %s132
    %p146 = scmp.eq.s32.totalorder %s15, 1
    %p147 = por %p145, %p146
    %p149 = scmp.ne.s32.totalorder %s132, %s148
    %p150 = scmp.eq.s32.totalorder %s15, 0
    %p151 = por %p149, %p150
    %p152 = scmp.le.s32.totalorder 1, %s9
    %p153 = scmp.lt.s32.totalorder %s9, 3
    %p154 = pnand %p152, %p153
    %p155 = pneg %p154
    // Predicated region
    $region9: #{_lambda_.6} parent=5 // pred_check
      _
    $region10: #{_lambda_.6} parent=5 // pred_check_branch
      %157 = sbr.rel (%p154) target = $region12
    $region11: #{_lambda_.6} parent=5 // pred_region
      %s158 = ssub.s32 %s9, 1
    $region12: #{_lambda_.6} parent=5 // pred_fallthru
      _
    %p159 = scmp.lt.s32.totalorder %s9, 2
    // Predicated region
    $region13: #{_lambda_.6} parent=5 // pred_check
      %p160 = pneg %p159
    $region14: #{_lambda_.6} parent=5 // pred_check_branch
      %162 = sbr.rel (%p160) target = $region16
    $region15: #{_lambda_.6} parent=5 // pred_region
      // Predicated region
      $region17: #{_lambda_.6} parent=15 // pred_check
        %p163 = pneg %p50
      $region18: #{_lambda_.6} parent=15 // pred_check_branch
        %165 = sbr.rel (%p163) target = $region20
      $region19: #{_lambda_.6} parent=15 // pred_region
        %s166 = smul.u32 2, %s16
        %p167 = scmp.lt.s32.totalorder %s166, 7
        %s168 = scalar_select %p167, %s166, 7
        %p169 = scmp.lt.s32.totalorder %s17, 0
        %s170 = scalar_select %p169, %s17, 0
        %s171 = sadd.s32 %s170, %s168
        %s172 = smul.addr %s171, 4
        %s173 = scalar_lea.vmem %s0, %s172
        %s174 = smul.u32 2, %s16
      $region20: #{_lambda_.6} parent=15 // pred_fallthru
        _
      // Predicated region
      $region21: #{_lambda_.6} parent=15 // pred_check
        %p175 = pneg %p80
      $region22: #{_lambda_.6} parent=15 // pred_check_branch
        %177 = sbr.rel (%p175) target = $region24
      $region23: #{_lambda_.6} parent=15 // pred_region
        %s178 = sadd.s32 %s16, 4
        %p179 = scmp.lt.s32.totalorder %s178, 7
        %s180 = scalar_select %p179, %s178, 7
        %p181 = scmp.lt.s32.totalorder %s18, 0
        %s182 = scalar_select %p181, %s18, 0
        %s183 = sadd.s32 %s182, %s180
        %s184 = smul.addr %s183, 4
        %s185 = scalar_lea.vmem %s1, %s184
        %s186 = sadd.s32 %s16, 4
      $region24: #{_lambda_.6} parent=15 // pred_fallthru
        _
      // Predicated region
      $region25: #{_lambda_.6} parent=15 // pred_check
        %p187 = pneg %p110
      $region26: #{_lambda_.6} parent=15 // pred_check_branch
        %189 = sbr.rel (%p187) target = $region28
      $region27: #{_lambda_.6} parent=15 // pred_region
        %s190 = sadd.s32 %s16, 6
        %p191 = scmp.lt.s32.totalorder %s190, 7
        %s192 = scalar_select %p191, %s190, 7
        %p193 = scmp.lt.s32.totalorder %s18, 0
        %s194 = scalar_select %p193, %s18, 0
        %s195 = sadd.s32 %s194, %s192
        %s196 = smul.addr %s195, 4
        %s197 = scalar_lea.vmem %s2, %s196
        %s198 = sadd.s32 %s16, 6
      $region28: #{_lambda_.6} parent=15 // pred_fallthru
        _
    $region16: #{_lambda_.6} parent=5 // pred_fallthru
      _
    %p199 = scmp.le.s32.totalorder 1, %s9
    %p200 = scmp.lt.s32.totalorder %s9, 3
    %p201 = pnand %p199, %p200
    %p202 = pneg %p201
    // Predicated region
    $region29: #{_lambda_.6} parent=5 // pred_check
      _
    $region30: #{_lambda_.6} parent=5 // pred_check_branch
      %204 = sbr.rel (%p201) target = $region32
    $region31: #{_lambda_.6} parent=5 // pred_region
      %s205 = ssub.s32 %s9, 1
      %s206 = smul.u32 2, %s19
      %p207 = scmp.lt.s32.totalorder %s206, 7
      %s208 = scalar_select %p207, %s206, 7
      %p209 = scmp.lt.s32.totalorder %s20, 0
      %s210 = scalar_select %p209, %s20, 0
      %s211 = sadd.s32 %s210, %s208
      %s212 = smul.addr %s211, 4
      %s213 = scalar_lea.vmem %s0, %s212
      %p214 = pneg %p56
      %p215 = pneg %p53
      %s216 = sadd.s32 %s19, 4
      %p217 = scmp.lt.s32.totalorder %s216, 7
      %s218 = scalar_select %p217, %s216, 7
      %p219 = scmp.lt.s32.totalorder %s21, 0
      %s220 = scalar_select %p219, %s21, 0
      %s221 = sadd.s32 %s220, %s218
      %s222 = smul.addr %s221, 4
      %s223 = scalar_lea.vmem %s1, %s222
      %p224 = pneg %p86
      %p225 = pneg %p83
      %s226 = sadd.s32 %s19, 6
      %p227 = scmp.lt.s32.totalorder %s226, 7
      %s228 = scalar_select %p227, %s226, 7
      %p229 = scmp.lt.s32.totalorder %s21, 0
      %s230 = scalar_select %p229, %s21, 0
      %s231 = sadd.s32 %s230, %s228
      %s232 = smul.addr %s231, 4
      %s233 = scalar_lea.vmem %s2, %s232
      %p234 = pneg %p116
      %p235 = pneg %p113
      %p236 = pneg %p144
      %p237 = pneg %p141
      %s238 = smul.u32 2, %s19
      %p239 = scmp.lt.s32.totalorder %s238, 3
      %s240 = scalar_select %p239, %s238, 3
      %p241 = scmp.lt.s32.totalorder %s20, 0
      %s242 = scalar_select %p241, %s20, 0
      %s243 = sadd.s32 %s242, %s240
      %s244 = smul.addr %s243, 4
      %s245 = scalar_lea.vmem %s3, %s244
      %s246 = smul.u32 2, %s19
      %p247 = scmp.lt.s32.totalorder %s246, 7
      %s248 = scalar_select %p247, %s246, 7
      %p249 = scmp.lt.s32.totalorder %s20, 0
      %s250 = scalar_select %p249, %s20, 0
      %s251 = sadd.s32 %s250, %s248
      %s252 = smul.addr %s251, 4
      %s253 = scalar_lea.vmem %s0, %s252
      %s254 = smul.u32 2, %s19
      %s255 = sadd.s32 %s19, 4
      %p256 = scmp.lt.s32.totalorder %s255, 7
      %s257 = scalar_select %p256, %s255, 7
      %p258 = scmp.lt.s32.totalorder %s21, 0
      %s259 = scalar_select %p258, %s21, 0
      %s260 = sadd.s32 %s259, %s257
      %s261 = smul.addr %s260, 4
      %s262 = scalar_lea.vmem %s1, %s261
      %s263 = sadd.s32 %s19, 4
      %s264 = sadd.s32 %s19, 6
      %p265 = scmp.lt.s32.totalorder %s264, 7
      %s266 = scalar_select %p265, %s264, 7
      %p267 = scmp.lt.s32.totalorder %s21, 0
      %s268 = scalar_select %p267, %s21, 0
      %s269 = sadd.s32 %s268, %s266
      %s270 = smul.addr %s269, 4
      %s271 = scalar_lea.vmem %s2, %s270
      %s272 = sadd.s32 %s19, 6
      %s273 = smul.u32 2, %s19
      %p274 = scmp.lt.s32.totalorder %s273, 3
      %s275 = scalar_select %p274, %s273, 3
      %p276 = scmp.lt.s32.totalorder %s20, 0
      %s277 = scalar_select %p276, %s20, 0
      %s278 = sadd.s32 %s277, %s275
      %s279 = smul.addr %s278, 4
      %s280 = scalar_lea.vmem %s3, %s279
      %s281 = smul.u32 2, %s19
      %p283 = scmp.eq.s32.totalorder %s21, 0
      // Predicated region
      $region33: #{_lambda_.6} parent=31 // pred_check
        %p284 = pneg %p283
      $region34: #{_lambda_.6} parent=31 // pred_check_branch
        %286 = sbr.rel (%p284) target = $region36
      $region35: #{_lambda_.6} parent=31 // pred_region
        %vm287 = vcmask 7168
        %288 = vst.msk [vmem:[#allocation2] sm:$0xff] %vm287, -inf
        %289 = vst.msk [vmem:[#allocation2 + $0x8] sm:$0xff] %vm287, -inf
        %290 = vst.msk [vmem:[#allocation3] sm:$0xff] %vm287, 0.0
        %291 = vst.msk [vmem:[#allocation3 + $0x8] sm:$0xff] %vm287, 0.0
        %vm292 = vcmask 64512
        %293 = vst.msk [vmem:[#allocation4] sm:$0xff] %vm292, 0.0
        %294 = vst.msk [vmem:[#allocation4 + $0x8] sm:$0xff] %vm292, 0.0
      $region36: #{_lambda_.6} parent=31 // pred_fallthru
        _
      %v295 = vld [vmem:[%s253] sm:$0xf]
      %v296 = vld [vmem:[%s253 + $0x4] sm:$0xf]
      %v297 = vld [vmem:[%s262] sm:$0xf]
      %v300 = vunpack.c.l.b16 %v295
      %v301 = vunpack.c.l.b16 %v296
      %v302 = vpack.c.b16 %v301, %v300
      %vm303 = vcmask 64512
      %v305 = vsel %vm303, %v302, 0
      %v308 = vsel %vm303, %v297, 0
      %310 = vmatprep.subr.bf16.mxu0 0
      %311 = vmatpush1.bf16.xpose.msra.mxu0 %v308
      %312 = vmatprep.subr.bf16.mxu0 0
      %313 = vmatpush1.bf16.xpose.msra.mxu0 0
      %314 = vmatprep.subr.bf16.mxu0 0
      %315 = vmatpush1.bf16.xpose.msra.mxu0 0
      %316 = vmatprep.subr.bf16.mxu0 0
      %317 = vmatpush1.bf16.xpose.msra.mxu0 0
      %318 = vmatprep.subr.bf16.mxu0 0
      %319 = vmatpush1.bf16.xpose.msra.mxu0 0
      %320 = vmatprep.subr.bf16.mxu0 0
      %321 = vmatpush1.bf16.xpose.msra.mxu0 0
      %322 = vmatprep.subr.bf16.mxu0 0
      %323 = vmatpush1.bf16.xpose.msra.mxu0 0
      %324 = vmatprep.subr.bf16.mxu0 0
      %325 = vmatpush1.bf16.xpose.msra.mxu0 0
      %326 = vmatprep.subr.bf16.mxu0 0
      %327 = vmatpush1.bf16.xpose.msra.mxu0 0
      %328 = vmatprep.subr.bf16.mxu0 0
      %329 = vmatpush1.bf16.xpose.msra.mxu0 0
      %330 = vmatprep.subr.bf16.mxu0 0
      %331 = vmatpush1.bf16.xpose.msra.mxu0 0
      %332 = vmatprep.subr.bf16.mxu0 0
      %333 = vmatpush1.bf16.xpose.msra.mxu0 0
      %334 = vmatprep.subr.bf16.mxu0 0
      %335 = vmatpush1.bf16.xpose.msra.mxu0 0
      %336 = vmatprep.subr.bf16.mxu0 0
      %337 = vmatpush1.bf16.xpose.msra.mxu0 0
      %338 = vmatprep.subr.bf16.mxu0 0
      %339 = vmatpush1.bf16.xpose.msra.mxu0 0
      %340 = vmatprep.subr.bf16.mxu0 0
      %341 = vmatpush1.bf16.xpose.msra.mxu0 0
      %342 = vmatprep.mubr.bf16.mxu0 0
      %343 = vmatmul.mubr.bf16.gmra.mrb[0].mxu0 %v305
      %v344 = vpop.f32.mrb[0].mxu0
      %v345 = vadd.f32 0.0, %v344
      %v346 = vpop.f32.mrb[0].mxu0
      %v347 = vpop.f32.mrb[0].mxu0
      %v348 = vadd.f32 0.0, %v347
      %v349 = vpop.f32.mrb[0].mxu0
      %350 = vdwg.mxu0
      %v351 = vld [vmem:[#allocation2] sm:$0xff]
      %v352 = vld [vmem:[#allocation2 + $0x8] sm:$0xff]
      %v353 = vsel %vm303, %v345, -inf
      %354 = vmax.xlane.f32.xlu0 %v353
      %v355 = vpop.xlane.xlu0 %354
      %v356 = vsel %vm303, %v348, -inf
      %357 = vmax.xlane.f32.xlu0 %v356
      %v358 = vpop.xlane.xlu0 %357
      %v359 = vmax.f32 %v351, %v355
      %v360 = vmax.f32 %v352, %v358
      %v361 = vsub.f32 %v351, %v359
      %v362 = vsub.f32 %v352, %v360
      %v363 = vmul.f32 %v361, 1.442695
      %v364 = vpow.pop %v363
      %v365 = vmul.f32 %v362, 1.442695
      %v366 = vpow.pop %v365
      %368 = vset.pattern.permute.xlu0 0
      %369 = vperm.xlu0 %368, %v359
      %v370 = vpop.permute.xlu0 %369
      %373 = vset.pattern.permute.xlu0 0
      %374 = vperm.xlu0 %373, %v360
      %v375 = vpop.permute.xlu0 %374
      %v377 = vsub.f32 %v345, %v370
      %v378 = vsub.f32 %v348, %v375
      %v379 = vmul.f32 %v377, 1.442695
      %v380 = vpow.pop %v379
      %v381 = vmul.f32 %v378, 1.442695
      %v382 = vpow.pop %v381
      %v383 = vld [vmem:[#allocation3] sm:$0xff]
      %v384 = vld [vmem:[#allocation3 + $0x8] sm:$0xff]
      %v385 = vmul.f32 %v364, %v383
      %v386 = vmul.f32 %v366, %v384
      %v387 = vsel %vm303, %v380, 0.0
      %388 = vadd.xlane.f32.xlu0 %v387
      %v389 = vpop.xlane.xlu0 %388
      %v390 = vsel %vm303, %v382, 0.0
      %391 = vadd.xlane.f32.xlu0 %v390
      %v392 = vpop.xlane.xlu0 %391
      %v393 = vadd.f32 %v385, %v389
      %v394 = vadd.f32 %v386, %v392
      %vm395 = vcmask 7168
      %396 = vst.msk [vmem:[#allocation3] sm:$0xff] %vm395, %v393
      %397 = vst.msk [vmem:[#allocation3 + $0x8] sm:$0xff] %vm395, %v394
      %v398 = vld [vmem:[#allocation4] sm:$0xff]
      %v399 = vld [vmem:[#allocation4 + $0x8] sm:$0xff]
      %401 = vset.pattern.permute.xlu0 0
      %402 = vperm.xlu0 %401, %v364
      %v403 = vpop.permute.xlu0 %402
      %406 = vset.pattern.permute.xlu0 0
      %407 = vperm.xlu0 %406, %v366
      %v408 = vpop.permute.xlu0 %407
      %v410 = vmul.f32 %v403, %v398
      %v411 = vmul.f32 %v408, %v399
      %v412 = vpack.c.bf16 %v382, %v380
      %v413 = vld [vmem:[%s271] sm:$0xf]
      %v415 = vsel %vm303, %v412, 0
      %vm417 = vcmask 1043456
      %v419 = vsel %vm417, %v413, 0
      %421 = vmatprep.subr.bf16.mxu0 0
      %422 = vmatpush1.bf16.msra.mxu0 %v419
      %423 = vmatprep.subr.bf16.mxu0 0
      %424 = vmatpush1.bf16.msra.mxu0 0
      %425 = vmatprep.subr.bf16.mxu0 0
      %426 = vmatpush1.bf16.msra.mxu0 0
      %427 = vmatprep.subr.bf16.mxu0 0
      %428 = vmatpush1.bf16.msra.mxu0 0
      %429 = vmatprep.subr.bf16.mxu0 0
      %430 = vmatpush1.bf16.msra.mxu0 0
      %431 = vmatprep.subr.bf16.mxu0 0
      %432 = vmatpush1.bf16.msra.mxu0 0
      %433 = vmatprep.subr.bf16.mxu0 0
      %434 = vmatpush1.bf16.msra.mxu0 0
      %435 = vmatprep.subr.bf16.mxu0 0
      %436 = vmatpush1.bf16.msra.mxu0 0
      %437 = vmatprep.subr.bf16.mxu0 0
      %438 = vmatpush1.bf16.msra.mxu0 0
      %439 = vmatprep.subr.bf16.mxu0 0
      %440 = vmatpush1.bf16.msra.mxu0 0
      %441 = vmatprep.subr.bf16.mxu0 0
      %442 = vmatpush1.bf16.msra.mxu0 0
      %443 = vmatprep.subr.bf16.mxu0 0
      %444 = vmatpush1.bf16.msra.mxu0 0
      %445 = vmatprep.subr.bf16.mxu0 0
      %446 = vmatpush1.bf16.msra.mxu0 0
      %447 = vmatprep.subr.bf16.mxu0 0
      %448 = vmatpush1.bf16.msra.mxu0 0
      %449 = vmatprep.subr.bf16.mxu0 0
      %450 = vmatpush1.bf16.msra.mxu0 0
      %451 = vmatprep.subr.bf16.mxu0 0
      %452 = vmatpush1.bf16.msra.mxu0 0
      %453 = vmatprep.mubr.bf16.mxu0 0
      %454 = vmatmul.mubr.bf16.gmra.mrb[0].mxu0 %v415
      %v455 = vpop.f32.mrb[0].mxu0
      %v456 = vadd.f32 0.0, %v455
      %v457 = vpop.f32.mrb[0].mxu0
      %v458 = vpop.f32.mrb[0].mxu0
      %v459 = vadd.f32 0.0, %v458
      %v460 = vpop.f32.mrb[0].mxu0
      %461 = vdwg.mxu0
      %v462 = vadd.f32 %v410, %v456
      %v463 = vadd.f32 %v411, %v459
      %464 = vst.msk [vmem:[#allocation4] sm:$0xff] %vm303, %v462
      %465 = vst.msk [vmem:[#allocation4 + $0x8] sm:$0xff] %vm303, %v463
      %466 = vst.msk [vmem:[#allocation2] sm:$0xff] %vm395, %v359
      %467 = vst.msk [vmem:[#allocation2 + $0x8] sm:$0xff] %vm395, %v360
      // Predicated region
      $region37: #{_lambda_.6} parent=31 // pred_check
        %p468 = pneg %p283
      $region38: #{_lambda_.6} parent=31 // pred_check_branch
        %470 = sbr.rel (%p468) target = $region40
      $region39: #{_lambda_.6} parent=31 // pred_region
        %v471 = vld [vmem:[#allocation4] sm:$0xff]
        %v472 = vld [vmem:[#allocation4 + $0x8] sm:$0xff]
        %v473 = vld [vmem:[#allocation3] sm:$0xff]
        %v474 = vld [vmem:[#allocation3 + $0x8] sm:$0xff]
        %v475 = vrcp.pop %v473
        %v476 = vrcp.pop %v474
        %478 = vset.pattern.permute.xlu0 0
        %479 = vperm.xlu0 %478, %v475
        %v480 = vpop.permute.xlu0 %479
        %483 = vset.pattern.permute.xlu0 0
        %484 = vperm.xlu0 %483, %v476
        %v485 = vpop.permute.xlu0 %484
        %v487 = vmul.f32 %v471, %v480
        %v488 = vmul.f32 %v472, %v485
        %v489 = vpack.c.bf16 %v487, %v487
        %v490 = vpack.c.bf16 %v488, %v488
        %vm491 = vcmask 60416
        %492 = vst.msk [vmem:[%s280] sm:$0xf] %vm491, %v489
        %493 = vst.msk [vmem:[%s280 + $0x4] sm:$0xf] %vm491, %v490
      $region40: #{_lambda_.6} parent=31 // pred_fallthru
        _
      %s494 = smul.u32 2, %s19
      %p495 = scmp.lt.s32.totalorder %s494, 3
      %s496 = scalar_select %p495, %s494, 3
      %p497 = scmp.lt.s32.totalorder %s20, 0
      %s498 = scalar_select %p497, %s20, 0
      %s499 = sadd.s32 %s498, %s496
      %s500 = smul.addr %s499, 4
      %s501 = scalar_lea.vmem %s3, %s500
      // Predicated region
      $region41: #{_lambda_.6} parent=31 // pred_check
        %p502 = pneg %p141
      $region42: #{_lambda_.6} parent=31 // pred_check_branch
        %504 = sbr.rel (%p502) target = $region44
      $region43: #{_lambda_.6} parent=31 // pred_region
        %s505 = smul.u32 2, %s19
      $region44: #{_lambda_.6} parent=31 // pred_fallthru
        _
    $region32: #{_lambda_.6} parent=5 // pred_fallthru
      _
    %p506 = scmp.le.s32.totalorder 2, %s9
    // Predicated region
    $region45: #{_lambda_.6} parent=5 // pred_check
      %p507 = pneg %p506
    $region46: #{_lambda_.6} parent=5 // pred_check_branch
      %509 = sbr.rel (%p507) target = $region48
    $region47: #{_lambda_.6} parent=5 // pred_region
      %s510 = ssub.s32 %s9, 2
      // Predicated region
      $region49: #{_lambda_.6} parent=47 // pred_check
        %p511 = pneg %p147
      $region50: #{_lambda_.6} parent=47 // pred_check_branch
        %513 = sbr.rel (%p511) target = $region52
      $region51: #{_lambda_.6} parent=47 // pred_region
        %s514 = smul.u32 2, %s22
        %p515 = scmp.lt.s32.totalorder %s514, 3
        %s516 = scalar_select %p515, %s514, 3
        %p517 = scmp.lt.s32.totalorder %s23, 0
        %s518 = scalar_select %p517, %s23, 0
        %s519 = sadd.s32 %s518, %s516
        %s520 = smul.addr %s519, 4
        %s521 = scalar_lea.vmem %s3, %s520
      $region52: #{_lambda_.6} parent=47 // pred_fallthru
        _
    $region48: #{_lambda_.6} parent=5 // pred_fallthru
      _
  $region6: #{_lambda_.6} parent=0 // loop_footer
    %s13 = sadd.s32 1, %s9
  $region7: #{_lambda_.6} parent=0 // loop_footer_branch
    %8 = sbr.rel target = $region3
  $region8: #{_lambda_.6} parent=0 // loop_exit
    _

// kernel: _lambda_.5
$region0: #{_lambda_.5}
  #allocation0 [shape = 'u32[]', space=smem, size = 0x4, offset = 0x4, fixed_abs, tag = 'smem constant byte address 0x4 - core index']
  #allocation1 [shape = 'u32[144,128]{1,0:T(1,128)}', space=vmem, size = 0x12000, scoped, tag = 'internal scratch']
  #allocation2 [shape = 'bf16[8,32]{1,0:T(8,128)(2,1)}', space=vmem, size = 0x800, scoped, tag = 'scratch operand']
  %s0 = inlined_call_operand.vmem [shape: f32[8,32], index: 0, kind: input, shape index: {}]
  %s1 = inlined_call_operand.vmem [shape: f32[1,32], index: 1, kind: input, shape index: {}]
  %s2 = inlined_call_operand.vmem [shape: bf16[8,32,8], index: 2, kind: input, shape index: {}]
  %s3 = inlined_call_operand.vmem [shape: f32[8,8], index: 3, kind: input, shape index: {}]
  %s4 = inlined_call_operand.vmem [shape: f32[8,8], index: 4, kind: input, shape index: {}]
  %s5 = inlined_call_operand.vmem [shape: bf16[8,8,8], index: 5, kind: output, shape index: {}]
  %s6 = sld [smem:[#allocation0]]
  $region65: #{_lambda_.5} parent=0
    _
  %s8 = ssub.s32 1, %s6
  %s9 = scalar_select 0, %s8, %s6
  loop: start=0, step=1, limit=10
  $region2: #{_lambda_.5} parent=0 // loop_pre_header
    _
  $region3: #{_lambda_.5} parent=0 // loop_header
    %s11 = sphi 0, %s15
    %p12 = scmp.ge.s32.totalorder %s11, 10
    %s18 = sphi 0, %s30
    %s19 = sphi 0, %s26
    %s20 = sphi 0, %s18
    %s21 = sphi 0, %s19
    %s22 = sphi 0, %s20
    %s23 = sphi 0, %s21
    %s33 = sphi 0, %s35
    %s36 = sphi 0, %s33
    %s37 = sphi 0, %s36
    %s53 = sphi 0, %s37
    %s57 = sphi 0, %s57
    %s59 = sphi 0, %s57
    %s60 = sphi 0, %s59
    %s74 = sphi 0, %s60
    %s80 = sphi 0, %s82
    %s83 = sphi 0, %s80
    %s84 = sphi 0, %s83
    %s100 = sphi 0, %s84
    %s106 = sphi 0, %s108
    %s109 = sphi 0, %s106
    %s110 = sphi 0, %s109
    %s126 = sphi 0, %s110
    %s132 = sphi 0, %s134
    %s135 = sphi 0, %s132
    %s136 = sphi 0, %s135
    %s152 = sphi 0, %s136
    %s160 = sphi 0, %s162
    %s163 = sphi 0, %s160
    %s164 = sphi 0, %s163
    %s180 = sphi 0, %s164
  $region4: #{_lambda_.5} parent=0 // loop_header_branch
    %14 = sbr.rel (%p12) target = $region8
  $region5: #{_lambda_.5} parent=0 // loop_body
    %s16 = ssub.s32 %s11, 1
    %s17 = ssub.s32 %s11, 2
    %s24 = sadd.s32 1, %s19
    %p25 = scmp.ge.s32.totalorder %s24, 8
    %s26 = scalar_select %p25, 0, %s24
    %s27 = sadd.s32 1, %s18
    %s28 = scalar_select %p25, %s27, %s18
    %p29 = scmp.ge.s32.totalorder %s28, 1
    %s30 = scalar_select %p29, 0, %s28
    %s31 = ssub.s32 %s18, %s30
    %p32 = scmp.eq.s32.totalorder %s31, 0
    %s34 = sadd.s32 %s33, 1
    %s35 = scalar_select %p32, %s33, %s34
    %p38 = pneg %p32
    %p39 = scmp.eq.s32.totalorder %s11, 7
    %p40 = por %p38, %p39
    %p41 = scmp.ne.s32.totalorder %s33, %s36
    %p42 = scmp.eq.s32.totalorder %s11, 0
    %p43 = por %p41, %p42
    %p44 = scmp.ne.s32.totalorder %s33, %s36
    %p45 = scmp.eq.s32.totalorder %s16, 7
    %p46 = por %p44, %p45
    %p47 = scmp.ne.s32.totalorder %s36, %s37
    %p48 = scmp.eq.s32.totalorder %s16, 0
    %p49 = por %p47, %p48
    %p50 = scmp.ne.s32.totalorder %s36, %s37
    %p51 = scmp.eq.s32.totalorder %s17, 7
    %p52 = por %p50, %p51
    %p54 = scmp.ne.s32.totalorder %s37, %s53
    %p55 = scmp.eq.s32.totalorder %s17, 0
    %p56 = por %p54, %p55
    %s58 = sadd.s32 %s57, 1
    %p61 = scmp.eq.s32.totalorder %s11, 7
    %p62 = scmp.ne.s32.totalorder %s57, %s59
    %p63 = scmp.eq.s32.totalorder %s11, 0
    %p64 = por %p62, %p63
    %p65 = scmp.ne.s32.totalorder %s57, %s59
    %p66 = scmp.eq.s32.totalorder %s16, 7
    %p67 = por %p65, %p66
    %p68 = scmp.ne.s32.totalorder %s59, %s60
    %p69 = scmp.eq.s32.totalorder %s16, 0
    %p70 = por %p68, %p69
    %p71 = scmp.ne.s32.totalorder %s59, %s60
    %p72 = scmp.eq.s32.totalorder %s17, 7
    %p73 = por %p71, %p72
    %p75 = scmp.ne.s32.totalorder %s60, %s74
    %p76 = scmp.eq.s32.totalorder %s17, 0
    %p77 = por %p75, %p76
    %s78 = ssub.s32 %s19, %s26
    %p79 = scmp.eq.s32.totalorder %s78, 0
    %s81 = sadd.s32 %s80, 1
    %s82 = scalar_select %p79, %s80, %s81
    %p85 = pneg %p79
    %p86 = scmp.eq.s32.totalorder %s11, 7
    %p87 = por %p85, %p86
    %p88 = scmp.ne.s32.totalorder %s80, %s83
    %p89 = scmp.eq.s32.totalorder %s11, 0
    %p90 = por %p88, %p89
    %p91 = scmp.ne.s32.totalorder %s80, %s83
    %p92 = scmp.eq.s32.totalorder %s16, 7
    %p93 = por %p91, %p92
    %p94 = scmp.ne.s32.totalorder %s83, %s84
    %p95 = scmp.eq.s32.totalorder %s16, 0
    %p96 = por %p94, %p95
    %p97 = scmp.ne.s32.totalorder %s83, %s84
    %p98 = scmp.eq.s32.totalorder %s17, 7
    %p99 = por %p97, %p98
    %p101 = scmp.ne.s32.totalorder %s84, %s100
    %p102 = scmp.eq.s32.totalorder %s17, 0
    %p103 = por %p101, %p102
    %s104 = ssub.s32 %s18, %s30
    %p105 = scmp.eq.s32.totalorder %s104, 0
    %s107 = sadd.s32 %s106, 1
    %s108 = scalar_select %p105, %s106, %s107
    %p111 = pneg %p105
    %p112 = scmp.eq.s32.totalorder %s11, 7
    %p113 = por %p111, %p112
    %p114 = scmp.ne.s32.totalorder %s106, %s109
    %p115 = scmp.eq.s32.totalorder %s11, 0
    %p116 = por %p114, %p115
    %p117 = scmp.ne.s32.totalorder %s106, %s109
    %p118 = scmp.eq.s32.totalorder %s16, 7
    %p119 = por %p117, %p118
    %p120 = scmp.ne.s32.totalorder %s109, %s110
    %p121 = scmp.eq.s32.totalorder %s16, 0
    %p122 = por %p120, %p121
    %p123 = scmp.ne.s32.totalorder %s109, %s110
    %p124 = scmp.eq.s32.totalorder %s17, 7
    %p125 = por %p123, %p124
    %p127 = scmp.ne.s32.totalorder %s110, %s126
    %p128 = scmp.eq.s32.totalorder %s17, 0
    %p129 = por %p127, %p128
    %s130 = ssub.s32 %s18, %s30
    %p131 = scmp.eq.s32.totalorder %s130, 0
    %s133 = sadd.s32 %s132, 1
    %s134 = scalar_select %p131, %s132, %s133
    %p137 = pneg %p131
    %p138 = scmp.eq.s32.totalorder %s11, 7
    %p139 = por %p137, %p138
    %p140 = scmp.ne.s32.totalorder %s132, %s135
    %p141 = scmp.eq.s32.totalorder %s11, 0
    %p142 = por %p140, %p141
    %p143 = scmp.ne.s32.totalorder %s132, %s135
    %p144 = scmp.eq.s32.totalorder %s16, 7
    %p145 = por %p143, %p144
    %p146 = scmp.ne.s32.totalorder %s135, %s136
    %p147 = scmp.eq.s32.totalorder %s16, 0
    %p148 = por %p146, %p147
    %p149 = scmp.ne.s32.totalorder %s135, %s136
    %p150 = scmp.eq.s32.totalorder %s17, 7
    %p151 = por %p149, %p150
    %p153 = scmp.ne.s32.totalorder %s136, %s152
    %p154 = scmp.eq.s32.totalorder %s17, 0
    %p155 = por %p153, %p154
    %s156 = ssub.s32 %s19, %s26
    %s157 = ssub.s32 %s18, %s30
    %s158 = sor.u32 %s156, %s157
    %p159 = scmp.eq.s32.totalorder %s158, 0
    %s161 = sadd.s32 %s160, 1
    %s162 = scalar_select %p159, %s160, %s161
    %p165 = pneg %p159
    %p166 = scmp.eq.s32.totalorder %s11, 7
    %p167 = por %p165, %p166
    %p168 = scmp.ne.s32.totalorder %s160, %s163
    %p169 = scmp.eq.s32.totalorder %s11, 0
    %p170 = por %p168, %p169
    %p171 = scmp.ne.s32.totalorder %s160, %s163
    %p172 = scmp.eq.s32.totalorder %s16, 7
    %p173 = por %p171, %p172
    %p174 = scmp.ne.s32.totalorder %s163, %s164
    %p175 = scmp.eq.s32.totalorder %s16, 0
    %p176 = por %p174, %p175
    %p177 = scmp.ne.s32.totalorder %s163, %s164
    %p178 = scmp.eq.s32.totalorder %s17, 7
    %p179 = por %p177, %p178
    %p181 = scmp.ne.s32.totalorder %s164, %s180
    %p182 = scmp.eq.s32.totalorder %s17, 0
    %p183 = por %p181, %p182
    %p184 = scmp.le.s32.totalorder 1, %s11
    %p185 = scmp.lt.s32.totalorder %s11, 9
    %p186 = pnand %p184, %p185
    %p187 = pneg %p186
    // Predicated region
    $region9: #{_lambda_.5} parent=5 // pred_check
      _
    $region10: #{_lambda_.5} parent=5 // pred_check_branch
      %189 = sbr.rel (%p186) target = $region12
    $region11: #{_lambda_.5} parent=5 // pred_region
      %s190 = ssub.s32 %s11, 1
      // Predicated region
      $region13: #{_lambda_.5} parent=11 // pred_check
        %p191 = pneg %p49
      $region14: #{_lambda_.5} parent=11 // pred_check_branch
        %193 = sbr.rel (%p191) target = $region16
      $region15: #{_lambda_.5} parent=11 // pred_region
        %p194 = scmp.lt.s32.totalorder %s20, 0
        %s195 = scalar_select %p194, %s20, 0
        %s196 = smul.addr %s195, 8
        %s197 = scalar_lea.vmem %s0, %s196
      $region16: #{_lambda_.5} parent=11 // pred_fallthru
        _
      // Predicated region
      $region17: #{_lambda_.5} parent=11 // pred_check
        %p198 = pneg %p70
      $region18: #{_lambda_.5} parent=11 // pred_check_branch
        %200 = sbr.rel (%p198) target = $region20
      $region19: #{_lambda_.5} parent=11 // pred_region
        _
      $region20: #{_lambda_.5} parent=11 // pred_fallthru
        _
      // Predicated region
      $region21: #{_lambda_.5} parent=11 // pred_check
        %p201 = pneg %p122
      $region22: #{_lambda_.5} parent=11 // pred_check_branch
        %203 = sbr.rel (%p201) target = $region24
      $region23: #{_lambda_.5} parent=11 // pred_region
        %p204 = scmp.lt.s32.totalorder %s20, 0
        %s205 = scalar_select %p204, %s20, 0
        %s206 = smul.addr %s205, 8
        %s207 = scalar_lea.vmem %s3, %s206
      $region24: #{_lambda_.5} parent=11 // pred_fallthru
        _
      // Predicated region
      $region25: #{_lambda_.5} parent=11 // pred_check
        %p208 = pneg %p148
      $region26: #{_lambda_.5} parent=11 // pred_check_branch
        %210 = sbr.rel (%p208) target = $region28
      $region27: #{_lambda_.5} parent=11 // pred_region
        %p211 = scmp.lt.s32.totalorder %s20, 0
        %s212 = scalar_select %p211, %s20, 0
        %s213 = smul.addr %s212, 8
        %s214 = scalar_lea.vmem %s4, %s213
      $region28: #{_lambda_.5} parent=11 // pred_fallthru
        _
    $region12: #{_lambda_.5} parent=5 // pred_fallthru
      _
    %p215 = scmp.lt.s32.totalorder %s11, 8
    // Predicated region
    $region29: #{_lambda_.5} parent=5 // pred_check
      %p216 = pneg %p215
    $region30: #{_lambda_.5} parent=5 // pred_check_branch
      %218 = sbr.rel (%p216) target = $region32
    $region31: #{_lambda_.5} parent=5 // pred_region
      // Predicated region
      $region33: #{_lambda_.5} parent=31 // pred_check
        %p219 = pneg %p90
      $region34: #{_lambda_.5} parent=31 // pred_check_branch
        %221 = sbr.rel (%p219) target = $region36
      $region35: #{_lambda_.5} parent=31 // pred_region
        %p222 = scmp.lt.s32.totalorder %s19, 7
        %s223 = scalar_select %p222, %s19, 7
        %s224 = smul.addr %s223, 4
        %s225 = smul.addr %s224, 4
        %s226 = scalar_lea.vmem %s2, %s225
      $region36: #{_lambda_.5} parent=31 // pred_fallthru
        _
    $region32: #{_lambda_.5} parent=5 // pred_fallthru
      _
    %p227 = scmp.le.s32.totalorder 1, %s11
    %p228 = scmp.lt.s32.totalorder %s11, 9
    %p229 = pnand %p227, %p228
    %p230 = pneg %p229
    // Predicated region
    $region37: #{_lambda_.5} parent=5 // pred_check
      _
    $region38: #{_lambda_.5} parent=5 // pred_check_branch
      %232 = sbr.rel (%p229) target = $region40
    $region39: #{_lambda_.5} parent=5 // pred_region
      %s233 = ssub.s32 %s11, 1
      %p234 = scmp.lt.s32.totalorder %s20, 0
      %s235 = scalar_select %p234, %s20, 0
      %s236 = smul.addr %s235, 8
      %s237 = scalar_lea.vmem %s0, %s236
      %p238 = pneg %p49
      %p239 = pneg %p46
      %p240 = pneg %p70
      %p241 = pneg %p67
      %p242 = scmp.lt.s32.totalorder %s21, 7
      %s243 = scalar_select %p242, %s21, 7
      %s244 = smul.addr %s243, 4
      %s245 = smul.addr %s244, 4
      %s246 = scalar_lea.vmem %s2, %s245
      %p247 = pneg %p96
      %p248 = pneg %p93
      %p249 = scmp.lt.s32.totalorder %s20, 0
      %s250 = scalar_select %p249, %s20, 0
      %s251 = smul.addr %s250, 8
      %s252 = scalar_lea.vmem %s3, %s251
      %p253 = pneg %p122
      %p254 = pneg %p119
      %p255 = scmp.lt.s32.totalorder %s20, 0
      %s256 = scalar_select %p255, %s20, 0
      %s257 = smul.addr %s256, 8
      %s258 = scalar_lea.vmem %s4, %s257
      %p259 = pneg %p148
      %p260 = pneg %p145
      %p261 = pneg %p176
      %p262 = pneg %p173
      %p263 = scmp.lt.s32.totalorder %s21, 7
      %s264 = scalar_select %p263, %s21, 7
      %p265 = scmp.lt.s32.totalorder %s20, 0
      %s266 = scalar_select %p265, %s20, 0
      %s267 = sadd.s32 %s266, %s264
      %s268 = smul.addr %s267, 4
      %s269 = scalar_lea.vmem %s5, %s268
      %p270 = scmp.lt.s32.totalorder %s20, 0
      %s271 = scalar_select %p270, %s20, 0
      %s272 = smul.addr %s271, 8
      %s273 = scalar_lea.vmem %s0, %s272
      %p274 = scmp.lt.s32.totalorder %s21, 7
      %s275 = scalar_select %p274, %s21, 7
      %s276 = smul.addr %s275, 4
      %s277 = smul.addr %s276, 4
      %s278 = scalar_lea.vmem %s2, %s277
      %p279 = scmp.lt.s32.totalorder %s20, 0
      %s280 = scalar_select %p279, %s20, 0
      %s281 = smul.addr %s280, 8
      %s282 = scalar_lea.vmem %s3, %s281
      %p283 = scmp.lt.s32.totalorder %s20, 0
      %s284 = scalar_select %p283, %s20, 0
      %s285 = smul.addr %s284, 8
      %s286 = scalar_lea.vmem %s4, %s285
      %p287 = scmp.lt.s32.totalorder %s21, 7
      %s288 = scalar_select %p287, %s21, 7
      %p289 = scmp.lt.s32.totalorder %s20, 0
      %s290 = scalar_select %p289, %s20, 0
      %s291 = sadd.s32 %s290, %s288
      %s292 = smul.addr %s291, 4
      %s293 = scalar_lea.vmem %s5, %s292
      %p295 = scmp.eq.s32.totalorder %s21, 0
      // Predicated region
      $region41: #{_lambda_.5} parent=39 // pred_check
        %p296 = pneg %p295
      $region42: #{_lambda_.5} parent=39 // pred_check_branch
        %298 = sbr.rel (%p296) target = $region44
      $region43: #{_lambda_.5} parent=39 // pred_region
        %v299 = vld [vmem:[%s273] sm:$0xff]
        %v300 = vmul.f32 %v299, %v299
        %vm301 = vcmask 261120
        %v302 = vsel %vm301, %v300, 0.0
        %303 = vadd.xlane.f32.xlu0 %v302
        %v304 = vpop.xlane.xlu0 %303
        %v305 = vrcp.pop 32.0
        %v306 = vmul.f32 %v304, %v305
        %v307 = vadd.f32 %v306, 1e-05
        %v308 = vrsqrt.pop %v307
        %v309 = vmul.f32 %v299, %v308
        %v310 = vld [vmem:[%s1] sm:$0x1]
        %v312 = vlaneseq
        %v313 = vshrl.u32 %v312, 7
        %v314 = vsub.s32 0, %v313
        %v315 = vrot.slane %v310, %v314
        %v317 = vmul.f32 %v309, %v315
        %v318 = vpack.c.bf16 %v317, %v317
        %vm319 = vcmask 257024
        %320 = vst.msk [vmem:[#allocation2] sm:$0xf] %vm319, %v318
      $region44: #{_lambda_.5} parent=39 // pred_fallthru
        _
      %v321 = vld [vmem:[#allocation2] sm:$0xf]
      %v322 = vld [vmem:[%s278] sm:$0xf]
      %v323 = vld [vmem:[%s278 + $0x4] sm:$0xf]
      %v324 = vld [vmem:[%s278 + $0x8] sm:$0xf]
      %v325 = vld [vmem:[%s278 + $0xc] sm:$0xf]
      %v330 = vunpack.c.l.b16 %v322
      %v331 = vunpack.c.l.b16 %v323
      %v332 = vunpack.c.l.b16 %v324
      %v333 = vunpack.c.l.b16 %v325
      %v334 = vpack.c.b16 %v331, %v330
      %v335 = vpack.c.b16 %v333, %v332
      %vm338 = vcmask 261120
      %v340 = vsel %vm338, %v321, 0
      %342 = vmatprep.subr.bf16.mxu0 0
      %343 = vmatpush1.bf16.msra.mxu0 %v334
      %344 = vmatprep.subr.bf16.mxu0 0
      %345 = vmatpush1.bf16.msra.mxu0 %v335
      %346 = vmatprep.subr.bf16.mxu0 0
      %347 = vmatpush1.bf16.msra.mxu0 0
      %348 = vmatprep.subr.bf16.mxu0 0
      %349 = vmatpush1.bf16.msra.mxu0 0
      %350 = vmatprep.subr.bf16.mxu0 0
      %351 = vmatpush1.bf16.msra.mxu0 0
      %352 = vmatprep.subr.bf16.mxu0 0
      %353 = vmatpush1.bf16.msra.mxu0 0
      %354 = vmatprep.subr.bf16.mxu0 0
      %355 = vmatpush1.bf16.msra.mxu0 0
      %356 = vmatprep.subr.bf16.mxu0 0
      %357 = vmatpush1.bf16.msra.mxu0 0
      %358 = vmatprep.subr.bf16.mxu0 0
      %359 = vmatpush1.bf16.msra.mxu0 0
      %360 = vmatprep.subr.bf16.mxu0 0
      %361 = vmatpush1.bf16.msra.mxu0 0
      %362 = vmatprep.subr.bf16.mxu0 0
      %363 = vmatpush1.bf16.msra.mxu0 0
      %364 = vmatprep.subr.bf16.mxu0 0
      %365 = vmatpush1.bf16.msra.mxu0 0
      %366 = vmatprep.subr.bf16.mxu0 0
      %367 = vmatpush1.bf16.msra.mxu0 0
      %368 = vmatprep.subr.bf16.mxu0 0
      %369 = vmatpush1.bf16.msra.mxu0 0
      %370 = vmatprep.subr.bf16.mxu0 0
      %371 = vmatpush1.bf16.msra.mxu0 0
      %372 = vmatprep.subr.bf16.mxu0 0
      %373 = vmatpush1.bf16.msra.mxu0 0
      %374 = vmatprep.mubr.bf16.mxu0 0
      %375 = vmatmul.mubr.bf16.gmra.mrb[0].mxu0 %v340
      %v376 = vpop.f32.mrb[0].mxu0
      %v377 = vadd.f32 0.0, %v376
      %v378 = vpop.f32.mrb[0].mxu0
      %v379 = vpop.f32.mrb[0].mxu0
      %v380 = vpop.f32.mrb[0].mxu0
      %381 = vdwg.mxu0
      %p382 = scmp.lt.s32.totalorder %s21, 6
      // Predicated region
      $region45: #{_lambda_.5} parent=39 // pred_check
        %p383 = pneg %p382
      $region46: #{_lambda_.5} parent=39 // pred_check_branch
        %385 = sbr.rel (%p383) target = $region48
      $region47: #{_lambda_.5} parent=39 // pred_region
        %v386 = vld [vmem:[%s282] sm:$0xff]
        %v387 = vmul.f32 %v377, %v386
        %vm388 = vcmask 1047616
        %389 = vrot.lane.b32.xlu0 %v377, 8
        %v390 = vpop.permute.xlu0 %389
        %v391 = vsel %vm388, %v390, %v377
        %392 = vrot.lane.b32.xlu0 %v391, 8
        %v393 = vpop.permute.xlu0 %392
        %v394 = vsel %vm388, %v393, %v377
        %v395 = vld [vmem:[%s286] sm:$0xff]
        %397 = vrot.lane.b32.xlu0 %v395, 4
        %v398 = vpop.permute.xlu0 %397
        %v400 = vmul.f32 %v394, %v398
        %402 = vrot.lane.b32.xlu0 %v400, 124
        %v403 = vpop.permute.xlu0 %402
        %v405 = vadd.f32 %v387, %v403
        %v406 = vpack.c.bf16 %v405, %v405
        %vm407 = vcmask 60416
        %408 = vst.msk [vmem:[%s293] sm:$0xf] %vm407, %v406
      $region48: #{_lambda_.5} parent=39 // pred_fallthru
        _
      %p409 = scmp.ge.s32.totalorder %s21, 6
      // Predicated region
      $region49: #{_lambda_.5} parent=39 // pred_check
        %p410 = pneg %p409
      $region50: #{_lambda_.5} parent=39 // pred_check_branch
        %412 = sbr.rel (%p410) target = $region52
      $region51: #{_lambda_.5} parent=39 // pred_region
        %v413 = vpack.c.bf16 %v377, %v377
        %vm414 = vcmask 60416
        %415 = vst.msk [vmem:[%s293] sm:$0xf] %vm414, %v413
      $region52: #{_lambda_.5} parent=39 // pred_fallthru
        _
      %p416 = scmp.lt.s32.totalorder %s21, 7
      %s417 = scalar_select %p416, %s21, 7
      %p418 = scmp.lt.s32.totalorder %s20, 0
      %s419 = scalar_select %p418, %s20, 0
      %s420 = sadd.s32 %s419, %s417
      %s421 = smul.addr %s420, 4
      %s422 = scalar_lea.vmem %s5, %s421
      // Predicated region
      $region53: #{_lambda_.5} parent=39 // pred_check
        %p423 = pneg %p173
      $region54: #{_lambda_.5} parent=39 // pred_check_branch
        %425 = sbr.rel (%p423) target = $region56
      $region55: #{_lambda_.5} parent=39 // pred_region
        _
      $region56: #{_lambda_.5} parent=39 // pred_fallthru
        _
    $region40: #{_lambda_.5} parent=5 // pred_fallthru
      _
    %p426 = scmp.le.s32.totalorder 2, %s11
    // Predicated region
    $region57: #{_lambda_.5} parent=5 // pred_check
      %p427 = pneg %p426
    $region58: #{_lambda_.5} parent=5 // pred_check_branch
      %429 = sbr.rel (%p427) target = $region60
    $region59: #{_lambda_.5} parent=5 // pred_region
      %s430 = ssub.s32 %s11, 2
      // Predicated region
      $region61: #{_lambda_.5} parent=59 // pred_check
        %p431 = pneg %p179
      $region62: #{_lambda_.5} parent=59 // pred_check_branch
        %433 = sbr.rel (%p431) target = $region64
      $region63: #{_lambda_.5} parent=59 // pred_region
        %p434 = scmp.lt.s32.totalorder %s23, 7
        %s435 = scalar_select %p434, %s23, 7
        %p436 = scmp.lt.s32.totalorder %s22, 0
        %s437 = scalar_select %p436, %s22, 0
        %s438 = sadd.s32 %s437, %s435
        %s439 = smul.addr %s438, 4
        %s440 = scalar_lea.vmem %s5, %s439
      $region64: #{_lambda_.5} parent=59 // pred_fallthru
        _
    $region60: #{_lambda_.5} parent=5 // pred_fallthru
      _
  $region6: #{_lambda_.5} parent=0 // loop_footer
    %s15 = sadd.s32 1, %s11
  $region7: #{_lambda_.5} parent=0 // loop_footer_branch
    %10 = sbr.rel target = $region3
  $region8: #{_lambda_.5} parent=0 // loop_exit
    _

// kernel: _lambda_.8
$region0: #{_lambda_.8}
  #allocation0 [shape = 'u32[]', space=smem, size = 0x4, offset = 0x4, fixed_abs, tag = 'smem constant byte address 0x4 - core index']
  #allocation1 [shape = 'u32[144,128]{1,0:T(1,128)}', space=vmem, size = 0x12000, scoped, tag = 'internal scratch']
  %s0 = inlined_call_operand.vmem [shape: f32[8,32], index: 0, kind: input, shape index: {}]
  %s1 = inlined_call_operand.vmem [shape: f32[1,32], index: 1, kind: input, shape index: {}]
  %s2 = inlined_call_operand.vmem [shape: bf16[32,8], index: 2, kind: input, shape index: {}]
  %s3 = inlined_call_operand.vmem [shape: bf16[8,32], index: 3, kind: output, shape index: {0}]
  %s4 = inlined_call_operand.vmem [shape: f32[8,8], index: 4, kind: output, shape index: {1}]
  %5 = xla_tuple %s3, %s4
  %s6 = sld [smem:[#allocation0]]
  $region30: #{_lambda_.8} parent=0
    _
  %s8 = ssub.s32 1, %s6
  %s9 = scalar_select 0, %s8, %s6
  // Predicated region
  $region2: #{_lambda_.8} parent=0 // pred_check
    _
  $region3: #{_lambda_.8} parent=0 // pred_check_branch
    %11 = sbr.rel (0) target = $region5
  $region4: #{_lambda_.8} parent=0 // pred_region
    _
  $region5: #{_lambda_.8} parent=0 // pred_fallthru
    _
  // Predicated region
  $region6: #{_lambda_.8} parent=0 // pred_check
    _
  $region7: #{_lambda_.8} parent=0 // pred_check_branch
    %13 = sbr.rel (0) target = $region9
  $region8: #{_lambda_.8} parent=0 // pred_region
    _
  $region9: #{_lambda_.8} parent=0 // pred_fallthru
    _
  // Predicated region
  $region10: #{_lambda_.8} parent=0 // pred_check
    _
  $region11: #{_lambda_.8} parent=0 // pred_check_branch
    %15 = sbr.rel (0) target = $region13
  $region12: #{_lambda_.8} parent=0 // pred_region
    _
  $region13: #{_lambda_.8} parent=0 // pred_fallthru
    _
  %v17 = vld [vmem:[%s0] sm:$0xff]
  %v18 = vmul.f32 %v17, %v17
  %vm19 = vcmask 261120
  %v20 = vsel %vm19, %v18, 0.0
  %21 = vadd.xlane.f32.xlu0 %v20
  %v22 = vpop.xlane.xlu0 %21
  %v23 = vrcp.pop 32.0
  %v24 = vmul.f32 %v22, %v23
  %v25 = vadd.f32 %v24, 1e-05
  %v26 = vrsqrt.pop %v25
  %v27 = vmul.f32 %v17, %v26
  %v28 = vld [vmem:[%s1] sm:$0x1]
  %v30 = vlaneseq
  %v31 = vshrl.u32 %v30, 7
  %v32 = vsub.s32 0, %v31
  %v33 = vrot.slane %v28, %v32
  %v35 = vmul.f32 %v27, %v33
  %v36 = vpack.c.bf16 %v35, %v35
  %vm37 = vcmask 257024
  %38 = vst.msk [vmem:[%s3] sm:$0xf] %vm37, %v36
  %v39 = vld [vmem:[%s2] sm:$0xf]
  %v40 = vld [vmem:[%s2 + $0x4] sm:$0xf]
  %v41 = vld [vmem:[%s2 + $0x8] sm:$0xf]
  %v42 = vld [vmem:[%s2 + $0xc] sm:$0xf]
  %v47 = vunpack.c.l.b16 %v39
  %v48 = vunpack.c.l.b16 %v40
  %v49 = vunpack.c.l.b16 %v41
  %v50 = vunpack.c.l.b16 %v42
  %v51 = vpack.c.b16 %v48, %v47
  %v52 = vpack.c.b16 %v50, %v49
  %v56 = vsel %vm19, %v36, 0
  %58 = vmatprep.subr.bf16.mxu0 0
  %59 = vmatpush1.bf16.msra.mxu0 %v51
  %60 = vmatprep.subr.bf16.mxu0 0
  %61 = vmatpush1.bf16.msra.mxu0 %v52
  %62 = vmatprep.subr.bf16.mxu0 0
  %63 = vmatpush1.bf16.msra.mxu0 0
  %64 = vmatprep.subr.bf16.mxu0 0
  %65 = vmatpush1.bf16.msra.mxu0 0
  %66 = vmatprep.subr.bf16.mxu0 0
  %67 = vmatpush1.bf16.msra.mxu0 0
  %68 = vmatprep.subr.bf16.mxu0 0
  %69 = vmatpush1.bf16.msra.mxu0 0
  %70 = vmatprep.subr.bf16.mxu0 0
  %71 = vmatpush1.bf16.msra.mxu0 0
  %72 = vmatprep.subr.bf16.mxu0 0
  %73 = vmatpush1.bf16.msra.mxu0 0
  %74 = vmatprep.subr.bf16.mxu0 0
  %75 = vmatpush1.bf16.msra.mxu0 0
  %76 = vmatprep.subr.bf16.mxu0 0
  %77 = vmatpush1.bf16.msra.mxu0 0
  %78 = vmatprep.subr.bf16.mxu0 0
  %79 = vmatpush1.bf16.msra.mxu0 0
  %80 = vmatprep.subr.bf16.mxu0 0
  %81 = vmatpush1.bf16.msra.mxu0 0
  %82 = vmatprep.subr.bf16.mxu0 0
  %83 = vmatpush1.bf16.msra.mxu0 0
  %84 = vmatprep.subr.bf16.mxu0 0
  %85 = vmatpush1.bf16.msra.mxu0 0
  %86 = vmatprep.subr.bf16.mxu0 0
  %87 = vmatpush1.bf16.msra.mxu0 0
  %88 = vmatprep.subr.bf16.mxu0 0
  %89 = vmatpush1.bf16.msra.mxu0 0
  %90 = vmatprep.mubr.bf16.mxu0 0
  %91 = vmatmul.mubr.bf16.gmra.mrb[0].mxu0 %v56
  %v92 = vpop.f32.mrb[0].mxu0
  %v93 = vadd.f32 0.0, %v92
  %v94 = vpop.f32.mrb[0].mxu0
  %v95 = vpop.f32.mrb[0].mxu0
  %v96 = vpop.f32.mrb[0].mxu0
  %97 = vdwg.mxu0
  %vm98 = vcmask 64512
  %99 = vst.msk [vmem:[%s4] sm:$0xff] %vm98, %v93
  // Predicated region
  $region14: #{_lambda_.8} parent=0 // pred_check
    _
  $region15: #{_lambda_.8} parent=0 // pred_check_branch
    %101 = sbr.rel (0) target = $region17
  $region16: #{_lambda_.8} parent=0 // pred_region
    _
  $region17: #{_lambda_.8} parent=0 // pred_fallthru
    _
  // Predicated region
  $region18: #{_lambda_.8} parent=0 // pred_check
    _
  $region19: #{_lambda_.8} parent=0 // pred_check_branch
    %103 = sbr.rel (0) target = $region21
  $region20: #{_lambda_.8} parent=0 // pred_region
    _
  $region21: #{_lambda_.8} parent=0 // pred_fallthru
    _
  // Predicated region
  $region22: #{_lambda_.8} parent=0 // pred_check
    _
  $region23: #{_lambda_.8} parent=0 // pred_check_branch
    %105 = sbr.rel (0) target = $region25
  $region24: #{_lambda_.8} parent=0 // pred_region
    _
  $region25: #{_lambda_.8} parent=0 // pred_fallthru
    _
  // Predicated region
  $region26: #{_lambda_.8} parent=0 // pred_check
    _
  $region27: #{_lambda_.8} parent=0 // pred_check_branch
    %107 = sbr.rel (0) target = $region29
  $region28: #{_lambda_.8} parent=0 // pred_region
    _
  $region29: #{_lambda_.8} parent=0 // pred_fallthru
    _

// kernel: _lambda_.9
$region0: #{_lambda_.9}
  #allocation0 [shape = 'u32[]', space=smem, size = 0x4, offset = 0x4, fixed_abs, tag = 'smem constant byte address 0x4 - core index']
  #allocation1 [shape = 'u32[144,128]{1,0:T(1,128)}', space=vmem, size = 0x12000, scoped, tag = 'internal scratch']
  #allocation2 [shape = 'f32[8,32]{1,0:T(8,128)}', space=vmem, size = 0x1000, scoped, tag = 'scratch operand']
  #allocation3 [shape = 's32[1]{0}', space=sflag, size = 0x4, scoped, tag = 'scoped memory for _lambda_.9']
  #allocation4 [shape = 'u8[512]{0}', space=smem, size = 0x200, scoped, tag = 'prefetched SMEM operand 0']
  #allocation5 [shape = 'u8[512]{0}', space=smem, size = 0x200, scoped, tag = 'prefetched SMEM operand 1']
  %s0 = inlined_call_operand.vmem [shape: s32[1,8], index: 0, kind: input, shape index: {}]
  %s1 = inlined_call_operand.vmem [shape: s32[1,8], index: 1, kind: input, shape index: {}]
  %s2 = inlined_call_operand.vmem [shape: bf16[8,32], index: 2, kind: input, shape index: {}]
  %s3 = inlined_call_operand.vmem [shape: bf16[8,32,64], index: 3, kind: input, shape index: {}]
  %s4 = inlined_call_operand.vmem [shape: bf16[8,32,64], index: 4, kind: input, shape index: {}]
  %s5 = inlined_call_operand.vmem [shape: bf16[8,64,32], index: 5, kind: input, shape index: {}]
  %s6 = inlined_call_operand.vmem [shape: f32[8,8,1], index: 6, kind: input, shape index: {}]
  %s7 = inlined_call_operand.vmem [shape: f32[8,32], index: 7, kind: input, shape index: {}]
  %s8 = inlined_call_operand.hbm [shape: f32[8,32], index: 8, kind: output, shape index: {}]
  %s9 = sld [smem:[#allocation0]]
  $region69: #{_lambda_.9} parent=0
    _
  %s11 = ssub.s32 1, %s9
  %s12 = scalar_select 0, %s11, %s9
  %s13 = sshll.u32 %s0, 4
  %s14 = int_to_ptr.vmem [resolvable:$true] %s13
  %16 = dma.vmem_to_smem %s14, 16, [#allocation4], [#allocation3]
  %s17 = sshll.u32 %s1, 4
  %s18 = int_to_ptr.vmem [resolvable:$true] %s17
  %20 = dma.vmem_to_smem %s18, 16, [#allocation5], [#allocation3]
  %21 = dma.done [#allocation3], 32
  %22 = sfence
  $region1: #{_lambda_.9} parent=0
    #allocation6 [shape = 'u8[4096]{0}', space=vmem, size = 0x1000, scoped, tag = 'output window, operand 0, single buffered']
    #allocation7 [shape = 's32[2]{0}', space=sflag, size = 0x8, scoped, tag = 'scoped memory for _lambda_.9']
    %23 = vsyncpa [#allocation7], 0
    loop: start=0, step=1, limit=10
    $region2: #{_lambda_.9} parent=1 // loop_pre_header
      _
    $region3: #{_lambda_.9} parent=1 // loop_header
      %s25 = sphi 0, %s29
      %p26 = scmp.ge.s32.totalorder %s25, 10
      %s32 = sphi 0, %s51
      %s33 = sphi 0, %s47
      %s34 = sphi 0, %s43
      %s35 = sphi 0, %s32
      %s36 = sphi 0, %s33
      %s37 = sphi 0, %s34
      %s38 = sphi 0, %s35
      %s39 = sphi 0, %s36
      %s40 = sphi 0, %s37
      %s54 = sphi 0, %s56
      %s57 = sphi 0, %s54
      %s58 = sphi 0, %s57
      %s74 = sphi 0, %s58
      %s98 = sphi 0, %s100
      %s101 = sphi 0, %s98
      %s102 = sphi 0, %s101
      %s118 = sphi 0, %s102
      %s142 = sphi 0, %s144
      %s145 = sphi 0, %s142
      %s146 = sphi 0, %s145
      %s162 = sphi 0, %s146
      %s186 = sphi 0, %s188
      %s189 = sphi 0, %s186
      %s190 = sphi 0, %s189
      %s206 = sphi 0, %s190
      %s230 = sphi 0, %s232
      %s233 = sphi 0, %s230
      %s234 = sphi 0, %s233
      %s250 = sphi 0, %s234
      %s256 = sphi 0, %s258
      %s259 = sphi 0, %s256
      %s260 = sphi 0, %s259
      %s276 = sphi 0, %s260
      %s282 = sphi 0, %s284
      %s285 = sphi 0, %s282
      %s286 = sphi 0, %s285
      %s302 = sphi 0, %s286
    $region4: #{_lambda_.9} parent=1 // loop_header_branch
      %28 = sbr.rel (%p26) target = $region8
    $region5: #{_lambda_.9} parent=1 // loop_body
      %s30 = ssub.s32 %s25, 1
      %s31 = ssub.s32 %s25, 2
      %s41 = sadd.s32 1, %s34
      %p42 = scmp.ge.s32.totalorder %s41, 8
      %s43 = scalar_select %p42, 0, %s41
      %s44 = sadd.s32 1, %s33
      %s45 = scalar_select %p42, %s44, %s33
      %p46 = scmp.ge.s32.totalorder %s45, 1
      %s47 = scalar_select %p46, 0, %s45
      %s48 = sadd.s32 1, %s32
      %s49 = scalar_select %p46, %s48, %s32
      %p50 = scmp.ge.s32.totalorder %s49, 1
      %s51 = scalar_select %p50, 0, %s49
      %s52 = ssub.s32 %s32, %s51
      %p53 = scmp.eq.s32.totalorder %s52, 0
      %s55 = sadd.s32 %s54, 1
      %s56 = scalar_select %p53, %s54, %s55
      %p59 = pneg %p53
      %p60 = scmp.eq.s32.totalorder %s25, 7
      %p61 = por %p59, %p60
      %p62 = scmp.ne.s32.totalorder %s54, %s57
      %p63 = scmp.eq.s32.totalorder %s25, 0
      %p64 = por %p62, %p63
      %p65 = scmp.ne.s32.totalorder %s54, %s57
      %p66 = scmp.eq.s32.totalorder %s30, 7
      %p67 = por %p65, %p66
      %p68 = scmp.ne.s32.totalorder %s57, %s58
      %p69 = scmp.eq.s32.totalorder %s30, 0
      %p70 = por %p68, %p69
      %p71 = scmp.ne.s32.totalorder %s57, %s58
      %p72 = scmp.eq.s32.totalorder %s31, 7
      %p73 = por %p71, %p72
      %p75 = scmp.ne.s32.totalorder %s58, %s74
      %p76 = scmp.eq.s32.totalorder %s31, 0
      %p77 = por %p75, %p76
      %s78 = sshra.s32 %s34, 7
      %s79 = sand.u32 %s34, 127
      %s80 = sadd.s32 %s78, %s32
      %s81 = smul.u32 %s80, 128
      %s82 = sshra.s32 %s34, 7
      %s83 = sand.u32 %s34, 127
      %s84 = sadd.s32 %s81, %s83
      %s85 = sld [smem:[#allocation4 + %s84]]
      %s86 = sshra.s32 %s43, 7
      %s87 = sand.u32 %s43, 127
      %s88 = sadd.s32 %s86, %s51
      %s89 = smul.u32 %s88, 128
      %s90 = sshra.s32 %s43, 7
      %s91 = sand.u32 %s43, 127
      %s92 = sadd.s32 %s89, %s91
      %s93 = sld [smem:[#allocation4 + %s92]]
      %s94 = ssub.s32 %s85, %s93
      %s95 = ssub.s32 %s33, %s47
      %s96 = sor.u32 %s94, %s95
      %p97 = scmp.eq.s32.totalorder %s96, 0
      %s99 = sadd.s32 %s98, 1
      %s100 = scalar_select %p97, %s98, %s99
      %p103 = pneg %p97
      %p104 = scmp.eq.s32.totalorder %s25, 7
      %p105 = por %p103, %p104
      %p106 = scmp.ne.s32.totalorder %s98, %s101
      %p107 = scmp.eq.s32.totalorder %s25, 0
      %p108 = por %p106, %p107
      %p109 = scmp.ne.s32.totalorder %s98, %s101
      %p110 = scmp.eq.s32.totalorder %s30, 7
      %p111 = por %p109, %p110
      %p112 = scmp.ne.s32.totalorder %s101, %s102
      %p113 = scmp.eq.s32.totalorder %s30, 0
      %p114 = por %p112, %p113
      %p115 = scmp.ne.s32.totalorder %s101, %s102
      %p116 = scmp.eq.s32.totalorder %s31, 7
      %p117 = por %p115, %p116
      %p119 = scmp.ne.s32.totalorder %s102, %s118
      %p120 = scmp.eq.s32.totalorder %s31, 0
      %p121 = por %p119, %p120
      %s122 = sshra.s32 %s34, 7
      %s123 = sand.u32 %s34, 127
      %s124 = sadd.s32 %s122, %s32
      %s125 = smul.u32 %s124, 128
      %s126 = sshra.s32 %s34, 7
      %s127 = sand.u32 %s34, 127
      %s128 = sadd.s32 %s125, %s127
      %s129 = sld [smem:[#allocation4 + %s128]]
      %s130 = sshra.s32 %s43, 7
      %s131 = sand.u32 %s43, 127
      %s132 = sadd.s32 %s130, %s51
      %s133 = smul.u32 %s132, 128
      %s134 = sshra.s32 %s43, 7
      %s135 = sand.u32 %s43, 127
      %s136 = sadd.s32 %s133, %s135
      %s137 = sld [smem:[#allocation4 + %s136]]
      %s138 = ssub.s32 %s129, %s137
      %s139 = ssub.s32 %s33, %s47
      %s140 = sor.u32 %s138, %s139
      %p141 = scmp.eq.s32.totalorder %s140, 0
      %s143 = sadd.s32 %s142, 1
      %s144 = scalar_select %p141, %s142, %s143
      %p147 = pneg %p141
      %p148 = scmp.eq.s32.totalorder %s25, 7
      %p149 = por %p147, %p148
      %p150 = scmp.ne.s32.totalorder %s142, %s145
      %p151 = scmp.eq.s32.totalorder %s25, 0
      %p152 = por %p150, %p151
      %p153 = scmp.ne.s32.totalorder %s142, %s145
      %p154 = scmp.eq.s32.totalorder %s30, 7
      %p155 = por %p153, %p154
      %p156 = scmp.ne.s32.totalorder %s145, %s146
      %p157 = scmp.eq.s32.totalorder %s30, 0
      %p158 = por %p156, %p157
      %p159 = scmp.ne.s32.totalorder %s145, %s146
      %p160 = scmp.eq.s32.totalorder %s31, 7
      %p161 = por %p159, %p160
      %p163 = scmp.ne.s32.totalorder %s146, %s162
      %p164 = scmp.eq.s32.totalorder %s31, 0
      %p165 = por %p163, %p164
      %s166 = sshra.s32 %s34, 7
      %s167 = sand.u32 %s34, 127
      %s168 = sadd.s32 %s166, %s32
      %s169 = smul.u32 %s168, 128
      %s170 = sshra.s32 %s34, 7
      %s171 = sand.u32 %s34, 127
      %s172 = sadd.s32 %s169, %s171
      %s173 = sld [smem:[#allocation4 + %s172]]
      %s174 = sshra.s32 %s43, 7
      %s175 = sand.u32 %s43, 127
      %s176 = sadd.s32 %s174, %s51
      %s177 = smul.u32 %s176, 128
      %s178 = sshra.s32 %s43, 7
      %s179 = sand.u32 %s43, 127
      %s180 = sadd.s32 %s177, %s179
      %s181 = sld [smem:[#allocation4 + %s180]]
      %s182 = ssub.s32 %s173, %s181
      %s183 = ssub.s32 %s33, %s47
      %s184 = sor.u32 %s182, %s183
      %p185 = scmp.eq.s32.totalorder %s184, 0
      %s187 = sadd.s32 %s186, 1
      %s188 = scalar_select %p185, %s186, %s187
      %p191 = pneg %p185
      %p192 = scmp.eq.s32.totalorder %s25, 7
      %p193 = por %p191, %p192
      %p194 = scmp.ne.s32.totalorder %s186, %s189
      %p195 = scmp.eq.s32.totalorder %s25, 0
      %p196 = por %p194, %p195
      %p197 = scmp.ne.s32.totalorder %s186, %s189
      %p198 = scmp.eq.s32.totalorder %s30, 7
      %p199 = por %p197, %p198
      %p200 = scmp.ne.s32.totalorder %s189, %s190
      %p201 = scmp.eq.s32.totalorder %s30, 0
      %p202 = por %p200, %p201
      %p203 = scmp.ne.s32.totalorder %s189, %s190
      %p204 = scmp.eq.s32.totalorder %s31, 7
      %p205 = por %p203, %p204
      %p207 = scmp.ne.s32.totalorder %s190, %s206
      %p208 = scmp.eq.s32.totalorder %s31, 0
      %p209 = por %p207, %p208
      %s210 = sshra.s32 %s34, 7
      %s211 = sand.u32 %s34, 127
      %s212 = sadd.s32 %s210, %s32
      %s213 = smul.u32 %s212, 128
      %s214 = sshra.s32 %s34, 7
      %s215 = sand.u32 %s34, 127
      %s216 = sadd.s32 %s213, %s215
      %s217 = sld [smem:[#allocation4 + %s216]]
      %s218 = sshra.s32 %s43, 7
      %s219 = sand.u32 %s43, 127
      %s220 = sadd.s32 %s218, %s51
      %s221 = smul.u32 %s220, 128
      %s222 = sshra.s32 %s43, 7
      %s223 = sand.u32 %s43, 127
      %s224 = sadd.s32 %s221, %s223
      %s225 = sld [smem:[#allocation4 + %s224]]
      %s226 = ssub.s32 %s217, %s225
      %s227 = ssub.s32 %s32, %s51
      %s228 = sor.u32 %s226, %s227
      %p229 = scmp.eq.s32.totalorder %s228, 0
      %s231 = sadd.s32 %s230, 1
      %s232 = scalar_select %p229, %s230, %s231
      %p235 = pneg %p229
      %p236 = scmp.eq.s32.totalorder %s25, 7
      %p237 = por %p235, %p236
      %p238 = scmp.ne.s32.totalorder %s230, %s233
      %p239 = scmp.eq.s32.totalorder %s25, 0
      %p240 = por %p238, %p239
      %p241 = scmp.ne.s32.totalorder %s230, %s233
      %p242 = scmp.eq.s32.totalorder %s30, 7
      %p243 = por %p241, %p242
      %p244 = scmp.ne.s32.totalorder %s233, %s234
      %p245 = scmp.eq.s32.totalorder %s30, 0
      %p246 = por %p244, %p245
      %p247 = scmp.ne.s32.totalorder %s233, %s234
      %p248 = scmp.eq.s32.totalorder %s31, 7
      %p249 = por %p247, %p248
      %p251 = scmp.ne.s32.totalorder %s234, %s250
      %p252 = scmp.eq.s32.totalorder %s31, 0
      %p253 = por %p251, %p252
      %s254 = ssub.s32 %s32, %s51
      %p255 = scmp.eq.s32.totalorder %s254, 0
      %s257 = sadd.s32 %s256, 1
      %s258 = scalar_select %p255, %s256, %s257
      %p261 = pneg %p255
      %p262 = scmp.eq.s32.totalorder %s25, 7
      %p263 = por %p261, %p262
      %p264 = scmp.ne.s32.totalorder %s256, %s259
      %p265 = scmp.eq.s32.totalorder %s25, 0
      %p266 = por %p264, %p265
      %p267 = scmp.ne.s32.totalorder %s256, %s259
      %p268 = scmp.eq.s32.totalorder %s30, 7
      %p269 = por %p267, %p268
      %p270 = scmp.ne.s32.totalorder %s259, %s260
      %p271 = scmp.eq.s32.totalorder %s30, 0
      %p272 = por %p270, %p271
      %p273 = scmp.ne.s32.totalorder %s259, %s260
      %p274 = scmp.eq.s32.totalorder %s31, 7
      %p275 = por %p273, %p274
      %p277 = scmp.ne.s32.totalorder %s260, %s276
      %p278 = scmp.eq.s32.totalorder %s31, 0
      %p279 = por %p277, %p278
      %s280 = ssub.s32 %s32, %s51
      %p281 = scmp.eq.s32.totalorder %s280, 0
      %s283 = sadd.s32 %s282, 1
      %s284 = scalar_select %p281, %s282, %s283
      %p287 = pneg %p281
      %p288 = scmp.eq.s32.totalorder %s25, 7
      %p289 = por %p287, %p288
      %p290 = scmp.ne.s32.totalorder %s282, %s285
      %p291 = scmp.eq.s32.totalorder %s25, 0
      %p292 = por %p290, %p291
      %p293 = scmp.ne.s32.totalorder %s282, %s285
      %p294 = scmp.eq.s32.totalorder %s30, 7
      %p295 = por %p293, %p294
      %p296 = scmp.ne.s32.totalorder %s285, %s286
      %p297 = scmp.eq.s32.totalorder %s30, 0
      %p298 = por %p296, %p297
      %p299 = scmp.ne.s32.totalorder %s285, %s286
      %p300 = scmp.eq.s32.totalorder %s31, 7
      %p301 = por %p299, %p300
      %p303 = scmp.ne.s32.totalorder %s286, %s302
      %p304 = scmp.eq.s32.totalorder %s31, 0
      %p305 = por %p303, %p304
      %p306 = scmp.le.s32.totalorder 1, %s25
      %p307 = scmp.lt.s32.totalorder %s25, 9
      %p308 = pnand %p306, %p307
      %p309 = pneg %p308
      // Predicated region
      $region9: #{_lambda_.9} parent=5 // pred_check
        _
      $region10: #{_lambda_.9} parent=5 // pred_check_branch
        %311 = sbr.rel (%p308) target = $region12
      $region11: #{_lambda_.9} parent=5 // pred_region
        %s312 = ssub.s32 %s25, 1
        // Predicated region
        $region13: #{_lambda_.9} parent=11 // pred_check
          %p313 = pneg %p70
        $region14: #{_lambda_.9} parent=11 // pred_check_branch
          %315 = sbr.rel (%p313) target = $region16
        $region15: #{_lambda_.9} parent=11 // pred_region
          %p316 = scmp.lt.s32.totalorder %s35, 0
          %s317 = scalar_select %p316, %s35, 0
          %s318 = smul.addr %s317, 4
          %s319 = scalar_lea.vmem %s2, %s318
        $region16: #{_lambda_.9} parent=11 // pred_fallthru
          _
        // Predicated region
        $region17: #{_lambda_.9} parent=11 // pred_check
          %p320 = pneg %p272
        $region18: #{_lambda_.9} parent=11 // pred_check_branch
          %322 = sbr.rel (%p320) target = $region20
        $region19: #{_lambda_.9} parent=11 // pred_region
          %p323 = scmp.lt.s32.totalorder %s35, 0
          %s324 = scalar_select %p323, %s35, 0
          %s325 = smul.addr %s324, 8
          %s326 = scalar_lea.vmem %s7, %s325
        $region20: #{_lambda_.9} parent=11 // pred_fallthru
          _
      $region12: #{_lambda_.9} parent=5 // pred_fallthru
        _
      %p327 = scmp.lt.s32.totalorder %s25, 8
      // Predicated region
      $region21: #{_lambda_.9} parent=5 // pred_check
        %p328 = pneg %p327
      $region22: #{_lambda_.9} parent=5 // pred_check_branch
        %330 = sbr.rel (%p328) target = $region24
      $region23: #{_lambda_.9} parent=5 // pred_region
        // Predicated region
        $region25: #{_lambda_.9} parent=23 // pred_check
          %p331 = pneg %p108
        $region26: #{_lambda_.9} parent=23 // pred_check_branch
          %333 = sbr.rel (%p331) target = $region28
        $region27: #{_lambda_.9} parent=23 // pred_region
          %s334 = sshra.s32 %s34, 7
          %s335 = sand.u32 %s34, 127
          %s336 = sadd.s32 %s334, %s32
          %s337 = smul.u32 %s336, 128
          %s338 = sshra.s32 %s34, 7
          %s339 = sand.u32 %s34, 127
          %s340 = sadd.s32 %s337, %s339
          %s341 = sld [smem:[#allocation4 + %s340]]
          %p342 = scmp.lt.s32.totalorder %s341, 7
          %s343 = scalar_select %p342, %s341, 7
          %p344 = scmp.lt.s32.totalorder %s33, 0
          %s345 = scalar_select %p344, %s33, 0
          %s346 = smul.addr %s343, 4
          %s347 = sadd.s32 %s345, %s346
          %s348 = smul.addr %s347, 4
          %s349 = scalar_lea.vmem %s3, %s348
          %s350 = sshra.s32 %s34, 7
          %s351 = sand.u32 %s34, 127
          %s352 = sadd.s32 %s350, %s32
          %s353 = smul.u32 %s352, 128
          %s354 = sshra.s32 %s34, 7
          %s355 = sand.u32 %s34, 127
          %s356 = sadd.s32 %s353, %s355
          %s357 = sld [smem:[#allocation4 + %s356]]
        $region28: #{_lambda_.9} parent=23 // pred_fallthru
          _
        // Predicated region
        $region29: #{_lambda_.9} parent=23 // pred_check
          %p358 = pneg %p152
        $region30: #{_lambda_.9} parent=23 // pred_check_branch
          %360 = sbr.rel (%p358) target = $region32
        $region31: #{_lambda_.9} parent=23 // pred_region
          %s361 = sshra.s32 %s34, 7
          %s362 = sand.u32 %s34, 127
          %s363 = sadd.s32 %s361, %s32
          %s364 = smul.u32 %s363, 128
          %s365 = sshra.s32 %s34, 7
          %s366 = sand.u32 %s34, 127
          %s367 = sadd.s32 %s364, %s366
          %s368 = sld [smem:[#allocation4 + %s367]]
          %p369 = scmp.lt.s32.totalorder %s368, 7
          %s370 = scalar_select %p369, %s368, 7
          %p371 = scmp.lt.s32.totalorder %s33, 0
          %s372 = scalar_select %p371, %s33, 0
          %s373 = smul.addr %s370, 4
          %s374 = sadd.s32 %s372, %s373
          %s375 = smul.addr %s374, 4
          %s376 = scalar_lea.vmem %s4, %s375
          %s377 = sshra.s32 %s34, 7
          %s378 = sand.u32 %s34, 127
          %s379 = sadd.s32 %s377, %s32
          %s380 = smul.u32 %s379, 128
          %s381 = sshra.s32 %s34, 7
          %s382 = sand.u32 %s34, 127
          %s383 = sadd.s32 %s380, %s382
          %s384 = sld [smem:[#allocation4 + %s383]]
        $region32: #{_lambda_.9} parent=23 // pred_fallthru
          _
        // Predicated region
        $region33: #{_lambda_.9} parent=23 // pred_check
          %p385 = pneg %p196
        $region34: #{_lambda_.9} parent=23 // pred_check_branch
          %387 = sbr.rel (%p385) target = $region36
        $region35: #{_lambda_.9} parent=23 // pred_region
          %s388 = sshra.s32 %s34, 7
          %s389 = sand.u32 %s34, 127
          %s390 = sadd.s32 %s388, %s32
          %s391 = smul.u32 %s390, 128
          %s392 = sshra.s32 %s34, 7
          %s393 = sand.u32 %s34, 127
          %s394 = sadd.s32 %s391, %s393
          %s395 = sld [smem:[#allocation4 + %s394]]
          %s396 = smul.u32 8, %s33
          %p397 = scmp.lt.s32.totalorder %s395, 7
          %s398 = scalar_select %p397, %s395, 7
          %p399 = scmp.lt.s32.totalorder %s396, 7
          %s400 = scalar_select %p399, %s396, 7
          %s401 = smul.addr %s398, 8
          %s402 = sadd.s32 %s400, %s401
          %s403 = smul.addr %s402, 4
          %s404 = scalar_lea.vmem %s5, %s403
          %s405 = sshra.s32 %s34, 7
          %s406 = sand.u32 %s34, 127
          %s407 = sadd.s32 %s405, %s32
          %s408 = smul.u32 %s407, 128
          %s409 = sshra.s32 %s34, 7
          %s410 = sand.u32 %s34, 127
          %s411 = sadd.s32 %s408, %s410
          %s412 = sld [smem:[#allocation4 + %s411]]
          %s413 = smul.u32 8, %s33
        $region36: #{_lambda_.9} parent=23 // pred_fallthru
          _
        // Predicated region
        $region37: #{_lambda_.9} parent=23 // pred_check
          %p414 = pneg %p240
        $region38: #{_lambda_.9} parent=23 // pred_check_branch
          %416 = sbr.rel (%p414) target = $region40
        $region39: #{_lambda_.9} parent=23 // pred_region
          %s417 = sshra.s32 %s34, 7
          %s418 = sand.u32 %s34, 127
          %s419 = sadd.s32 %s417, %s32
          %s420 = smul.u32 %s419, 128
          %s421 = sshra.s32 %s34, 7
          %s422 = sand.u32 %s34, 127
          %s423 = sadd.s32 %s420, %s422
          %s424 = sld [smem:[#allocation4 + %s423]]
          %p425 = scmp.lt.s32.totalorder %s424, 7
          %s426 = scalar_select %p425, %s424, 7
          %p427 = scmp.lt.s32.totalorder %s32, 0
          %s428 = scalar_select %p427, %s32, 0
          %s429 = sadd.s32 %s428, %s426
          %s430 = smul.addr %s429, 8
          %s431 = scalar_lea.vmem %s6, %s430
          %s432 = sshra.s32 %s34, 7
          %s433 = sand.u32 %s34, 127
          %s434 = sadd.s32 %s432, %s32
          %s435 = smul.u32 %s434, 128
          %s436 = sshra.s32 %s34, 7
          %s437 = sand.u32 %s34, 127
          %s438 = sadd.s32 %s435, %s437
          %s439 = sld [smem:[#allocation4 + %s438]]
        $region40: #{_lambda_.9} parent=23 // pred_fallthru
          _
      $region24: #{_lambda_.9} parent=5 // pred_fallthru
        _
      %p440 = scmp.le.s32.totalorder 1, %s25
      %p441 = scmp.lt.s32.totalorder %s25, 9
      %p442 = pnand %p440, %p441
      %p443 = pneg %p442
      // Predicated region
      $region41: #{_lambda_.9} parent=5 // pred_check
        _
      $region42: #{_lambda_.9} parent=5 // pred_check_branch
        %445 = sbr.rel (%p442) target = $region44
      $region43: #{_lambda_.9} parent=5 // pred_region
        %s446 = ssub.s32 %s25, 1
        %p447 = scmp.lt.s32.totalorder %s35, 0
        %s448 = scalar_select %p447, %s35, 0
        %s449 = smul.addr %s448, 4
        %s450 = scalar_lea.vmem %s2, %s449
        %p451 = pneg %p70
        %p452 = pneg %p67
        %s453 = sshra.s32 %s37, 7
        %s454 = sand.u32 %s37, 127
        %s455 = sadd.s32 %s453, %s35
        %s456 = smul.u32 %s455, 128
        %s457 = sshra.s32 %s37, 7
        %s458 = sand.u32 %s37, 127
        %s459 = sadd.s32 %s456, %s458
        %s460 = sld [smem:[#allocation4 + %s459]]
        %p461 = scmp.lt.s32.totalorder %s460, 7
        %s462 = scalar_select %p461, %s460, 7
        %p463 = scmp.lt.s32.totalorder %s36, 0
        %s464 = scalar_select %p463, %s36, 0
        %s465 = smul.addr %s462, 4
        %s466 = sadd.s32 %s464, %s465
        %s467 = smul.addr %s466, 4
        %s468 = scalar_lea.vmem %s3, %s467
        %p469 = pneg %p114
        %p470 = pneg %p111
        %s471 = sshra.s32 %s37, 7
        %s472 = sand.u32 %s37, 127
        %s473 = sadd.s32 %s471, %s35
        %s474 = smul.u32 %s473, 128
        %s475 = sshra.s32 %s37, 7
        %s476 = sand.u32 %s37, 127
        %s477 = sadd.s32 %s474, %s476
        %s478 = sld [smem:[#allocation4 + %s477]]
        %p479 = scmp.lt.s32.totalorder %s478, 7
        %s480 = scalar_select %p479, %s478, 7
        %p481 = scmp.lt.s32.totalorder %s36, 0
        %s482 = scalar_select %p481, %s36, 0
        %s483 = smul.addr %s480, 4
        %s484 = sadd.s32 %s482, %s483
        %s485 = smul.addr %s484, 4
        %s486 = scalar_lea.vmem %s4, %s485
        %p487 = pneg %p158
        %p488 = pneg %p155
        %s489 = sshra.s32 %s37, 7
        %s490 = sand.u32 %s37, 127
        %s491 = sadd.s32 %s489, %s35
        %s492 = smul.u32 %s491, 128
        %s493 = sshra.s32 %s37, 7
        %s494 = sand.u32 %s37, 127
        %s495 = sadd.s32 %s492, %s494
        %s496 = sld [smem:[#allocation4 + %s495]]
        %s497 = smul.u32 8, %s36
        %p498 = scmp.lt.s32.totalorder %s496, 7
        %s499 = scalar_select %p498, %s496, 7
        %p500 = scmp.lt.s32.totalorder %s497, 7
        %s501 = scalar_select %p500, %s497, 7
        %s502 = smul.addr %s499, 8
        %s503 = sadd.s32 %s501, %s502
        %s504 = smul.addr %s503, 4
        %s505 = scalar_lea.vmem %s5, %s504
        %p506 = pneg %p202
        %p507 = pneg %p199
        %s508 = sshra.s32 %s37, 7
        %s509 = sand.u32 %s37, 127
        %s510 = sadd.s32 %s508, %s35
        %s511 = smul.u32 %s510, 128
        %s512 = sshra.s32 %s37, 7
        %s513 = sand.u32 %s37, 127
        %s514 = sadd.s32 %s511, %s513
        %s515 = sld [smem:[#allocation4 + %s514]]
        %p516 = scmp.lt.s32.totalorder %s515, 7
        %s517 = scalar_select %p516, %s515, 7
        %p518 = scmp.lt.s32.totalorder %s35, 0
        %s519 = scalar_select %p518, %s35, 0
        %s520 = sadd.s32 %s519, %s517
        %s521 = smul.addr %s520, 8
        %s522 = scalar_lea.vmem %s6, %s521
        %p523 = pneg %p246
        %p524 = pneg %p243
        %p525 = scmp.lt.s32.totalorder %s35, 0
        %s526 = scalar_select %p525, %s35, 0
        %s527 = smul.addr %s526, 8
        %s528 = scalar_lea.vmem %s7, %s527
        %p529 = pneg %p272
        %p530 = pneg %p269
        %p531 = pneg %p298
        %p532 = pneg %p295
        %p533 = scmp.lt.s32.totalorder %s35, 0
        %s534 = scalar_select %p533, %s35, 0
        %s535 = smul.addr %s534, 4
        %s536 = scalar_lea.vmem %s2, %s535
        %s537 = sshra.s32 %s37, 7
        %s538 = sand.u32 %s37, 127
        %s539 = sadd.s32 %s537, %s35
        %s540 = smul.u32 %s539, 128
        %s541 = sshra.s32 %s37, 7
        %s542 = sand.u32 %s37, 127
        %s543 = sadd.s32 %s540, %s542
        %s544 = sld [smem:[#allocation4 + %s543]]
        %p545 = scmp.lt.s32.totalorder %s544, 7
        %s546 = scalar_select %p545, %s544, 7
        %p547 = scmp.lt.s32.totalorder %s36, 0
        %s548 = scalar_select %p547, %s36, 0
        %s549 = smul.addr %s546, 4
        %s550 = sadd.s32 %s548, %s549
        %s551 = smul.addr %s550, 4
        %s552 = scalar_lea.vmem %s3, %s551
        %s553 = sshra.s32 %s37, 7
        %s554 = sand.u32 %s37, 127
        %s555 = sadd.s32 %s553, %s35
        %s556 = smul.u32 %s555, 128
        %s557 = sshra.s32 %s37, 7
        %s558 = sand.u32 %s37, 127
        %s559 = sadd.s32 %s556, %s558
        %s560 = sld [smem:[#allocation4 + %s559]]
        %s561 = sshra.s32 %s37, 7
        %s562 = sand.u32 %s37, 127
        %s563 = sadd.s32 %s561, %s35
        %s564 = smul.u32 %s563, 128
        %s565 = sshra.s32 %s37, 7
        %s566 = sand.u32 %s37, 127
        %s567 = sadd.s32 %s564, %s566
        %s568 = sld [smem:[#allocation4 + %s567]]
        %p569 = scmp.lt.s32.totalorder %s568, 7
        %s570 = scalar_select %p569, %s568, 7
        %p571 = scmp.lt.s32.totalorder %s36, 0
        %s572 = scalar_select %p571, %s36, 0
        %s573 = smul.addr %s570, 4
        %s574 = sadd.s32 %s572, %s573
        %s575 = smul.addr %s574, 4
        %s576 = scalar_lea.vmem %s4, %s575
        %s577 = sshra.s32 %s37, 7
        %s578 = sand.u32 %s37, 127
        %s579 = sadd.s32 %s577, %s35
        %s580 = smul.u32 %s579, 128
        %s581 = sshra.s32 %s37, 7
        %s582 = sand.u32 %s37, 127
        %s583 = sadd.s32 %s580, %s582
        %s584 = sld [smem:[#allocation4 + %s583]]
        %s585 = sshra.s32 %s37, 7
        %s586 = sand.u32 %s37, 127
        %s587 = sadd.s32 %s585, %s35
        %s588 = smul.u32 %s587, 128
        %s589 = sshra.s32 %s37, 7
        %s590 = sand.u32 %s37, 127
        %s591 = sadd.s32 %s588, %s590
        %s592 = sld [smem:[#allocation4 + %s591]]
        %s593 = smul.u32 8, %s36
        %p594 = scmp.lt.s32.totalorder %s592, 7
        %s595 = scalar_select %p594, %s592, 7
        %p596 = scmp.lt.s32.totalorder %s593, 7
        %s597 = scalar_select %p596, %s593, 7
        %s598 = smul.addr %s595, 8
        %s599 = sadd.s32 %s597, %s598
        %s600 = smul.addr %s599, 4
        %s601 = scalar_lea.vmem %s5, %s600
        %s602 = sshra.s32 %s37, 7
        %s603 = sand.u32 %s37, 127
        %s604 = sadd.s32 %s602, %s35
        %s605 = smul.u32 %s604, 128
        %s606 = sshra.s32 %s37, 7
        %s607 = sand.u32 %s37, 127
        %s608 = sadd.s32 %s605, %s607
        %s609 = sld [smem:[#allocation4 + %s608]]
        %s610 = smul.u32 8, %s36
        %s611 = sshra.s32 %s37, 7
        %s612 = sand.u32 %s37, 127
        %s613 = sadd.s32 %s611, %s35
        %s614 = smul.u32 %s613, 128
        %s615 = sshra.s32 %s37, 7
        %s616 = sand.u32 %s37, 127
        %s617 = sadd.s32 %s614, %s616
        %s618 = sld [smem:[#allocation4 + %s617]]
        %p619 = scmp.lt.s32.totalorder %s618, 7
        %s620 = scalar_select %p619, %s618, 7
        %p621 = scmp.lt.s32.totalorder %s35, 0
        %s622 = scalar_select %p621, %s35, 0
        %s623 = sadd.s32 %s622, %s620
        %s624 = smul.addr %s623, 8
        %s625 = scalar_lea.vmem %s6, %s624
        %s626 = sshra.s32 %s37, 7
        %s627 = sand.u32 %s37, 127
        %s628 = sadd.s32 %s626, %s35
        %s629 = smul.u32 %s628, 128
        %s630 = sshra.s32 %s37, 7
        %s631 = sand.u32 %s37, 127
        %s632 = sadd.s32 %s629, %s631
        %s633 = sld [smem:[#allocation4 + %s632]]
        %p634 = scmp.lt.s32.totalorder %s35, 0
        %s635 = scalar_select %p634, %s35, 0
        %s636 = smul.addr %s635, 8
        %s637 = scalar_lea.vmem %s7, %s636
        %p639 = scmp.eq.s32.totalorder %s36, 0
        %p640 = scmp.eq.s32.totalorder %s37, 0
        %p641 = pnand %p639, %p640
        %p642 = pneg %p641
        // Predicated region
        $region45: #{_lambda_.9} parent=43 // pred_check
          _
        $region46: #{_lambda_.9} parent=43 // pred_check_branch
          %644 = sbr.rel (%p641) target = $region48
        $region47: #{_lambda_.9} parent=43 // pred_region
          %vm645 = vcmask 261120
          %646 = vst.msk [vmem:[#allocation2] sm:$0xff] %vm645, 0.0
        $region48: #{_lambda_.9} parent=43 // pred_fallthru
          _
        %s647 = sshra.s32 %s37, 7
        %s648 = sand.u32 %s37, 127
        %s649 = sadd.s32 %s647, %s35
        %s650 = smul.u32 %s649, 128
        %s651 = sshra.s32 %s37, 7
        %s652 = sand.u32 %s37, 127
        %s653 = sadd.s32 %s650, %s652
        %s654 = sld [smem:[#allocation5 + %s653]]
        %p655 = scmp.gt.s32.totalorder %s654, 0
        // Predicated region
        $region49: #{_lambda_.9} parent=43 // pred_check
          %p656 = pneg %p655
        $region50: #{_lambda_.9} parent=43 // pred_check_branch
          %658 = sbr.rel (%p656) target = $region52
        $region51: #{_lambda_.9} parent=43 // pred_region
          %v659 = vld [vmem:[%s536] sm:$0xf]
          %v660 = vld [vmem:[%s552] sm:$0xf]
          %v661 = vld [vmem:[%s552 + $0x4] sm:$0xf]
          %v662 = vld [vmem:[%s552 + $0x8] sm:$0xf]
          %v663 = vld [vmem:[%s552 + $0xc] sm:$0xf]
          %v668 = vunpack.c.l.b16 %v660
          %v669 = vunpack.c.l.b16 %v661
          %v670 = vunpack.c.l.b16 %v662
          %v671 = vunpack.c.l.b16 %v663
          %v672 = vpack.c.b16 %v669, %v668
          %v673 = vpack.c.b16 %v671, %v670
          %vm676 = vcmask 261120
          %v678 = vsel %vm676, %v659, 0
          %680 = vmatprep.subr.bf16.mxu0 0
          %681 = vmatpush1.bf16.msra.mxu0 %v672
          %682 = vmatprep.subr.bf16.mxu0 0
          %683 = vmatpush1.bf16.msra.mxu0 %v673
          %684 = vmatprep.subr.bf16.mxu0 0
          %685 = vmatpush1.bf16.msra.mxu0 0
          %686 = vmatprep.subr.bf16.mxu0 0
          %687 = vmatpush1.bf16.msra.mxu0 0
          %688 = vmatprep.subr.bf16.mxu0 0
          %689 = vmatpush1.bf16.msra.mxu0 0
          %690 = vmatprep.subr.bf16.mxu0 0
          %691 = vmatpush1.bf16.msra.mxu0 0
          %692 = vmatprep.subr.bf16.mxu0 0
          %693 = vmatpush1.bf16.msra.mxu0 0
          %694 = vmatprep.subr.bf16.mxu0 0
          %695 = vmatpush1.bf16.msra.mxu0 0
          %696 = vmatprep.subr.bf16.mxu0 0
          %697 = vmatpush1.bf16.msra.mxu0 0
          %698 = vmatprep.subr.bf16.mxu0 0
          %699 = vmatpush1.bf16.msra.mxu0 0
          %700 = vmatprep.subr.bf16.mxu0 0
          %701 = vmatpush1.bf16.msra.mxu0 0
          %702 = vmatprep.subr.bf16.mxu0 0
          %703 = vmatpush1.bf16.msra.mxu0 0
          %704 = vmatprep.subr.bf16.mxu0 0
          %705 = vmatpush1.bf16.msra.mxu0 0
          %706 = vmatprep.subr.bf16.mxu0 0
          %707 = vmatpush1.bf16.msra.mxu0 0
          %708 = vmatprep.subr.bf16.mxu0 0
          %709 = vmatpush1.bf16.msra.mxu0 0
          %710 = vmatprep.subr.bf16.mxu0 0
          %711 = vmatpush1.bf16.msra.mxu0 0
          %712 = vmatprep.mubr.bf16.mxu0 0
          %713 = vmatmul.mubr.bf16.gmra.mrb[0].mxu0 %v678
          %v714 = vpop.f32.mrb[0].mxu0
          %v715 = vadd.f32 0.0, %v714
          %v716 = vpop.f32.mrb[0].mxu0
          %v717 = vpop.f32.mrb[0].mxu0
          %v718 = vpop.f32.mrb[0].mxu0
          %719 = vdwg.mxu0
          %v720 = vld [vmem:[%s576] sm:$0xf]
          %v721 = vld [vmem:[%s576 + $0x4] sm:$0xf]
          %v722 = vld [vmem:[%s576 + $0x8] sm:$0xf]
          %v723 = vld [vmem:[%s576 + $0xc] sm:$0xf]
          %v728 = vunpack.c.l.b16 %v720
          %v729 = vunpack.c.l.b16 %v721
          %v730 = vunpack.c.l.b16 %v722
          %v731 = vunpack.c.l.b16 %v723
          %v732 = vpack.c.b16 %v729, %v728
          %v733 = vpack.c.b16 %v731, %v730
          %736 = vmatprep.subr.bf16.mxu0 0
          %737 = vmatpush1.bf16.msra.mxu0 %v732
          %738 = vmatprep.subr.bf16.mxu0 0
          %739 = vmatpush1.bf16.msra.mxu0 %v733
          %740 = vmatprep.subr.bf16.mxu0 0
          %741 = vmatpush1.bf16.msra.mxu0 0
          %742 = vmatprep.subr.bf16.mxu0 0
          %743 = vmatpush1.bf16.msra.mxu0 0
          %744 = vmatprep.subr.bf16.mxu0 0
          %745 = vmatpush1.bf16.msra.mxu0 0
          %746 = vmatprep.subr.bf16.mxu0 0
          %747 = vmatpush1.bf16.msra.mxu0 0
          %748 = vmatprep.subr.bf16.mxu0 0
          %749 = vmatpush1.bf16.msra.mxu0 0
          %750 = vmatprep.subr.bf16.mxu0 0
          %751 = vmatpush1.bf16.msra.mxu0 0
          %752 = vmatprep.subr.bf16.mxu0 0
          %753 = vmatpush1.bf16.msra.mxu0 0
          %754 = vmatprep.subr.bf16.mxu0 0
          %755 = vmatpush1.bf16.msra.mxu0 0
          %756 = vmatprep.subr.bf16.mxu0 0
          %757 = vmatpush1.bf16.msra.mxu0 0
          %758 = vmatprep.subr.bf16.mxu0 0
          %759 = vmatpush1.bf16.msra.mxu0 0
          %760 = vmatprep.subr.bf16.mxu0 0
          %761 = vmatpush1.bf16.msra.mxu0 0
          %762 = vmatprep.subr.bf16.mxu0 0
          %763 = vmatpush1.bf16.msra.mxu0 0
          %764 = vmatprep.subr.bf16.mxu0 0
          %765 = vmatpush1.bf16.msra.mxu0 0
          %766 = vmatprep.subr.bf16.mxu0 0
          %767 = vmatpush1.bf16.msra.mxu0 0
          %768 = vmatprep.mubr.bf16.mxu0 0
          %769 = vmatmul.mubr.bf16.gmra.mrb[0].mxu0 %v678
          %v770 = vpop.f32.mrb[0].mxu0
          %v771 = vadd.f32 0.0, %v770
          %v772 = vpop.f32.mrb[0].mxu0
          %v773 = vpop.f32.mrb[0].mxu0
          %v774 = vpop.f32.mrb[0].mxu0
          %775 = vdwg.mxu0
          %v776 = vxor.u32 %v715, 2147483648
          %v777 = vmul.f32 %v776, 1.442695
          %v778 = vpow.pop %v777
          %v779 = vadd.f32 %v778, 1.0
          %v780 = vrcp.pop %v779
          %v781 = vmul.f32 1.0, %v780
          %v782 = vmul.f32 %v715, %v781
          %v783 = vmul.f32 %v782, %v771
          %v784 = vpack.c.bf16 %v783, %v783
          %v785 = vld [vmem:[%s601] sm:$0xf]
          %v786 = vld [vmem:[%s601 + $0x4] sm:$0xf]
          %v787 = vld [vmem:[%s601 + $0x8] sm:$0xf]
          %v788 = vld [vmem:[%s601 + $0xc] sm:$0xf]
          %v789 = vld [vmem:[%s601 + $0x10] sm:$0xf]
          %v790 = vld [vmem:[%s601 + $0x14] sm:$0xf]
          %v791 = vld [vmem:[%s601 + $0x18] sm:$0xf]
          %v792 = vld [vmem:[%s601 + $0x1c] sm:$0xf]
          %v801 = vunpack.c.l.b16 %v785
          %v802 = vunpack.c.l.b16 %v786
          %v803 = vunpack.c.l.b16 %v787
          %v804 = vunpack.c.l.b16 %v788
          %v805 = vunpack.c.l.b16 %v789
          %v806 = vunpack.c.l.b16 %v790
          %v807 = vunpack.c.l.b16 %v791
          %v808 = vunpack.c.l.b16 %v792
          %v809 = vpack.c.b16 %v802, %v801
          %v810 = vpack.c.b16 %v804, %v803
          %v811 = vpack.c.b16 %v806, %v805
          %v812 = vpack.c.b16 %v808, %v807
          %vm817 = vcmask 523264
          %v819 = vsel %vm817, %v784, 0
          %821 = vmatprep.subr.bf16.mxu0 0
          %822 = vmatpush1.bf16.msra.mxu0 %v809
          %823 = vmatprep.subr.bf16.mxu0 0
          %824 = vmatpush1.bf16.msra.mxu0 %v810
          %825 = vmatprep.subr.bf16.mxu0 0
          %826 = vmatpush1.bf16.msra.mxu0 %v811
          %827 = vmatprep.subr.bf16.mxu0 0
          %828 = vmatpush1.bf16.msra.mxu0 %v812
          %829 = vmatprep.subr.bf16.mxu0 0
          %830 = vmatpush1.bf16.msra.mxu0 0
          %831 = vmatprep.subr.bf16.mxu0 0
          %832 = vmatpush1.bf16.msra.mxu0 0
          %833 = vmatprep.subr.bf16.mxu0 0
          %834 = vmatpush1.bf16.msra.mxu0 0
          %835 = vmatprep.subr.bf16.mxu0 0
          %836 = vmatpush1.bf16.msra.mxu0 0
          %837 = vmatprep.subr.bf16.mxu0 0
          %838 = vmatpush1.bf16.msra.mxu0 0
          %839 = vmatprep.subr.bf16.mxu0 0
          %840 = vmatpush1.bf16.msra.mxu0 0
          %841 = vmatprep.subr.bf16.mxu0 0
          %842 = vmatpush1.bf16.msra.mxu0 0
          %843 = vmatprep.subr.bf16.mxu0 0
          %844 = vmatpush1.bf16.msra.mxu0 0
          %845 = vmatprep.subr.bf16.mxu0 0
          %846 = vmatpush1.bf16.msra.mxu0 0
          %847 = vmatprep.subr.bf16.mxu0 0
          %848 = vmatpush1.bf16.msra.mxu0 0
          %849 = vmatprep.subr.bf16.mxu0 0
          %850 = vmatpush1.bf16.msra.mxu0 0
          %851 = vmatprep.subr.bf16.mxu0 0
          %852 = vmatpush1.bf16.msra.mxu0 0
          %853 = vmatprep.mubr.bf16.mxu0 0
          %854 = vmatmul.mubr.bf16.gmra.mrb[0].mxu0 %v819
          %v855 = vpop.f32.mrb[0].mxu0
          %v856 = vadd.f32 0.0, %v855
          %v857 = vpop.f32.mrb[0].mxu0
          %v858 = vpop.f32.mrb[0].mxu0
          %v859 = vpop.f32.mrb[0].mxu0
          %860 = vdwg.mxu0
          %v861 = vld [vmem:[#allocation2] sm:$0xff]
          %v862 = vld [vmem:[%s625] sm:$0xff]
          %864 = vset.pattern.permute.xlu0 0
          %865 = vperm.xlu0 %864, %v862
          %v866 = vpop.permute.xlu0 %865
          %v868 = vmul.f32 %v866, %v856
          %v869 = vadd.f32 %v861, %v868
          %870 = vst.msk [vmem:[#allocation2] sm:$0xff] %vm676, %v869
        $region52: #{_lambda_.9} parent=43 // pred_fallthru
          _
        %p871 = scmp.eq.s32.totalorder %s37, 7
        %p872 = pnand %p639, %p871
        %p873 = pneg %p872
        // Predicated region
        $region53: #{_lambda_.9} parent=43 // pred_check
          _
        $region54: #{_lambda_.9} parent=43 // pred_check_branch
          %875 = sbr.rel (%p872) target = $region56
        $region55: #{_lambda_.9} parent=43 // pred_region
          %v876 = vld [vmem:[%s637] sm:$0xff]
          %v877 = vld [vmem:[#allocation2] sm:$0xff]
          %v878 = vadd.f32 %v876, %v877
          %vm879 = vcmask 261120
          %880 = vst.msk [vmem:[#allocation6] sm:$0xff] %vm879, %v878
        $region56: #{_lambda_.9} parent=43 // pred_fallthru
          _
        // Predicated region
        $region57: #{_lambda_.9} parent=43 // pred_check
          %p881 = pneg %p295
        $region58: #{_lambda_.9} parent=43 // pred_check_branch
          %883 = sbr.rel (%p881) target = $region60
        $region59: #{_lambda_.9} parent=43 // pred_region
          %s885 = ssub.s32 128, 128
          %886 = vsyncadd [#allocation7], %s885
          %s887 = smul.addr %s35, 128
          %s888 = scalar_lea.hbm %s8, %s887
          %s890 = sshll.u32 [#allocation6], 4
          %s891 = int_to_ptr.vmem [resolvable:$true] %s890
          %893 = dma.vmem_to_hbm [thread:$0]  %s891, 128, %s888, [#allocation7]
        $region60: #{_lambda_.9} parent=43 // pred_fallthru
          _
        // Predicated region
        $region61: #{_lambda_.9} parent=43 // pred_check
          %p894 = pneg %p295
        $region62: #{_lambda_.9} parent=43 // pred_check_branch
          %896 = sbr.rel (%p894) target = $region64
        $region63: #{_lambda_.9} parent=43 // pred_region
          %897 = dma.done [#allocation7], 128
        $region64: #{_lambda_.9} parent=43 // pred_fallthru
          _
      $region44: #{_lambda_.9} parent=5 // pred_fallthru
        _
      %p898 = scmp.le.s32.totalorder 2, %s25
      // Predicated region
      $region65: #{_lambda_.9} parent=5 // pred_check
        %p899 = pneg %p898
      $region66: #{_lambda_.9} parent=5 // pred_check_branch
        %901 = sbr.rel (%p899) target = $region68
      $region67: #{_lambda_.9} parent=5 // pred_region
        %s902 = ssub.s32 %s25, 2
      $region68: #{_lambda_.9} parent=5 // pred_fallthru
        _
    $region6: #{_lambda_.9} parent=1 // loop_footer
      %s29 = sadd.s32 1, %s25
    $region7: #{_lambda_.9} parent=1 // loop_footer_branch
      %24 = sbr.rel target = $region3
    $region8: #{_lambda_.9} parent=1 // loop_exit
      _
    %903 = vsyncpa [#allocation7], 1
    %s904 = scalar_lea.sflag [#allocation7], 1
    %905 = vsyncpa %s904, 1

</llo_original>
